<compile_context>
chip_gen: v7x
topology: tpu7x:2x2x1
jax: 0.10.0
libtpu: 0.0.40
codegen_flags: <defaults>
</compile_context>

<pallas_src>
import jax
import jax.numpy as jnp
from jax.experimental import pallas as pl
from jax.experimental.pallas import tpu as pltpu

C_PAD = 32            # channel padding for intermediate activations (real 16/32)
FC_PAD = 128          # lane padding for fc hidden / logits
MAX_TILE = 256        # max rows per grid step
ACT_DT = jnp.bfloat16

_COMPILER_PARAMS = pltpu.CompilerParams(
    dimension_semantics=("parallel",),
    vmem_limit_bytes=32 * 1024 * 1024,
)


# ---------------------------------------------------------------------------
# Pallas kernels
# ---------------------------------------------------------------------------
def _conv_pool_kernel(p00_ref, p01_ref, p10_ref, p11_ref, w_ref, b_ref, o_ref):
    """Fused conv-as-matmul (+bias) + ReLU + 2x2/stride-2 max-pool.

    The four patch tensors are the im2col patches of the four pool partners
    (output parities).  relu(max(.)+b) == max(relu(.+b)) since b is shared
    and relu is monotone.  bf16 operands, f32 accumulation.
    """
    w = w_ref[...]
    y = jnp.maximum(
        jnp.maximum(
            jnp.dot(p00_ref[...], w, preferred_element_type=jnp.float32),
            jnp.dot(p01_ref[...], w, preferred_element_type=jnp.float32)),
        jnp.maximum(
            jnp.dot(p10_ref[...], w, preferred_element_type=jnp.float32),
            jnp.dot(p11_ref[...], w, preferred_element_type=jnp.float32)),
    )
    o_ref[...] = jnp.maximum(y + b_ref[...], 0.0).astype(o_ref.dtype)


def _conv_relu_kernel(p_ref, w_ref, b_ref, o_ref):
    """conv-as-matmul + bias + ReLU (no pool)."""
    y = jnp.dot(p_ref[...], w_ref[...],
                preferred_element_type=jnp.float32) + b_ref[...]
    o_ref[...] = jnp.maximum(y, 0.0).astype(o_ref.dtype)


def _fc_fused_kernel(x_ref, w1_ref, b1_ref, w2_ref, b2_ref, o_ref):
    """Fused fc1 (+ReLU) and fc2; the hidden activation stays in VMEM/vregs."""
    h = jnp.dot(x_ref[...], w1_ref[...],
                preferred_element_type=jnp.float32) + b1_ref[...]
    h = jnp.maximum(h, 0.0).astype(w2_ref.dtype)          # bf16 back into MXU
    o = jnp.dot(h, w2_ref[...],
                preferred_element_type=jnp.float32) + b2_ref[...]
    o_ref[...] = o.astype(o_ref.dtype)


# ---------------------------------------------------------------------------
# pallas_call wrappers
# ---------------------------------------------------------------------------
def _round_up(x, m):
    return ((x + m - 1) // m) * m


def _tile_rows(m, max_tile=MAX_TILE):
    """Rows per grid step: multiple of 16, capped, >=2 steps when possible
    (v7x has 2 TensorCores; a 1-step grid leaves one idle)."""
    tm = min(max_tile, max(16, _round_up(pl.cdiv(m, 2), 16)))
    grid = pl.cdiv(m, tm)
    return grid * tm, tm, grid


def conv_pool(p4, w, b):
    """p4: 4 patch matrices (M, K) bf16; w: (K, 32) bf16; b: (1, 32) f32."""
    m, k = p4[0].shape
    mp, tm, grid = _tile_rows(m)
    if mp != m:
        p4 = [jnp.pad(p, ((0, mp - m), (0, 0))) for p in p4]
    cout = w.shape[1]
    cost = pl.CostEstimate(
        flops=2 * mp * k * cout * 4,
        transcendentals=0,
        bytes_accessed=(4 * mp * k + k * cout + mp * cout) * 2 + cout * 4,
    )
    out = pl.pallas_call(
        _conv_pool_kernel,
        out_shape=jax.ShapeDtypeStruct((mp, cout), ACT_DT),
        grid=(grid,),
        in_specs=[pl.BlockSpec((tm, k), lambda i: (i, 0)) for _ in range(4)]
        + [pl.BlockSpec((k, cout), lambda i: (0, 0)),
           pl.BlockSpec((1, cout), lambda i: (0, 0))],
        out_specs=pl.BlockSpec((tm, cout), lambda i: (i, 0)),
        compiler_params=_COMPILER_PARAMS,
        cost_estimate=cost,
    )(*p4, w, b)
    return out[:m] if mp != m else out


def conv_relu(p, w, b):
    m, k = p.shape
    mp, tm, grid = _tile_rows(m)
    if mp != m:
        p = jnp.pad(p, ((0, mp - m), (0, 0)))
    cout = w.shape[1]
    cost = pl.CostEstimate(
        flops=2 * mp * k * cout,
        transcendentals=0,
        bytes_accessed=(mp * k + k * cout + mp * cout) * 2 + cout * 4,
    )
    out = pl.pallas_call(
        _conv_relu_kernel,
        out_shape=jax.ShapeDtypeStruct((mp, cout), ACT_DT),
        grid=(grid,),
        in_specs=[pl.BlockSpec((tm, k), lambda i: (i, 0)),
                  pl.BlockSpec((k, cout), lambda i: (0, 0)),
                  pl.BlockSpec((1, cout), lambda i: (0, 0))],
        out_specs=pl.BlockSpec((tm, cout), lambda i: (i, 0)),
        compiler_params=_COMPILER_PARAMS,
        cost_estimate=cost,
    )(p, w, b)
    return out[:m] if mp != m else out


def fc_fused(x, w1, b1, w2, b2):
    m, k = x.shape
    mp, tm, grid = _tile_rows(m)
    if mp != m:
        x = jnp.pad(x, ((0, mp - m), (0, 0)))
    cost = pl.CostEstimate(
        flops=2 * mp * k * FC_PAD + 2 * mp * FC_PAD * FC_PAD,
        transcendentals=0,
        bytes_accessed=(mp * k + k * FC_PAD + FC_PAD * FC_PAD) * 2
        + (2 * FC_PAD + mp * FC_PAD) * 4,
    )
    out = pl.pallas_call(
        _fc_fused_kernel,
        out_shape=jax.ShapeDtypeStruct((mp, FC_PAD), jnp.float32),
        grid=(grid,),
        in_specs=[pl.BlockSpec((tm, k), lambda i: (i, 0)),
                  pl.BlockSpec((k, FC_PAD), lambda i: (0, 0)),
                  pl.BlockSpec((1, FC_PAD), lambda i: (0, 0)),
                  pl.BlockSpec((FC_PAD, FC_PAD), lambda i: (0, 0)),
                  pl.BlockSpec((1, FC_PAD), lambda i: (0, 0))],
        out_specs=pl.BlockSpec((tm, FC_PAD), lambda i: (i, 0)),
        compiler_params=_COMPILER_PARAMS,
        cost_estimate=cost,
    )(x, w1, b1, w2, b2)
    return out[:m] if mp != m else out


# ---------------------------------------------------------------------------
# Patch extraction (plain XLA slicing / concat; bf16, 32-channel inputs)
# ---------------------------------------------------------------------------
def _pooled_conv_patches(x, ho2, wo2):
    """4 parity-split im2col matrices for a 3x3 conv followed by 2x2 pool.

    x: NHWC input (already spatially padded if the conv uses padding).
    Returns 4 arrays of shape (N*ho2*wo2, 9*C), one per pool partner.
    """
    n, _, _, c = x.shape
    outs = []
    for dh in (0, 1):
        for dw in (0, 1):
            cols = []
            for ki in range(3):
                for kj in range(3):
                    hs, ws = dh + ki, dw + kj
                    cols.append(
                        x[:, hs:hs + 2 * ho2 - 1:2, ws:ws + 2 * wo2 - 1:2, :])
            p = jnp.concatenate(cols, axis=-1)      # (N, ho2, wo2, 9*C)
            outs.append(p.reshape(n * ho2 * wo2, 9 * c))
    return outs


def _conv_patches(x, ho, wo):
    """Standard 3x3 'valid' im2col: (N*ho*wo, 9*C), rows in (n, h, w) order."""
    n, _, _, c = x.shape
    cols = []
    for ki in range(3):
        for kj in range(3):
            cols.append(x[:, ki:ki + ho, kj:kj + wo, :])
    return jnp.concatenate(cols, axis=-1).reshape(n * ho * wo, 9 * c)


# ---------------------------------------------------------------------------
# Parameters: raw PyTorch-layout init, pre-packed ONCE into kernel layout
# ---------------------------------------------------------------------------
def _pack_conv_w(w, cin_pad, cout_pad=C_PAD):
    cout, cin, kh, kw = w.shape
    w = jnp.transpose(w, (2, 3, 1, 0))                       # (kh,kw,cin,cout)
    w = jnp.pad(w, ((0, 0), (0, 0), (0, cin_pad - cin), (0, cout_pad - cout)))
    return w.reshape(kh * kw * cin_pad, cout_pad).astype(ACT_DT)


def _pack_bias(b, pad):
    return jnp.pad(b, (0, pad - b.shape[0])).reshape(1, pad).astype(jnp.float32)


def prepack_params(raw):
    # conv1: K = 9*3 = 27, flat-padded to 32 (patches get 5 zero columns).
    w1c = _pack_conv_w(raw["conv1_w"], cin_pad=3)            # (27, 32) bf16
    p = {
        "conv1_w": jnp.pad(w1c, ((0, 32 - 27), (0, 0))),     # (32, 32)
        "conv1_b": _pack_bias(raw["conv1_b"], C_PAD),
        "conv2_w": _pack_conv_w(raw["conv2_w"], cin_pad=C_PAD),   # (288, 32)
        "conv2_b": _pack_bias(raw["conv2_b"], C_PAD),
        "conv3_w": _pack_conv_w(raw["conv3_w"], cin_pad=C_PAD),   # (288, 32)
        "conv3_b": _pack_bias(raw["conv3_b"], C_PAD),
    }
    # fc1: torch does x.view(-1, 32*5*5) i.e. (c, h, w)-order flatten.
    # We feed the kernel an (h, w, c)-order flatten, so reorder rows here.
    w1 = raw["fc1_w"].reshape(120, 32, 5, 5)                 # (out, c, h, w)
    w1 = jnp.transpose(w1, (2, 3, 1, 0))                     # (h, w, c, out)
    w1 = jnp.pad(w1, ((0, 0), (0, 0), (0, 0), (0, FC_PAD - 120)))
    p["fc1_w"] = w1.reshape(5 * 5 * 32, FC_PAD).astype(ACT_DT)    # (800, 128)
    p["fc1_b"] = _pack_bias(raw["fc1_b"], FC_PAD)
    w2 = jnp.transpose(raw["fc2_w"], (1, 0))                 # (120, 10)
    p["fc2_w"] = jnp.pad(w2, ((0, FC_PAD - 120),
                              (0, FC_PAD - 10))).astype(ACT_DT)   # (128, 128)
    p["fc2_b"] = _pack_bias(raw["fc2_b"], FC_PAD)
    return p


def init_params(key):
    ks = jax.random.split(key, 10)
    s = 0.05
    raw = {
        "conv1_w": s * jax.random.normal(ks[0], (16, 3, 3, 3), jnp.float32),
        "conv1_b": s * jax.random.normal(ks[1], (16,), jnp.float32),
        "conv2_w": s * jax.random.normal(ks[2], (32, 16, 3, 3), jnp.float32),
        "conv2_b": s * jax.random.normal(ks[3], (32,), jnp.float32),
        "conv3_w": s * jax.random.normal(ks[4], (32, 32, 3, 3), jnp.float32),
        "conv3_b": s * jax.random.normal(ks[5], (32,), jnp.float32),
        "fc1_w": s * jax.random.normal(ks[6], (120, 32 * 5 * 5), jnp.float32),
        "fc1_b": s * jax.random.normal(ks[7], (120,), jnp.float32),
        "fc2_w": s * jax.random.normal(ks[8], (10, 120), jnp.float32),
        "fc2_b": s * jax.random.normal(ks[9], (10,), jnp.float32),
    }
    return prepack_params(raw)


# ---------------------------------------------------------------------------
# Forward pass (inference semantics: Dropout2d / Dropout are identity)
# ---------------------------------------------------------------------------
def net_forward(params, x_nchw):
    x = jnp.transpose(x_nchw, (0, 2, 3, 1)).astype(ACT_DT)   # (N, 32, 32, 3)
    n = x.shape[0]

    # conv1 (3x3, pad=1) + ReLU + 2x2 maxpool  -> (N, 16, 16, 32) [16 real ch]
    xp = jnp.pad(x, ((0, 0), (1, 1), (1, 1), (0, 0)))
    p4 = _pooled_conv_patches(xp, 16, 16)                    # 4 x (256N, 27)
    p4 = [jnp.pad(p, ((0, 0), (0, 32 - 27))) for p in p4]    # K 27 -> 32
    y = conv_pool(p4, params["conv1_w"], params["conv1_b"])  # (256N, 32) bf16
    y = y.reshape(n, 16, 16, C_PAD)

    # conv2 (3x3, valid) + ReLU + 2x2 maxpool  -> (N, 7, 7, 32)
    y = conv_pool(_pooled_conv_patches(y, 7, 7),             # 4 x (49N, 288)
                  params["conv2_w"], params["conv2_b"])      # (49N, 32)
    y = y.reshape(n, 7, 7, C_PAD)

    # conv3 (3x3, valid) + ReLU  -> (25N, 32)
    y = conv_relu(_conv_patches(y, 5, 5),                    # (25N, 288)
                  params["conv3_w"], params["conv3_b"])

    # flatten in (h, w, c) order (fc1 weights were pre-reordered to match)
    x_fc = y.reshape(n, 5 * 5 * 32)                          # (N, 800) bf16

    # fused fc1 (+ReLU) + fc2  -> (N, 128) f32, first 10 columns are logits
    out = fc_fused(x_fc, params["fc1_w"], params["fc1_b"],
                   params["fc2_w"], params["fc2_b"])
    return out[:, :10]


# ---------------------------------------------------------------------------
if __name__ == "__main__":
    key = jax.random.PRNGKey(0)
    k_param, k_x = jax.random.split(key)
    params = init_params(k_param)
    # Input spatial size must be 32x32 (CIFAR) so the flatten hits 32*5*5.
    x = jax.random.normal(k_x, (2, 3, 32, 32), jnp.float32)

    out = jax.jit(net_forward)(params, x)
    out = jax.block_until_ready(out)
    assert out.shape == (2, 10) and out.dtype == jnp.float32
    print("KERNEL_OK")
</pallas_src>

<mosaic_0001>
module attributes {stable_mosaic.version = 11 : i64} {
  func.func @_conv_pool_kernel(%arg0: i32, %arg1: memref<256x32xbf16, #tpu.memory_space<vmem>>, %arg2: memref<256x32xbf16, #tpu.memory_space<vmem>>, %arg3: memref<256x32xbf16, #tpu.memory_space<vmem>>, %arg4: memref<256x32xbf16, #tpu.memory_space<vmem>>, %arg5: memref<32x32xbf16, #tpu.memory_space<vmem>>, %arg6: memref<1x32xf32, #tpu.memory_space<vmem>>, %arg7: memref<256x32xbf16, #tpu.memory_space<vmem>>) attributes {dimension_semantics = [#tpu.dimension_semantics<parallel>], iteration_bounds = array<i64: 2>, scalar_prefetch = 0 : i64, scratch_operands = 0 : i64, tpu.core_type = #tpu.core_type<tc>, window_params = [{transform_indices = @transform_0, window_bounds = array<i64: 256, 32>}, {transform_indices = @transform_1, window_bounds = array<i64: 256, 32>}, {transform_indices = @transform_2, window_bounds = array<i64: 256, 32>}, {transform_indices = @transform_3, window_bounds = array<i64: 256, 32>}, {pipeline_mode = #tpu.pipeline_mode<synchronous>, transform_indices = @transform_4, window_bounds = array<i64: 32, 32>}, {pipeline_mode = #tpu.pipeline_mode<synchronous>, transform_indices = @transform_5, window_bounds = array<i64: 1, 32>}, {transform_indices = @transform_6, window_bounds = array<i64: 256, 32>}]} {
    %c0 = arith.constant 0 : index
    %c0_0 = arith.constant 0 : index
    %0 = vector.load %arg5[%c0, %c0_0] : memref<32x32xbf16, #tpu.memory_space<vmem>>, vector<32x32xbf16>
    %c0_1 = arith.constant 0 : index
    %c0_2 = arith.constant 0 : index
    %1 = vector.load %arg1[%c0_1, %c0_2] : memref<256x32xbf16, #tpu.memory_space<vmem>>, vector<256x32xbf16>
    %cst = arith.constant dense<0.000000e+00> : vector<256x32xf32>
    %2 = tpu.matmul %1, %0, %cst {dimension_numbers = #tpu.dot_dimension_numbers<[1], [0], [0], [1], [0, 0, 1, 1], [], []>} : vector<256x32xbf16>, vector<32x32xbf16>, vector<256x32xf32> -> vector<256x32xf32>
    %c0_3 = arith.constant 0 : index
    %c0_4 = arith.constant 0 : index
    %3 = vector.load %arg2[%c0_3, %c0_4] : memref<256x32xbf16, #tpu.memory_space<vmem>>, vector<256x32xbf16>
    %cst_5 = arith.constant dense<0.000000e+00> : vector<256x32xf32>
    %4 = tpu.matmul %3, %0, %cst_5 {dimension_numbers = #tpu.dot_dimension_numbers<[1], [0], [0], [1], [0, 0, 1, 1], [], []>} : vector<256x32xbf16>, vector<32x32xbf16>, vector<256x32xf32> -> vector<256x32xf32>
    %5 = arith.maximumf %2, %4 : vector<256x32xf32>
    %c0_6 = arith.constant 0 : index
    %c0_7 = arith.constant 0 : index
    %6 = vector.load %arg3[%c0_6, %c0_7] : memref<256x32xbf16, #tpu.memory_space<vmem>>, vector<256x32xbf16>
    %cst_8 = arith.constant dense<0.000000e+00> : vector<256x32xf32>
    %7 = tpu.matmul %6, %0, %cst_8 {dimension_numbers = #tpu.dot_dimension_numbers<[1], [0], [0], [1], [0, 0, 1, 1], [], []>} : vector<256x32xbf16>, vector<32x32xbf16>, vector<256x32xf32> -> vector<256x32xf32>
    %c0_9 = arith.constant 0 : index
    %c0_10 = arith.constant 0 : index
    %8 = vector.load %arg4[%c0_9, %c0_10] : memref<256x32xbf16, #tpu.memory_space<vmem>>, vector<256x32xbf16>
    %cst_11 = arith.constant dense<0.000000e+00> : vector<256x32xf32>
    %9 = tpu.matmul %8, %0, %cst_11 {dimension_numbers = #tpu.dot_dimension_numbers<[1], [0], [0], [1], [0, 0, 1, 1], [], []>} : vector<256x32xbf16>, vector<32x32xbf16>, vector<256x32xf32> -> vector<256x32xf32>
    %10 = arith.maximumf %7, %9 : vector<256x32xf32>
    %11 = arith.maximumf %5, %10 : vector<256x32xf32>
    %c0_12 = arith.constant 0 : index
    %c0_13 = arith.constant 0 : index
    %12 = vector.load %arg6[%c0_12, %c0_13] : memref<1x32xf32, #tpu.memory_space<vmem>>, vector<1x32xf32>
    %13 = vector.broadcast %12 : vector<1x32xf32> to vector<256x32xf32>
    %14 = arith.addf %11, %13 : vector<256x32xf32>
    %cst_14 = arith.constant 0.000000e+00 : f32
    %15 = vector.broadcast %cst_14 : f32 to vector<256x32xf32>
    %16 = arith.maximumf %14, %15 : vector<256x32xf32>
    %17 = arith.truncf %16 : vector<256x32xf32> to vector<256x32xbf16>
    %c0_15 = arith.constant 0 : index
    %c0_16 = arith.constant 0 : index
    %18 = vector.load %arg7[%c0_15, %c0_16] : memref<256x32xbf16, #tpu.memory_space<vmem>>, vector<256x32xbf16>
    tpu.vector_store %arg7[%c0_15, %c0_16], %17 {strides = array<i32>} : memref<256x32xbf16, #tpu.memory_space<vmem>>, vector<256x32xbf16>,
    return
  }
  func.func @transform_0(%arg0: i32) -> (i32, i32) {
    %c0_i32 = arith.constant 0 : i32
    %c0_i32_0 = arith.constant 0 : i32
    return %arg0, %c0_i32 : i32, i32
  }
  func.func @transform_1(%arg0: i32) -> (i32, i32) {
    %c0_i32 = arith.constant 0 : i32
    %c0_i32_0 = arith.constant 0 : i32
    return %arg0, %c0_i32 : i32, i32
  }
  func.func @transform_2(%arg0: i32) -> (i32, i32) {
    %c0_i32 = arith.constant 0 : i32
    %c0_i32_0 = arith.constant 0 : i32
    return %arg0, %c0_i32 : i32, i32
  }
  func.func @transform_3(%arg0: i32) -> (i32, i32) {
    %c0_i32 = arith.constant 0 : i32
    %c0_i32_0 = arith.constant 0 : i32
    return %arg0, %c0_i32 : i32, i32
  }
  func.func @transform_4(%arg0: i32) -> (i32, i32) {
    %c0_i32 = arith.constant 0 : i32
    %c0_i32_0 = arith.constant 0 : i32
    %c0_i32_1 = arith.constant 0 : i32
    return %c0_i32, %c0_i32_0 : i32, i32
  }
  func.func @transform_5(%arg0: i32) -> (i32, i32) {
    %c0_i32 = arith.constant 0 : i32
    %c0_i32_0 = arith.constant 0 : i32
    %c0_i32_1 = arith.constant 0 : i32
    return %c0_i32, %c0_i32_0 : i32, i32
  }
  func.func @transform_6(%arg0: i32) -> (i32, i32) {
    %c0_i32 = arith.constant 0 : i32
    %c0_i32_0 = arith.constant 0 : i32
    return %arg0, %c0_i32 : i32, i32
  }
}

module attributes {stable_mosaic.version = 11 : i64} {
  func.func @_conv_pool_kernel(%arg0: i32, %arg1: memref<64x288xbf16, #tpu.memory_space<vmem>>, %arg2: memref<64x288xbf16, #tpu.memory_space<vmem>>, %arg3: memref<64x288xbf16, #tpu.memory_space<vmem>>, %arg4: memref<64x288xbf16, #tpu.memory_space<vmem>>, %arg5: memref<288x32xbf16, #tpu.memory_space<vmem>>, %arg6: memref<1x32xf32, #tpu.memory_space<vmem>>, %arg7: memref<64x32xbf16, #tpu.memory_space<vmem>>) attributes {dimension_semantics = [#tpu.dimension_semantics<parallel>], iteration_bounds = array<i64: 2>, scalar_prefetch = 0 : i64, scratch_operands = 0 : i64, tpu.core_type = #tpu.core_type<tc>, window_params = [{transform_indices = @transform_0, window_bounds = array<i64: 64, 288>}, {transform_indices = @transform_1, window_bounds = array<i64: 64, 288>}, {transform_indices = @transform_2, window_bounds = array<i64: 64, 288>}, {transform_indices = @transform_3, window_bounds = array<i64: 64, 288>}, {pipeline_mode = #tpu.pipeline_mode<synchronous>, transform_indices = @transform_4, window_bounds = array<i64: 288, 32>}, {pipeline_mode = #tpu.pipeline_mode<synchronous>, transform_indices = @transform_5, window_bounds = array<i64: 1, 32>}, {transform_indices = @transform_6, window_bounds = array<i64: 64, 32>}]} {
    %c0 = arith.constant 0 : index
    %c0_0 = arith.constant 0 : index
    %0 = vector.load %arg5[%c0, %c0_0] : memref<288x32xbf16, #tpu.memory_space<vmem>>, vector<288x32xbf16>
    %c0_1 = arith.constant 0 : index
    %c0_2 = arith.constant 0 : index
    %1 = vector.load %arg1[%c0_1, %c0_2] : memref<64x288xbf16, #tpu.memory_space<vmem>>, vector<64x288xbf16>
    %cst = arith.constant dense<0.000000e+00> : vector<64x32xf32>
    %2 = tpu.matmul %1, %0, %cst {dimension_numbers = #tpu.dot_dimension_numbers<[1], [0], [0], [1], [0, 0, 1, 1], [], []>} : vector<64x288xbf16>, vector<288x32xbf16>, vector<64x32xf32> -> vector<64x32xf32>
    %c0_3 = arith.constant 0 : index
    %c0_4 = arith.constant 0 : index
    %3 = vector.load %arg2[%c0_3, %c0_4] : memref<64x288xbf16, #tpu.memory_space<vmem>>, vector<64x288xbf16>
    %cst_5 = arith.constant dense<0.000000e+00> : vector<64x32xf32>
    %4 = tpu.matmul %3, %0, %cst_5 {dimension_numbers = #tpu.dot_dimension_numbers<[1], [0], [0], [1], [0, 0, 1, 1], [], []>} : vector<64x288xbf16>, vector<288x32xbf16>, vector<64x32xf32> -> vector<64x32xf32>
    %5 = arith.maximumf %2, %4 : vector<64x32xf32>
    %c0_6 = arith.constant 0 : index
    %c0_7 = arith.constant 0 : index
    %6 = vector.load %arg3[%c0_6, %c0_7] : memref<64x288xbf16, #tpu.memory_space<vmem>>, vector<64x288xbf16>
    %cst_8 = arith.constant dense<0.000000e+00> : vector<64x32xf32>
    %7 = tpu.matmul %6, %0, %cst_8 {dimension_numbers = #tpu.dot_dimension_numbers<[1], [0], [0], [1], [0, 0, 1, 1], [], []>} : vector<64x288xbf16>, vector<288x32xbf16>, vector<64x32xf32> -> vector<64x32xf32>
    %c0_9 = arith.constant 0 : index
    %c0_10 = arith.constant 0 : index
    %8 = vector.load %arg4[%c0_9, %c0_10] : memref<64x288xbf16, #tpu.memory_space<vmem>>, vector<64x288xbf16>
    %cst_11 = arith.constant dense<0.000000e+00> : vector<64x32xf32>
    %9 = tpu.matmul %8, %0, %cst_11 {dimension_numbers = #tpu.dot_dimension_numbers<[1], [0], [0], [1], [0, 0, 1, 1], [], []>} : vector<64x288xbf16>, vector<288x32xbf16>, vector<64x32xf32> -> vector<64x32xf32>
    %10 = arith.maximumf %7, %9 : vector<64x32xf32>
    %11 = arith.maximumf %5, %10 : vector<64x32xf32>
    %c0_12 = arith.constant 0 : index
    %c0_13 = arith.constant 0 : index
    %12 = vector.load %arg6[%c0_12, %c0_13] : memref<1x32xf32, #tpu.memory_space<vmem>>, vector<1x32xf32>
    %13 = vector.broadcast %12 : vector<1x32xf32> to vector<64x32xf32>
    %14 = arith.addf %11, %13 : vector<64x32xf32>
    %cst_14 = arith.constant 0.000000e+00 : f32
    %15 = vector.broadcast %cst_14 : f32 to vector<64x32xf32>
    %16 = arith.maximumf %14, %15 : vector<64x32xf32>
    %17 = arith.truncf %16 : vector<64x32xf32> to vector<64x32xbf16>
    %c0_15 = arith.constant 0 : index
    %c0_16 = arith.constant 0 : index
    %18 = vector.load %arg7[%c0_15, %c0_16] : memref<64x32xbf16, #tpu.memory_space<vmem>>, vector<64x32xbf16>
    tpu.vector_store %arg7[%c0_15, %c0_16], %17 {strides = array<i32>} : memref<64x32xbf16, #tpu.memory_space<vmem>>, vector<64x32xbf16>,
    return
  }
  func.func @transform_0(%arg0: i32) -> (i32, i32) {
    %c0_i32 = arith.constant 0 : i32
    %c0_i32_0 = arith.constant 0 : i32
    return %arg0, %c0_i32 : i32, i32
  }
  func.func @transform_1(%arg0: i32) -> (i32, i32) {
    %c0_i32 = arith.constant 0 : i32
    %c0_i32_0 = arith.constant 0 : i32
    return %arg0, %c0_i32 : i32, i32
  }
  func.func @transform_2(%arg0: i32) -> (i32, i32) {
    %c0_i32 = arith.constant 0 : i32
    %c0_i32_0 = arith.constant 0 : i32
    return %arg0, %c0_i32 : i32, i32
  }
  func.func @transform_3(%arg0: i32) -> (i32, i32) {
    %c0_i32 = arith.constant 0 : i32
    %c0_i32_0 = arith.constant 0 : i32
    return %arg0, %c0_i32 : i32, i32
  }
  func.func @transform_4(%arg0: i32) -> (i32, i32) {
    %c0_i32 = arith.constant 0 : i32
    %c0_i32_0 = arith.constant 0 : i32
    %c0_i32_1 = arith.constant 0 : i32
    return %c0_i32, %c0_i32_0 : i32, i32
  }
  func.func @transform_5(%arg0: i32) -> (i32, i32) {
    %c0_i32 = arith.constant 0 : i32
    %c0_i32_0 = arith.constant 0 : i32
    %c0_i32_1 = arith.constant 0 : i32
    return %c0_i32, %c0_i32_0 : i32, i32
  }
  func.func @transform_6(%arg0: i32) -> (i32, i32) {
    %c0_i32 = arith.constant 0 : i32
    %c0_i32_0 = arith.constant 0 : i32
    return %arg0, %c0_i32 : i32, i32
  }
}

module attributes {stable_mosaic.version = 11 : i64} {
  func.func @_fc_fused_kernel(%arg0: i32, %arg1: memref<16x800xbf16, #tpu.memory_space<vmem>>, %arg2: memref<800x128xbf16, #tpu.memory_space<vmem>>, %arg3: memref<1x128xf32, #tpu.memory_space<vmem>>, %arg4: memref<128x128xbf16, #tpu.memory_space<vmem>>, %arg5: memref<1x128xf32, #tpu.memory_space<vmem>>, %arg6: memref<16x128xf32, #tpu.memory_space<vmem>>) attributes {dimension_semantics = [#tpu.dimension_semantics<parallel>], iteration_bounds = array<i64: 1>, scalar_prefetch = 0 : i64, scratch_operands = 0 : i64, tpu.core_type = #tpu.core_type<tc>, window_params = [{transform_indices = @transform_0, window_bounds = array<i64: 16, 800>}, {pipeline_mode = #tpu.pipeline_mode<synchronous>, transform_indices = @transform_1, window_bounds = array<i64: 800, 128>}, {pipeline_mode = #tpu.pipeline_mode<synchronous>, transform_indices = @transform_2, window_bounds = array<i64: 1, 128>}, {pipeline_mode = #tpu.pipeline_mode<synchronous>, transform_indices = @transform_3, window_bounds = array<i64: 128, 128>}, {pipeline_mode = #tpu.pipeline_mode<synchronous>, transform_indices = @transform_4, window_bounds = array<i64: 1, 128>}, {transform_indices = @transform_5, window_bounds = array<i64: 16, 128>}]} {
    %c0 = arith.constant 0 : index
    %c0_0 = arith.constant 0 : index
    %0 = vector.load %arg1[%c0, %c0_0] : memref<16x800xbf16, #tpu.memory_space<vmem>>, vector<16x800xbf16>
    %c0_1 = arith.constant 0 : index
    %c0_2 = arith.constant 0 : index
    %1 = vector.load %arg2[%c0_1, %c0_2] : memref<800x128xbf16, #tpu.memory_space<vmem>>, vector<800x128xbf16>
    %cst = arith.constant dense<0.000000e+00> : vector<16x128xf32>
    %2 = tpu.matmul %0, %1, %cst {dimension_numbers = #tpu.dot_dimension_numbers<[1], [0], [0], [1], [0, 0, 1, 1], [], []>} : vector<16x800xbf16>, vector<800x128xbf16>, vector<16x128xf32> -> vector<16x128xf32>
    %c0_3 = arith.constant 0 : index
    %c0_4 = arith.constant 0 : index
    %3 = vector.load %arg3[%c0_3, %c0_4] : memref<1x128xf32, #tpu.memory_space<vmem>>, vector<1x128xf32>
    %4 = vector.broadcast %3 : vector<1x128xf32> to vector<16x128xf32>
    %5 = arith.addf %2, %4 : vector<16x128xf32>
    %cst_5 = arith.constant 0.000000e+00 : f32
    %6 = vector.broadcast %cst_5 : f32 to vector<16x128xf32>
    %7 = arith.maximumf %5, %6 : vector<16x128xf32>
    %8 = arith.truncf %7 : vector<16x128xf32> to vector<16x128xbf16>
    %c0_6 = arith.constant 0 : index
    %c0_7 = arith.constant 0 : index
    %9 = vector.load %arg4[%c0_6, %c0_7] : memref<128x128xbf16, #tpu.memory_space<vmem>>, vector<128x128xbf16>
    %cst_8 = arith.constant dense<0.000000e+00> : vector<16x128xf32>
    %10 = tpu.matmul %8, %9, %cst_8 {dimension_numbers = #tpu.dot_dimension_numbers<[1], [0], [0], [1], [0, 0, 1, 1], [], []>} : vector<16x128xbf16>, vector<128x128xbf16>, vector<16x128xf32> -> vector<16x128xf32>
    %c0_9 = arith.constant 0 : index
    %c0_10 = arith.constant 0 : index
    %11 = vector.load %arg5[%c0_9, %c0_10] : memref<1x128xf32, #tpu.memory_space<vmem>>, vector<1x128xf32>
    %12 = vector.broadcast %11 : vector<1x128xf32> to vector<16x128xf32>
    %13 = arith.addf %10, %12 : vector<16x128xf32>
    %c0_11 = arith.constant 0 : index
    %c0_12 = arith.constant 0 : index
    %14 = vector.load %arg6[%c0_11, %c0_12] : memref<16x128xf32, #tpu.memory_space<vmem>>, vector<16x128xf32>
    tpu.vector_store %arg6[%c0_11, %c0_12], %13 {strides = array<i32>} : memref<16x128xf32, #tpu.memory_space<vmem>>, vector<16x128xf32>,
    return
  }
  func.func @transform_0(%arg0: i32) -> (i32, i32) {
    %c0_i32 = arith.constant 0 : i32
    %c0_i32_0 = arith.constant 0 : i32
    return %arg0, %c0_i32 : i32, i32
  }
  func.func @transform_1(%arg0: i32) -> (i32, i32) {
    %c0_i32 = arith.constant 0 : i32
    %c0_i32_0 = arith.constant 0 : i32
    %c0_i32_1 = arith.constant 0 : i32
    return %c0_i32, %c0_i32_0 : i32, i32
  }
  func.func @transform_2(%arg0: i32) -> (i32, i32) {
    %c0_i32 = arith.constant 0 : i32
    %c0_i32_0 = arith.constant 0 : i32
    %c0_i32_1 = arith.constant 0 : i32
    return %c0_i32, %c0_i32_0 : i32, i32
  }
  func.func @transform_3(%arg0: i32) -> (i32, i32) {
    %c0_i32 = arith.constant 0 : i32
    %c0_i32_0 = arith.constant 0 : i32
    %c0_i32_1 = arith.constant 0 : i32
    return %c0_i32, %c0_i32_0 : i32, i32
  }
  func.func @transform_4(%arg0: i32) -> (i32, i32) {
    %c0_i32 = arith.constant 0 : i32
    %c0_i32_0 = arith.constant 0 : i32
    %c0_i32_1 = arith.constant 0 : i32
    return %c0_i32, %c0_i32_0 : i32, i32
  }
  func.func @transform_5(%arg0: i32) -> (i32, i32) {
    %c0_i32 = arith.constant 0 : i32
    %c0_i32_0 = arith.constant 0 : i32
    return %arg0, %c0_i32 : i32, i32
  }
}

module attributes {stable_mosaic.version = 11 : i64} {
  func.func @_conv_relu_kernel(%arg0: i32, %arg1: memref<32x288xbf16, #tpu.memory_space<vmem>>, %arg2: memref<288x32xbf16, #tpu.memory_space<vmem>>, %arg3: memref<1x32xf32, #tpu.memory_space<vmem>>, %arg4: memref<32x32xbf16, #tpu.memory_space<vmem>>) attributes {dimension_semantics = [#tpu.dimension_semantics<parallel>], iteration_bounds = array<i64: 2>, scalar_prefetch = 0 : i64, scratch_operands = 0 : i64, tpu.core_type = #tpu.core_type<tc>, window_params = [{transform_indices = @transform_0, window_bounds = array<i64: 32, 288>}, {pipeline_mode = #tpu.pipeline_mode<synchronous>, transform_indices = @transform_1, window_bounds = array<i64: 288, 32>}, {pipeline_mode = #tpu.pipeline_mode<synchronous>, transform_indices = @transform_2, window_bounds = array<i64: 1, 32>}, {transform_indices = @transform_3, window_bounds = array<i64: 32, 32>}]} {
    %c0 = arith.constant 0 : index
    %c0_0 = arith.constant 0 : index
    %0 = vector.load %arg1[%c0, %c0_0] : memref<32x288xbf16, #tpu.memory_space<vmem>>, vector<32x288xbf16>
    %c0_1 = arith.constant 0 : index
    %c0_2 = arith.constant 0 : index
    %1 = vector.load %arg2[%c0_1, %c0_2] : memref<288x32xbf16, #tpu.memory_space<vmem>>, vector<288x32xbf16>
    %cst = arith.constant dense<0.000000e+00> : vector<32x32xf32>
    %2 = tpu.matmul %0, %1, %cst {dimension_numbers = #tpu.dot_dimension_numbers<[1], [0], [0], [1], [0, 0, 1, 1], [], []>} : vector<32x288xbf16>, vector<288x32xbf16>, vector<32x32xf32> -> vector<32x32xf32>
    %c0_3 = arith.constant 0 : index
    %c0_4 = arith.constant 0 : index
    %3 = vector.load %arg3[%c0_3, %c0_4] : memref<1x32xf32, #tpu.memory_space<vmem>>, vector<1x32xf32>
    %4 = vector.broadcast %3 : vector<1x32xf32> to vector<32x32xf32>
    %5 = arith.addf %2, %4 : vector<32x32xf32>
    %cst_5 = arith.constant 0.000000e+00 : f32
    %6 = vector.broadcast %cst_5 : f32 to vector<32x32xf32>
    %7 = arith.maximumf %5, %6 : vector<32x32xf32>
    %8 = arith.truncf %7 : vector<32x32xf32> to vector<32x32xbf16>
    %c0_6 = arith.constant 0 : index
    %c0_7 = arith.constant 0 : index
    %9 = vector.load %arg4[%c0_6, %c0_7] : memref<32x32xbf16, #tpu.memory_space<vmem>>, vector<32x32xbf16>
    tpu.vector_store %arg4[%c0_6, %c0_7], %8 {strides = array<i32>} : memref<32x32xbf16, #tpu.memory_space<vmem>>, vector<32x32xbf16>,
    return
  }
  func.func @transform_0(%arg0: i32) -> (i32, i32) {
    %c0_i32 = arith.constant 0 : i32
    %c0_i32_0 = arith.constant 0 : i32
    return %arg0, %c0_i32 : i32, i32
  }
  func.func @transform_1(%arg0: i32) -> (i32, i32) {
    %c0_i32 = arith.constant 0 : i32
    %c0_i32_0 = arith.constant 0 : i32
    %c0_i32_1 = arith.constant 0 : i32
    return %c0_i32, %c0_i32_0 : i32, i32
  }
  func.func @transform_2(%arg0: i32) -> (i32, i32) {
    %c0_i32 = arith.constant 0 : i32
    %c0_i32_0 = arith.constant 0 : i32
    %c0_i32_1 = arith.constant 0 : i32
    return %c0_i32, %c0_i32_0 : i32, i32
  }
  func.func @transform_3(%arg0: i32) -> (i32, i32) {
    %c0_i32 = arith.constant 0 : i32
    %c0_i32_0 = arith.constant 0 : i32
    return %arg0, %c0_i32 : i32, i32
  }
}

</mosaic_0001>

<llo_original>
// kernel: net_forward.4
$region0: #{net_forward.4}
  #allocation0 [shape = 'u32[]', space=smem, size = 0x4, offset = 0x4, fixed_abs, tag = 'smem constant byte address 0x4 - core index']
  #allocation1 [shape = 'u32[144,128]{1,0:T(1,128)}', space=vmem, size = 0x12000, scoped, tag = 'internal scratch']
  %s0 = inlined_call_operand.vmem [shape: bf16[512,32], index: 0, kind: input, shape index: {}]
  %s1 = inlined_call_operand.vmem [shape: bf16[512,32], index: 1, kind: input, shape index: {}]
  %s2 = inlined_call_operand.vmem [shape: bf16[512,32], index: 2, kind: input, shape index: {}]
  %s3 = inlined_call_operand.vmem [shape: bf16[512,32], index: 3, kind: input, shape index: {}]
  %s4 = inlined_call_operand.vmem [shape: bf16[32,32], index: 4, kind: input, shape index: {}]
  %s5 = inlined_call_operand.vmem [shape: f32[1,32], index: 5, kind: input, shape index: {}]
  %s6 = inlined_call_operand.vmem [shape: bf16[512,32], index: 6, kind: output, shape index: {}]
  %s7 = sld [smem:[#allocation0]]
  $region57: #{net_forward.4} parent=0
    _
  %s9 = ssub.s32 1, %s7
  %s10 = scalar_select 0, %s9, %s7
  loop: start=0, step=1, limit=4
  $region2: #{net_forward.4} parent=0 // loop_pre_header
    _
  $region3: #{net_forward.4} parent=0 // loop_header
    %s12 = sphi 0, %s16
    %p13 = scmp.ge.s32.totalorder %s12, 4
    %s22 = sphi 0, %s24
    %s25 = sphi 0, %s22
    %s26 = sphi 0, %s25
    %s42 = sphi 0, %s26
    %s48 = sphi 0, %s50
    %s51 = sphi 0, %s48
    %s52 = sphi 0, %s51
    %s68 = sphi 0, %s52
    %s74 = sphi 0, %s76
    %s77 = sphi 0, %s74
    %s78 = sphi 0, %s77
    %s94 = sphi 0, %s78
    %s100 = sphi 0, %s102
    %s103 = sphi 0, %s100
    %s104 = sphi 0, %s103
    %s120 = sphi 0, %s104
    %s124 = sphi 0, %s124
    %s126 = sphi 0, %s124
    %s127 = sphi 0, %s126
    %s141 = sphi 0, %s127
    %s145 = sphi 0, %s145
    %s147 = sphi 0, %s145
    %s148 = sphi 0, %s147
    %s162 = sphi 0, %s148
    %s168 = sphi 0, %s170
    %s171 = sphi 0, %s168
    %s172 = sphi 0, %s171
    %s188 = sphi 0, %s172
  $region4: #{net_forward.4} parent=0 // loop_header_branch
    %15 = sbr.rel (%p13) target = $region8
  $region5: #{net_forward.4} parent=0 // loop_body
    %s17 = ssub.s32 %s12, 1
    %s18 = ssub.s32 %s12, 2
    %s19 = sadd.s32 %s12, 1
    %s20 = ssub.s32 %s12, %s19
    %p21 = scmp.eq.s32.totalorder %s20, 0
    %s23 = sadd.s32 %s22, 1
    %s24 = scalar_select %p21, %s22, %s23
    %p27 = pneg %p21
    %p28 = scmp.eq.s32.totalorder %s12, 1
    %p29 = por %p27, %p28
    %p30 = scmp.ne.s32.totalorder %s22, %s25
    %p31 = scmp.eq.s32.totalorder %s12, 0
    %p32 = por %p30, %p31
    %p33 = scmp.ne.s32.totalorder %s22, %s25
    %p34 = scmp.eq.s32.totalorder %s17, 1
    %p35 = por %p33, %p34
    %p36 = scmp.ne.s32.totalorder %s25, %s26
    %p37 = scmp.eq.s32.totalorder %s17, 0
    %p38 = por %p36, %p37
    %p39 = scmp.ne.s32.totalorder %s25, %s26
    %p40 = scmp.eq.s32.totalorder %s18, 1
    %p41 = por %p39, %p40
    %p43 = scmp.ne.s32.totalorder %s26, %s42
    %p44 = scmp.eq.s32.totalorder %s18, 0
    %p45 = por %p43, %p44
    %s46 = ssub.s32 %s12, %s19
    %p47 = scmp.eq.s32.totalorder %s46, 0
    %s49 = sadd.s32 %s48, 1
    %s50 = scalar_select %p47, %s48, %s49
    %p53 = pneg %p47
    %p54 = scmp.eq.s32.totalorder %s12, 1
    %p55 = por %p53, %p54
    %p56 = scmp.ne.s32.totalorder %s48, %s51
    %p57 = scmp.eq.s32.totalorder %s12, 0
    %p58 = por %p56, %p57
    %p59 = scmp.ne.s32.totalorder %s48, %s51
    %p60 = scmp.eq.s32.totalorder %s17, 1
    %p61 = por %p59, %p60
    %p62 = scmp.ne.s32.totalorder %s51, %s52
    %p63 = scmp.eq.s32.totalorder %s17, 0
    %p64 = por %p62, %p63
    %p65 = scmp.ne.s32.totalorder %s51, %s52
    %p66 = scmp.eq.s32.totalorder %s18, 1
    %p67 = por %p65, %p66
    %p69 = scmp.ne.s32.totalorder %s52, %s68
    %p70 = scmp.eq.s32.totalorder %s18, 0
    %p71 = por %p69, %p70
    %s72 = ssub.s32 %s12, %s19
    %p73 = scmp.eq.s32.totalorder %s72, 0
    %s75 = sadd.s32 %s74, 1
    %s76 = scalar_select %p73, %s74, %s75
    %p79 = pneg %p73
    %p80 = scmp.eq.s32.totalorder %s12, 1
    %p81 = por %p79, %p80
    %p82 = scmp.ne.s32.totalorder %s74, %s77
    %p83 = scmp.eq.s32.totalorder %s12, 0
    %p84 = por %p82, %p83
    %p85 = scmp.ne.s32.totalorder %s74, %s77
    %p86 = scmp.eq.s32.totalorder %s17, 1
    %p87 = por %p85, %p86
    %p88 = scmp.ne.s32.totalorder %s77, %s78
    %p89 = scmp.eq.s32.totalorder %s17, 0
    %p90 = por %p88, %p89
    %p91 = scmp.ne.s32.totalorder %s77, %s78
    %p92 = scmp.eq.s32.totalorder %s18, 1
    %p93 = por %p91, %p92
    %p95 = scmp.ne.s32.totalorder %s78, %s94
    %p96 = scmp.eq.s32.totalorder %s18, 0
    %p97 = por %p95, %p96
    %s98 = ssub.s32 %s12, %s19
    %p99 = scmp.eq.s32.totalorder %s98, 0
    %s101 = sadd.s32 %s100, 1
    %s102 = scalar_select %p99, %s100, %s101
    %p105 = pneg %p99
    %p106 = scmp.eq.s32.totalorder %s12, 1
    %p107 = por %p105, %p106
    %p108 = scmp.ne.s32.totalorder %s100, %s103
    %p109 = scmp.eq.s32.totalorder %s12, 0
    %p110 = por %p108, %p109
    %p111 = scmp.ne.s32.totalorder %s100, %s103
    %p112 = scmp.eq.s32.totalorder %s17, 1
    %p113 = por %p111, %p112
    %p114 = scmp.ne.s32.totalorder %s103, %s104
    %p115 = scmp.eq.s32.totalorder %s17, 0
    %p116 = por %p114, %p115
    %p117 = scmp.ne.s32.totalorder %s103, %s104
    %p118 = scmp.eq.s32.totalorder %s18, 1
    %p119 = por %p117, %p118
    %p121 = scmp.ne.s32.totalorder %s104, %s120
    %p122 = scmp.eq.s32.totalorder %s18, 0
    %p123 = por %p121, %p122
    %s125 = sadd.s32 %s124, 1
    %p128 = scmp.eq.s32.totalorder %s12, 1
    %p129 = scmp.ne.s32.totalorder %s124, %s126
    %p130 = scmp.eq.s32.totalorder %s12, 0
    %p131 = por %p129, %p130
    %p132 = scmp.ne.s32.totalorder %s124, %s126
    %p133 = scmp.eq.s32.totalorder %s17, 1
    %p134 = por %p132, %p133
    %p135 = scmp.ne.s32.totalorder %s126, %s127
    %p136 = scmp.eq.s32.totalorder %s17, 0
    %p137 = por %p135, %p136
    %p138 = scmp.ne.s32.totalorder %s126, %s127
    %p139 = scmp.eq.s32.totalorder %s18, 1
    %p140 = por %p138, %p139
    %p142 = scmp.ne.s32.totalorder %s127, %s141
    %p143 = scmp.eq.s32.totalorder %s18, 0
    %p144 = por %p142, %p143
    %s146 = sadd.s32 %s145, 1
    %p149 = scmp.eq.s32.totalorder %s12, 1
    %p150 = scmp.ne.s32.totalorder %s145, %s147
    %p151 = scmp.eq.s32.totalorder %s12, 0
    %p152 = por %p150, %p151
    %p153 = scmp.ne.s32.totalorder %s145, %s147
    %p154 = scmp.eq.s32.totalorder %s17, 1
    %p155 = por %p153, %p154
    %p156 = scmp.ne.s32.totalorder %s147, %s148
    %p157 = scmp.eq.s32.totalorder %s17, 0
    %p158 = por %p156, %p157
    %p159 = scmp.ne.s32.totalorder %s147, %s148
    %p160 = scmp.eq.s32.totalorder %s18, 1
    %p161 = por %p159, %p160
    %p163 = scmp.ne.s32.totalorder %s148, %s162
    %p164 = scmp.eq.s32.totalorder %s18, 0
    %p165 = por %p163, %p164
    %s166 = ssub.s32 %s12, %s19
    %p167 = scmp.eq.s32.totalorder %s166, 0
    %s169 = sadd.s32 %s168, 1
    %s170 = scalar_select %p167, %s168, %s169
    %p173 = pneg %p167
    %p174 = scmp.eq.s32.totalorder %s12, 1
    %p175 = por %p173, %p174
    %p176 = scmp.ne.s32.totalorder %s168, %s171
    %p177 = scmp.eq.s32.totalorder %s12, 0
    %p178 = por %p176, %p177
    %p179 = scmp.ne.s32.totalorder %s168, %s171
    %p180 = scmp.eq.s32.totalorder %s17, 1
    %p181 = por %p179, %p180
    %p182 = scmp.ne.s32.totalorder %s171, %s172
    %p183 = scmp.eq.s32.totalorder %s17, 0
    %p184 = por %p182, %p183
    %p185 = scmp.ne.s32.totalorder %s171, %s172
    %p186 = scmp.eq.s32.totalorder %s18, 1
    %p187 = por %p185, %p186
    %p189 = scmp.ne.s32.totalorder %s172, %s188
    %p190 = scmp.eq.s32.totalorder %s18, 0
    %p191 = por %p189, %p190
    %p192 = scmp.le.s32.totalorder 1, %s12
    %p193 = scmp.lt.s32.totalorder %s12, 3
    %p194 = pnand %p192, %p193
    %p195 = pneg %p194
    // Predicated region
    $region9: #{net_forward.4} parent=5 // pred_check
      _
    $region10: #{net_forward.4} parent=5 // pred_check_branch
      %197 = sbr.rel (%p194) target = $region12
    $region11: #{net_forward.4} parent=5 // pred_region
      %s198 = ssub.s32 %s12, 1
      // Predicated region
      $region13: #{net_forward.4} parent=11 // pred_check
        %p199 = pneg %p137
      $region14: #{net_forward.4} parent=11 // pred_check_branch
        %201 = sbr.rel (%p199) target = $region16
      $region15: #{net_forward.4} parent=11 // pred_region
        _
      $region16: #{net_forward.4} parent=11 // pred_fallthru
        _
      // Predicated region
      $region17: #{net_forward.4} parent=11 // pred_check
        %p202 = pneg %p158
      $region18: #{net_forward.4} parent=11 // pred_check_branch
        %204 = sbr.rel (%p202) target = $region20
      $region19: #{net_forward.4} parent=11 // pred_region
        _
      $region20: #{net_forward.4} parent=11 // pred_fallthru
        _
    $region12: #{net_forward.4} parent=5 // pred_fallthru
      _
    %p205 = scmp.lt.s32.totalorder %s12, 2
    // Predicated region
    $region21: #{net_forward.4} parent=5 // pred_check
      %p206 = pneg %p205
    $region22: #{net_forward.4} parent=5 // pred_check_branch
      %208 = sbr.rel (%p206) target = $region24
    $region23: #{net_forward.4} parent=5 // pred_region
      // Predicated region
      $region25: #{net_forward.4} parent=23 // pred_check
        %p209 = pneg %p32
      $region26: #{net_forward.4} parent=23 // pred_check_branch
        %211 = sbr.rel (%p209) target = $region28
      $region27: #{net_forward.4} parent=23 // pred_region
        %s212 = smul.u32 32, %s12
        %p213 = scmp.lt.s32.totalorder %s212, 63
        %s214 = scalar_select %p213, %s212, 63
        %s215 = smul.addr %s214, 4
        %s216 = scalar_lea.vmem %s0, %s215
        %s217 = smul.u32 32, %s12
      $region28: #{net_forward.4} parent=23 // pred_fallthru
        _
      // Predicated region
      $region29: #{net_forward.4} parent=23 // pred_check
        %p218 = pneg %p58
      $region30: #{net_forward.4} parent=23 // pred_check_branch
        %220 = sbr.rel (%p218) target = $region32
      $region31: #{net_forward.4} parent=23 // pred_region
        %s221 = smul.u32 32, %s12
        %p222 = scmp.lt.s32.totalorder %s221, 63
        %s223 = scalar_select %p222, %s221, 63
        %s224 = smul.addr %s223, 4
        %s225 = scalar_lea.vmem %s1, %s224
        %s226 = smul.u32 32, %s12
      $region32: #{net_forward.4} parent=23 // pred_fallthru
        _
      // Predicated region
      $region33: #{net_forward.4} parent=23 // pred_check
        %p227 = pneg %p84
      $region34: #{net_forward.4} parent=23 // pred_check_branch
        %229 = sbr.rel (%p227) target = $region36
      $region35: #{net_forward.4} parent=23 // pred_region
        %s230 = smul.u32 32, %s12
        %p231 = scmp.lt.s32.totalorder %s230, 63
        %s232 = scalar_select %p231, %s230, 63
        %s233 = smul.addr %s232, 4
        %s234 = scalar_lea.vmem %s2, %s233
        %s235 = smul.u32 32, %s12
      $region36: #{net_forward.4} parent=23 // pred_fallthru
        _
      // Predicated region
      $region37: #{net_forward.4} parent=23 // pred_check
        %p236 = pneg %p110
      $region38: #{net_forward.4} parent=23 // pred_check_branch
        %238 = sbr.rel (%p236) target = $region40
      $region39: #{net_forward.4} parent=23 // pred_region
        %s239 = smul.u32 32, %s12
        %p240 = scmp.lt.s32.totalorder %s239, 63
        %s241 = scalar_select %p240, %s239, 63
        %s242 = smul.addr %s241, 4
        %s243 = scalar_lea.vmem %s3, %s242
        %s244 = smul.u32 32, %s12
      $region40: #{net_forward.4} parent=23 // pred_fallthru
        _
    $region24: #{net_forward.4} parent=5 // pred_fallthru
      _
    %p245 = scmp.le.s32.totalorder 1, %s12
    %p246 = scmp.lt.s32.totalorder %s12, 3
    %p247 = pnand %p245, %p246
    %p248 = pneg %p247
    // Predicated region
    $region41: #{net_forward.4} parent=5 // pred_check
      _
    $region42: #{net_forward.4} parent=5 // pred_check_branch
      %250 = sbr.rel (%p247) target = $region44
    $region43: #{net_forward.4} parent=5 // pred_region
      %s251 = ssub.s32 %s12, 1
      %s252 = smul.u32 32, %s17
      %p253 = scmp.lt.s32.totalorder %s252, 63
      %s254 = scalar_select %p253, %s252, 63
      %s255 = smul.addr %s254, 4
      %s256 = scalar_lea.vmem %s0, %s255
      %p257 = pneg %p38
      %p258 = pneg %p35
      %s259 = smul.u32 32, %s17
      %p260 = scmp.lt.s32.totalorder %s259, 63
      %s261 = scalar_select %p260, %s259, 63
      %s262 = smul.addr %s261, 4
      %s263 = scalar_lea.vmem %s1, %s262
      %p264 = pneg %p64
      %p265 = pneg %p61
      %s266 = smul.u32 32, %s17
      %p267 = scmp.lt.s32.totalorder %s266, 63
      %s268 = scalar_select %p267, %s266, 63
      %s269 = smul.addr %s268, 4
      %s270 = scalar_lea.vmem %s2, %s269
      %p271 = pneg %p90
      %p272 = pneg %p87
      %s273 = smul.u32 32, %s17
      %p274 = scmp.lt.s32.totalorder %s273, 63
      %s275 = scalar_select %p274, %s273, 63
      %s276 = smul.addr %s275, 4
      %s277 = scalar_lea.vmem %s3, %s276
      %p278 = pneg %p116
      %p279 = pneg %p113
      %p280 = pneg %p137
      %p281 = pneg %p134
      %p282 = pneg %p158
      %p283 = pneg %p155
      %p284 = pneg %p184
      %p285 = pneg %p181
      %s286 = smul.u32 32, %s17
      %p287 = scmp.lt.s32.totalorder %s286, 63
      %s288 = scalar_select %p287, %s286, 63
      %s289 = smul.addr %s288, 4
      %s290 = scalar_lea.vmem %s6, %s289
      %s291 = smul.u32 32, %s17
      %p292 = scmp.lt.s32.totalorder %s291, 63
      %s293 = scalar_select %p292, %s291, 63
      %s294 = smul.addr %s293, 4
      %s295 = scalar_lea.vmem %s0, %s294
      %s296 = smul.u32 32, %s17
      %s297 = smul.u32 32, %s17
      %p298 = scmp.lt.s32.totalorder %s297, 63
      %s299 = scalar_select %p298, %s297, 63
      %s300 = smul.addr %s299, 4
      %s301 = scalar_lea.vmem %s1, %s300
      %s302 = smul.u32 32, %s17
      %s303 = smul.u32 32, %s17
      %p304 = scmp.lt.s32.totalorder %s303, 63
      %s305 = scalar_select %p304, %s303, 63
      %s306 = smul.addr %s305, 4
      %s307 = scalar_lea.vmem %s2, %s306
      %s308 = smul.u32 32, %s17
      %s309 = smul.u32 32, %s17
      %p310 = scmp.lt.s32.totalorder %s309, 63
      %s311 = scalar_select %p310, %s309, 63
      %s312 = smul.addr %s311, 4
      %s313 = scalar_lea.vmem %s3, %s312
      %s314 = smul.u32 32, %s17
      %s315 = smul.u32 32, %s17
      %p316 = scmp.lt.s32.totalorder %s315, 63
      %s317 = scalar_select %p316, %s315, 63
      %s318 = smul.addr %s317, 4
      %s319 = scalar_lea.vmem %s6, %s318
      %s320 = smul.u32 32, %s17
      %v322 = vld [vmem:[%s4] sm:$0xf]
      %v323 = vld [vmem:[%s4 + $0x4] sm:$0xf]
      %v324 = vld [vmem:[%s4 + $0x8] sm:$0xf]
      %v325 = vld [vmem:[%s4 + $0xc] sm:$0xf]
      %v326 = vld [vmem:[%s295] sm:$0xf]
      %v327 = vld [vmem:[%s295 + $0x4] sm:$0xf]
      %v328 = vld [vmem:[%s295 + $0x8] sm:$0xf]
      %v329 = vld [vmem:[%s295 + $0xc] sm:$0xf]
      %v330 = vld [vmem:[%s295 + $0x10] sm:$0xf]
      %v331 = vld [vmem:[%s295 + $0x14] sm:$0xf]
      %v332 = vld [vmem:[%s295 + $0x18] sm:$0xf]
      %v333 = vld [vmem:[%s295 + $0x1c] sm:$0xf]
      %v334 = vld [vmem:[%s295 + $0x20] sm:$0xf]
      %v335 = vld [vmem:[%s295 + $0x24] sm:$0xf]
      %v336 = vld [vmem:[%s295 + $0x28] sm:$0xf]
      %v337 = vld [vmem:[%s295 + $0x2c] sm:$0xf]
      %v338 = vld [vmem:[%s295 + $0x30] sm:$0xf]
      %v339 = vld [vmem:[%s295 + $0x34] sm:$0xf]
      %v340 = vld [vmem:[%s295 + $0x38] sm:$0xf]
      %v341 = vld [vmem:[%s295 + $0x3c] sm:$0xf]
      %v342 = vld [vmem:[%s295 + $0x40] sm:$0xf]
      %v343 = vld [vmem:[%s295 + $0x44] sm:$0xf]
      %v344 = vld [vmem:[%s295 + $0x48] sm:$0xf]
      %v345 = vld [vmem:[%s295 + $0x4c] sm:$0xf]
      %v346 = vld [vmem:[%s295 + $0x50] sm:$0xf]
      %v347 = vld [vmem:[%s295 + $0x54] sm:$0xf]
      %v348 = vld [vmem:[%s295 + $0x58] sm:$0xf]
      %v349 = vld [vmem:[%s295 + $0x5c] sm:$0xf]
      %v350 = vld [vmem:[%s295 + $0x60] sm:$0xf]
      %v351 = vld [vmem:[%s295 + $0x64] sm:$0xf]
      %v352 = vld [vmem:[%s295 + $0x68] sm:$0xf]
      %v353 = vld [vmem:[%s295 + $0x6c] sm:$0xf]
      %v354 = vld [vmem:[%s295 + $0x70] sm:$0xf]
      %v355 = vld [vmem:[%s295 + $0x74] sm:$0xf]
      %v356 = vld [vmem:[%s295 + $0x78] sm:$0xf]
      %v357 = vld [vmem:[%s295 + $0x7c] sm:$0xf]
      %v390 = vunpack.c.l.b16 %v326
      %v391 = vunpack.c.l.b16 %v327
      %v392 = vunpack.c.l.b16 %v328
      %v393 = vunpack.c.l.b16 %v329
      %v394 = vunpack.c.l.b16 %v330
      %v395 = vunpack.c.l.b16 %v331
      %v396 = vunpack.c.l.b16 %v332
      %v397 = vunpack.c.l.b16 %v333
      %v398 = vunpack.c.l.b16 %v334
      %v399 = vunpack.c.l.b16 %v335
      %v400 = vunpack.c.l.b16 %v336
      %v401 = vunpack.c.l.b16 %v337
      %v402 = vunpack.c.l.b16 %v338
      %v403 = vunpack.c.l.b16 %v339
      %v404 = vunpack.c.l.b16 %v340
      %v405 = vunpack.c.l.b16 %v341
      %v406 = vunpack.c.l.b16 %v342
      %v407 = vunpack.c.l.b16 %v343
      %v408 = vunpack.c.l.b16 %v344
      %v409 = vunpack.c.l.b16 %v345
      %v410 = vunpack.c.l.b16 %v346
      %v411 = vunpack.c.l.b16 %v347
      %v412 = vunpack.c.l.b16 %v348
      %v413 = vunpack.c.l.b16 %v349
      %v414 = vunpack.c.l.b16 %v350
      %v415 = vunpack.c.l.b16 %v351
      %v416 = vunpack.c.l.b16 %v352
      %v417 = vunpack.c.l.b16 %v353
      %v418 = vunpack.c.l.b16 %v354
      %v419 = vunpack.c.l.b16 %v355
      %v420 = vunpack.c.l.b16 %v356
      %v421 = vunpack.c.l.b16 %v357
      %v422 = vpack.c.b16 %v391, %v390
      %v423 = vpack.c.b16 %v393, %v392
      %v424 = vpack.c.b16 %v395, %v394
      %v425 = vpack.c.b16 %v397, %v396
      %v426 = vpack.c.b16 %v399, %v398
      %v427 = vpack.c.b16 %v401, %v400
      %v428 = vpack.c.b16 %v403, %v402
      %v429 = vpack.c.b16 %v405, %v404
      %v430 = vpack.c.b16 %v407, %v406
      %v431 = vpack.c.b16 %v409, %v408
      %v432 = vpack.c.b16 %v411, %v410
      %v433 = vpack.c.b16 %v413, %v412
      %v434 = vpack.c.b16 %v415, %v414
      %v435 = vpack.c.b16 %v417, %v416
      %v436 = vpack.c.b16 %v419, %v418
      %v437 = vpack.c.b16 %v421, %v420
      %v442 = vunpack.c.l.b16 %v322
      %v443 = vunpack.c.l.b16 %v323
      %v444 = vunpack.c.l.b16 %v324
      %v445 = vunpack.c.l.b16 %v325
      %v446 = vpack.c.b16 %v443, %v442
      %v447 = vpack.c.b16 %v445, %v444
      %vm450 = vcmask 261120
      %v452 = vsel %vm450, %v422, 0
      %v455 = vsel %vm450, %v423, 0
      %v458 = vsel %vm450, %v424, 0
      %v461 = vsel %vm450, %v425, 0
      %v464 = vsel %vm450, %v426, 0
      %v467 = vsel %vm450, %v427, 0
      %v470 = vsel %vm450, %v428, 0
      %v473 = vsel %vm450, %v429, 0
      %v476 = vsel %vm450, %v430, 0
      %v479 = vsel %vm450, %v431, 0
      %v482 = vsel %vm450, %v432, 0
      %v485 = vsel %vm450, %v433, 0
      %v488 = vsel %vm450, %v434, 0
      %v491 = vsel %vm450, %v435, 0
      %v494 = vsel %vm450, %v436, 0
      %v497 = vsel %vm450, %v437, 0
      %499 = vmatprep.subr.bf16.mxu0 0
      %500 = vmatpush1.bf16.msra.mxu0 %v446
      %501 = vmatprep.subr.bf16.mxu0 0
      %502 = vmatpush1.bf16.msra.mxu0 %v447
      %503 = vmatprep.subr.bf16.mxu0 0
      %504 = vmatpush1.bf16.msra.mxu0 0
      %505 = vmatprep.subr.bf16.mxu0 0
      %506 = vmatpush1.bf16.msra.mxu0 0
      %507 = vmatprep.subr.bf16.mxu0 0
      %508 = vmatpush1.bf16.msra.mxu0 0
      %509 = vmatprep.subr.bf16.mxu0 0
      %510 = vmatpush1.bf16.msra.mxu0 0
      %511 = vmatprep.subr.bf16.mxu0 0
      %512 = vmatpush1.bf16.msra.mxu0 0
      %513 = vmatprep.subr.bf16.mxu0 0
      %514 = vmatpush1.bf16.msra.mxu0 0
      %515 = vmatprep.subr.bf16.mxu0 0
      %516 = vmatpush1.bf16.msra.mxu0 0
      %517 = vmatprep.subr.bf16.mxu0 0
      %518 = vmatpush1.bf16.msra.mxu0 0
      %519 = vmatprep.subr.bf16.mxu0 0
      %520 = vmatpush1.bf16.msra.mxu0 0
      %521 = vmatprep.subr.bf16.mxu0 0
      %522 = vmatpush1.bf16.msra.mxu0 0
      %523 = vmatprep.subr.bf16.mxu0 0
      %524 = vmatpush1.bf16.msra.mxu0 0
      %525 = vmatprep.subr.bf16.mxu0 0
      %526 = vmatpush1.bf16.msra.mxu0 0
      %527 = vmatprep.subr.bf16.mxu0 0
      %528 = vmatpush1.bf16.msra.mxu0 0
      %529 = vmatprep.subr.bf16.mxu0 0
      %530 = vmatpush1.bf16.msra.mxu0 0
      %531 = vmatprep.mubr.bf16.mxu0 0
      %532 = vmatmul.mubr.bf16.gmra.mrb[0].mxu0 %v452
      %v533 = vpop.f32.mrb[0].mxu0
      %v534 = vadd.f32 0.0, %v533
      %v535 = vpop.f32.mrb[0].mxu0
      %v536 = vpop.f32.mrb[0].mxu0
      %v537 = vadd.f32 0.0, %v536
      %v538 = vpop.f32.mrb[0].mxu0
      %539 = vmatprep.mubr.bf16.mxu0 0
      %540 = vmatmul.mubr.bf16.gmra.mrb[0].mxu0 %v455
      %v541 = vpop.f32.mrb[0].mxu0
      %v542 = vadd.f32 0.0, %v541
      %v543 = vpop.f32.mrb[0].mxu0
      %v544 = vpop.f32.mrb[0].mxu0
      %v545 = vadd.f32 0.0, %v544
      %v546 = vpop.f32.mrb[0].mxu0
      %547 = vmatprep.mubr.bf16.mxu0 0
      %548 = vmatmul.mubr.bf16.gmra.mrb[0].mxu0 %v458
      %v549 = vpop.f32.mrb[0].mxu0
      %v550 = vadd.f32 0.0, %v549
      %v551 = vpop.f32.mrb[0].mxu0
      %v552 = vpop.f32.mrb[0].mxu0
      %v553 = vadd.f32 0.0, %v552
      %v554 = vpop.f32.mrb[0].mxu0
      %555 = vmatprep.mubr.bf16.mxu0 0
      %556 = vmatmul.mubr.bf16.gmra.mrb[0].mxu0 %v461
      %v557 = vpop.f32.mrb[0].mxu0
      %v558 = vadd.f32 0.0, %v557
      %v559 = vpop.f32.mrb[0].mxu0
      %v560 = vpop.f32.mrb[0].mxu0
      %v561 = vadd.f32 0.0, %v560
      %v562 = vpop.f32.mrb[0].mxu0
      %563 = vmatprep.mubr.bf16.mxu0 0
      %564 = vmatmul.mubr.bf16.gmra.mrb[0].mxu0 %v464
      %v565 = vpop.f32.mrb[0].mxu0
      %v566 = vadd.f32 0.0, %v565
      %v567 = vpop.f32.mrb[0].mxu0
      %v568 = vpop.f32.mrb[0].mxu0
      %v569 = vadd.f32 0.0, %v568
      %v570 = vpop.f32.mrb[0].mxu0
      %571 = vmatprep.mubr.bf16.mxu0 0
      %572 = vmatmul.mubr.bf16.gmra.mrb[0].mxu0 %v467
      %v573 = vpop.f32.mrb[0].mxu0
      %v574 = vadd.f32 0.0, %v573
      %v575 = vpop.f32.mrb[0].mxu0
      %v576 = vpop.f32.mrb[0].mxu0
      %v577 = vadd.f32 0.0, %v576
      %v578 = vpop.f32.mrb[0].mxu0
      %579 = vmatprep.mubr.bf16.mxu0 0
      %580 = vmatmul.mubr.bf16.gmra.mrb[0].mxu0 %v470
      %v581 = vpop.f32.mrb[0].mxu0
      %v582 = vadd.f32 0.0, %v581
      %v583 = vpop.f32.mrb[0].mxu0
      %v584 = vpop.f32.mrb[0].mxu0
      %v585 = vadd.f32 0.0, %v584
      %v586 = vpop.f32.mrb[0].mxu0
      %587 = vmatprep.mubr.bf16.mxu0 0
      %588 = vmatmul.mubr.bf16.gmra.mrb[0].mxu0 %v473
      %v589 = vpop.f32.mrb[0].mxu0
      %v590 = vadd.f32 0.0, %v589
      %v591 = vpop.f32.mrb[0].mxu0
      %v592 = vpop.f32.mrb[0].mxu0
      %v593 = vadd.f32 0.0, %v592
      %v594 = vpop.f32.mrb[0].mxu0
      %595 = vmatprep.mubr.bf16.mxu0 0
      %596 = vmatmul.mubr.bf16.gmra.mrb[0].mxu0 %v476
      %v597 = vpop.f32.mrb[0].mxu0
      %v598 = vadd.f32 0.0, %v597
      %v599 = vpop.f32.mrb[0].mxu0
      %v600 = vpop.f32.mrb[0].mxu0
      %v601 = vadd.f32 0.0, %v600
      %v602 = vpop.f32.mrb[0].mxu0
      %603 = vmatprep.mubr.bf16.mxu0 0
      %604 = vmatmul.mubr.bf16.gmra.mrb[0].mxu0 %v479
      %v605 = vpop.f32.mrb[0].mxu0
      %v606 = vadd.f32 0.0, %v605
      %v607 = vpop.f32.mrb[0].mxu0
      %v608 = vpop.f32.mrb[0].mxu0
      %v609 = vadd.f32 0.0, %v608
      %v610 = vpop.f32.mrb[0].mxu0
      %611 = vmatprep.mubr.bf16.mxu0 0
      %612 = vmatmul.mubr.bf16.gmra.mrb[0].mxu0 %v482
      %v613 = vpop.f32.mrb[0].mxu0
      %v614 = vadd.f32 0.0, %v613
      %v615 = vpop.f32.mrb[0].mxu0
      %v616 = vpop.f32.mrb[0].mxu0
      %v617 = vadd.f32 0.0, %v616
      %v618 = vpop.f32.mrb[0].mxu0
      %619 = vmatprep.mubr.bf16.mxu0 0
      %620 = vmatmul.mubr.bf16.gmra.mrb[0].mxu0 %v485
      %v621 = vpop.f32.mrb[0].mxu0
      %v622 = vadd.f32 0.0, %v621
      %v623 = vpop.f32.mrb[0].mxu0
      %v624 = vpop.f32.mrb[0].mxu0
      %v625 = vadd.f32 0.0, %v624
      %v626 = vpop.f32.mrb[0].mxu0
      %627 = vmatprep.mubr.bf16.mxu0 0
      %628 = vmatmul.mubr.bf16.gmra.mrb[0].mxu0 %v488
      %v629 = vpop.f32.mrb[0].mxu0
      %v630 = vadd.f32 0.0, %v629
      %v631 = vpop.f32.mrb[0].mxu0
      %v632 = vpop.f32.mrb[0].mxu0
      %v633 = vadd.f32 0.0, %v632
      %v634 = vpop.f32.mrb[0].mxu0
      %635 = vmatprep.mubr.bf16.mxu0 0
      %636 = vmatmul.mubr.bf16.gmra.mrb[0].mxu0 %v491
      %v637 = vpop.f32.mrb[0].mxu0
      %v638 = vadd.f32 0.0, %v637
      %v639 = vpop.f32.mrb[0].mxu0
      %v640 = vpop.f32.mrb[0].mxu0
      %v641 = vadd.f32 0.0, %v640
      %v642 = vpop.f32.mrb[0].mxu0
      %643 = vmatprep.mubr.bf16.mxu0 0
      %644 = vmatmul.mubr.bf16.gmra.mrb[0].mxu0 %v494
      %v645 = vpop.f32.mrb[0].mxu0
      %v646 = vadd.f32 0.0, %v645
      %v647 = vpop.f32.mrb[0].mxu0
      %v648 = vpop.f32.mrb[0].mxu0
      %v649 = vadd.f32 0.0, %v648
      %v650 = vpop.f32.mrb[0].mxu0
      %651 = vmatprep.mubr.bf16.mxu0 0
      %652 = vmatmul.mubr.bf16.gmra.mrb[0].mxu0 %v497
      %v653 = vpop.f32.mrb[0].mxu0
      %v654 = vadd.f32 0.0, %v653
      %v655 = vpop.f32.mrb[0].mxu0
      %v656 = vpop.f32.mrb[0].mxu0
      %v657 = vadd.f32 0.0, %v656
      %v658 = vpop.f32.mrb[0].mxu0
      %659 = vdwg.mxu0
      %v660 = vld [vmem:[%s301] sm:$0xf]
      %v661 = vld [vmem:[%s301 + $0x4] sm:$0xf]
      %v662 = vld [vmem:[%s301 + $0x8] sm:$0xf]
      %v663 = vld [vmem:[%s301 + $0xc] sm:$0xf]
      %v664 = vld [vmem:[%s301 + $0x10] sm:$0xf]
      %v665 = vld [vmem:[%s301 + $0x14] sm:$0xf]
      %v666 = vld [vmem:[%s301 + $0x18] sm:$0xf]
      %v667 = vld [vmem:[%s301 + $0x1c] sm:$0xf]
      %v668 = vld [vmem:[%s301 + $0x20] sm:$0xf]
      %v669 = vld [vmem:[%s301 + $0x24] sm:$0xf]
      %v670 = vld [vmem:[%s301 + $0x28] sm:$0xf]
      %v671 = vld [vmem:[%s301 + $0x2c] sm:$0xf]
      %v672 = vld [vmem:[%s301 + $0x30] sm:$0xf]
      %v673 = vld [vmem:[%s301 + $0x34] sm:$0xf]
      %v674 = vld [vmem:[%s301 + $0x38] sm:$0xf]
      %v675 = vld [vmem:[%s301 + $0x3c] sm:$0xf]
      %v676 = vld [vmem:[%s301 + $0x40] sm:$0xf]
      %v677 = vld [vmem:[%s301 + $0x44] sm:$0xf]
      %v678 = vld [vmem:[%s301 + $0x48] sm:$0xf]
      %v679 = vld [vmem:[%s301 + $0x4c] sm:$0xf]
      %v680 = vld [vmem:[%s301 + $0x50] sm:$0xf]
      %v681 = vld [vmem:[%s301 + $0x54] sm:$0xf]
      %v682 = vld [vmem:[%s301 + $0x58] sm:$0xf]
      %v683 = vld [vmem:[%s301 + $0x5c] sm:$0xf]
      %v684 = vld [vmem:[%s301 + $0x60] sm:$0xf]
      %v685 = vld [vmem:[%s301 + $0x64] sm:$0xf]
      %v686 = vld [vmem:[%s301 + $0x68] sm:$0xf]
      %v687 = vld [vmem:[%s301 + $0x6c] sm:$0xf]
      %v688 = vld [vmem:[%s301 + $0x70] sm:$0xf]
      %v689 = vld [vmem:[%s301 + $0x74] sm:$0xf]
      %v690 = vld [vmem:[%s301 + $0x78] sm:$0xf]
      %v691 = vld [vmem:[%s301 + $0x7c] sm:$0xf]
      %v724 = vunpack.c.l.b16 %v660
      %v725 = vunpack.c.l.b16 %v661
      %v726 = vunpack.c.l.b16 %v662
      %v727 = vunpack.c.l.b16 %v663
      %v728 = vunpack.c.l.b16 %v664
      %v729 = vunpack.c.l.b16 %v665
      %v730 = vunpack.c.l.b16 %v666
      %v731 = vunpack.c.l.b16 %v667
      %v732 = vunpack.c.l.b16 %v668
      %v733 = vunpack.c.l.b16 %v669
      %v734 = vunpack.c.l.b16 %v670
      %v735 = vunpack.c.l.b16 %v671
      %v736 = vunpack.c.l.b16 %v672
      %v737 = vunpack.c.l.b16 %v673
      %v738 = vunpack.c.l.b16 %v674
      %v739 = vunpack.c.l.b16 %v675
      %v740 = vunpack.c.l.b16 %v676
      %v741 = vunpack.c.l.b16 %v677
      %v742 = vunpack.c.l.b16 %v678
      %v743 = vunpack.c.l.b16 %v679
      %v744 = vunpack.c.l.b16 %v680
      %v745 = vunpack.c.l.b16 %v681
      %v746 = vunpack.c.l.b16 %v682
      %v747 = vunpack.c.l.b16 %v683
      %v748 = vunpack.c.l.b16 %v684
      %v749 = vunpack.c.l.b16 %v685
      %v750 = vunpack.c.l.b16 %v686
      %v751 = vunpack.c.l.b16 %v687
      %v752 = vunpack.c.l.b16 %v688
      %v753 = vunpack.c.l.b16 %v689
      %v754 = vunpack.c.l.b16 %v690
      %v755 = vunpack.c.l.b16 %v691
      %v756 = vpack.c.b16 %v725, %v724
      %v757 = vpack.c.b16 %v727, %v726
      %v758 = vpack.c.b16 %v729, %v728
      %v759 = vpack.c.b16 %v731, %v730
      %v760 = vpack.c.b16 %v733, %v732
      %v761 = vpack.c.b16 %v735, %v734
      %v762 = vpack.c.b16 %v737, %v736
      %v763 = vpack.c.b16 %v739, %v738
      %v764 = vpack.c.b16 %v741, %v740
      %v765 = vpack.c.b16 %v743, %v742
      %v766 = vpack.c.b16 %v745, %v744
      %v767 = vpack.c.b16 %v747, %v746
      %v768 = vpack.c.b16 %v749, %v748
      %v769 = vpack.c.b16 %v751, %v750
      %v770 = vpack.c.b16 %v753, %v752
      %v771 = vpack.c.b16 %v755, %v754
      %v773 = vsel %vm450, %v756, 0
      %v776 = vsel %vm450, %v757, 0
      %v779 = vsel %vm450, %v758, 0
      %v782 = vsel %vm450, %v759, 0
      %v785 = vsel %vm450, %v760, 0
      %v788 = vsel %vm450, %v761, 0
      %v791 = vsel %vm450, %v762, 0
      %v794 = vsel %vm450, %v763, 0
      %v797 = vsel %vm450, %v764, 0
      %v800 = vsel %vm450, %v765, 0
      %v803 = vsel %vm450, %v766, 0
      %v806 = vsel %vm450, %v767, 0
      %v809 = vsel %vm450, %v768, 0
      %v812 = vsel %vm450, %v769, 0
      %v815 = vsel %vm450, %v770, 0
      %v818 = vsel %vm450, %v771, 0
      %820 = vmatprep.subr.bf16.mxu0 0
      %821 = vmatpush1.bf16.msra.mxu0 %v446
      %822 = vmatprep.subr.bf16.mxu0 0
      %823 = vmatpush1.bf16.msra.mxu0 %v447
      %824 = vmatprep.subr.bf16.mxu0 0
      %825 = vmatpush1.bf16.msra.mxu0 0
      %826 = vmatprep.subr.bf16.mxu0 0
      %827 = vmatpush1.bf16.msra.mxu0 0
      %828 = vmatprep.subr.bf16.mxu0 0
      %829 = vmatpush1.bf16.msra.mxu0 0
      %830 = vmatprep.subr.bf16.mxu0 0
      %831 = vmatpush1.bf16.msra.mxu0 0
      %832 = vmatprep.subr.bf16.mxu0 0
      %833 = vmatpush1.bf16.msra.mxu0 0
      %834 = vmatprep.subr.bf16.mxu0 0
      %835 = vmatpush1.bf16.msra.mxu0 0
      %836 = vmatprep.subr.bf16.mxu0 0
      %837 = vmatpush1.bf16.msra.mxu0 0
      %838 = vmatprep.subr.bf16.mxu0 0
      %839 = vmatpush1.bf16.msra.mxu0 0
      %840 = vmatprep.subr.bf16.mxu0 0
      %841 = vmatpush1.bf16.msra.mxu0 0
      %842 = vmatprep.subr.bf16.mxu0 0
      %843 = vmatpush1.bf16.msra.mxu0 0
      %844 = vmatprep.subr.bf16.mxu0 0
      %845 = vmatpush1.bf16.msra.mxu0 0
      %846 = vmatprep.subr.bf16.mxu0 0
      %847 = vmatpush1.bf16.msra.mxu0 0
      %848 = vmatprep.subr.bf16.mxu0 0
      %849 = vmatpush1.bf16.msra.mxu0 0
      %850 = vmatprep.subr.bf16.mxu0 0
      %851 = vmatpush1.bf16.msra.mxu0 0
      %852 = vmatprep.mubr.bf16.mxu0 0
      %853 = vmatmul.mubr.bf16.gmra.mrb[0].mxu0 %v773
      %v854 = vpop.f32.mrb[0].mxu0
      %v855 = vadd.f32 0.0, %v854
      %v856 = vpop.f32.mrb[0].mxu0
      %v857 = vpop.f32.mrb[0].mxu0
      %v858 = vadd.f32 0.0, %v857
      %v859 = vpop.f32.mrb[0].mxu0
      %860 = vmatprep.mubr.bf16.mxu0 0
      %861 = vmatmul.mubr.bf16.gmra.mrb[0].mxu0 %v776
      %v862 = vpop.f32.mrb[0].mxu0
      %v863 = vadd.f32 0.0, %v862
      %v864 = vpop.f32.mrb[0].mxu0
      %v865 = vpop.f32.mrb[0].mxu0
      %v866 = vadd.f32 0.0, %v865
      %v867 = vpop.f32.mrb[0].mxu0
      %868 = vmatprep.mubr.bf16.mxu0 0
      %869 = vmatmul.mubr.bf16.gmra.mrb[0].mxu0 %v779
      %v870 = vpop.f32.mrb[0].mxu0
      %v871 = vadd.f32 0.0, %v870
      %v872 = vpop.f32.mrb[0].mxu0
      %v873 = vpop.f32.mrb[0].mxu0
      %v874 = vadd.f32 0.0, %v873
      %v875 = vpop.f32.mrb[0].mxu0
      %876 = vmatprep.mubr.bf16.mxu0 0
      %877 = vmatmul.mubr.bf16.gmra.mrb[0].mxu0 %v782
      %v878 = vpop.f32.mrb[0].mxu0
      %v879 = vadd.f32 0.0, %v878
      %v880 = vpop.f32.mrb[0].mxu0
      %v881 = vpop.f32.mrb[0].mxu0
      %v882 = vadd.f32 0.0, %v881
      %v883 = vpop.f32.mrb[0].mxu0
      %884 = vmatprep.mubr.bf16.mxu0 0
      %885 = vmatmul.mubr.bf16.gmra.mrb[0].mxu0 %v785
      %v886 = vpop.f32.mrb[0].mxu0
      %v887 = vadd.f32 0.0, %v886
      %v888 = vpop.f32.mrb[0].mxu0
      %v889 = vpop.f32.mrb[0].mxu0
      %v890 = vadd.f32 0.0, %v889
      %v891 = vpop.f32.mrb[0].mxu0
      %892 = vmatprep.mubr.bf16.mxu0 0
      %893 = vmatmul.mubr.bf16.gmra.mrb[0].mxu0 %v788
      %v894 = vpop.f32.mrb[0].mxu0
      %v895 = vadd.f32 0.0, %v894
      %v896 = vpop.f32.mrb[0].mxu0
      %v897 = vpop.f32.mrb[0].mxu0
      %v898 = vadd.f32 0.0, %v897
      %v899 = vpop.f32.mrb[0].mxu0
      %900 = vmatprep.mubr.bf16.mxu0 0
      %901 = vmatmul.mubr.bf16.gmra.mrb[0].mxu0 %v791
      %v902 = vpop.f32.mrb[0].mxu0
      %v903 = vadd.f32 0.0, %v902
      %v904 = vpop.f32.mrb[0].mxu0
      %v905 = vpop.f32.mrb[0].mxu0
      %v906 = vadd.f32 0.0, %v905
      %v907 = vpop.f32.mrb[0].mxu0
      %908 = vmatprep.mubr.bf16.mxu0 0
      %909 = vmatmul.mubr.bf16.gmra.mrb[0].mxu0 %v794
      %v910 = vpop.f32.mrb[0].mxu0
      %v911 = vadd.f32 0.0, %v910
      %v912 = vpop.f32.mrb[0].mxu0
      %v913 = vpop.f32.mrb[0].mxu0
      %v914 = vadd.f32 0.0, %v913
      %v915 = vpop.f32.mrb[0].mxu0
      %916 = vmatprep.mubr.bf16.mxu0 0
      %917 = vmatmul.mubr.bf16.gmra.mrb[0].mxu0 %v797
      %v918 = vpop.f32.mrb[0].mxu0
      %v919 = vadd.f32 0.0, %v918
      %v920 = vpop.f32.mrb[0].mxu0
      %v921 = vpop.f32.mrb[0].mxu0
      %v922 = vadd.f32 0.0, %v921
      %v923 = vpop.f32.mrb[0].mxu0
      %924 = vmatprep.mubr.bf16.mxu0 0
      %925 = vmatmul.mubr.bf16.gmra.mrb[0].mxu0 %v800
      %v926 = vpop.f32.mrb[0].mxu0
      %v927 = vadd.f32 0.0, %v926
      %v928 = vpop.f32.mrb[0].mxu0
      %v929 = vpop.f32.mrb[0].mxu0
      %v930 = vadd.f32 0.0, %v929
      %v931 = vpop.f32.mrb[0].mxu0
      %932 = vmatprep.mubr.bf16.mxu0 0
      %933 = vmatmul.mubr.bf16.gmra.mrb[0].mxu0 %v803
      %v934 = vpop.f32.mrb[0].mxu0
      %v935 = vadd.f32 0.0, %v934
      %v936 = vpop.f32.mrb[0].mxu0
      %v937 = vpop.f32.mrb[0].mxu0
      %v938 = vadd.f32 0.0, %v937
      %v939 = vpop.f32.mrb[0].mxu0
      %940 = vmatprep.mubr.bf16.mxu0 0
      %941 = vmatmul.mubr.bf16.gmra.mrb[0].mxu0 %v806
      %v942 = vpop.f32.mrb[0].mxu0
      %v943 = vadd.f32 0.0, %v942
      %v944 = vpop.f32.mrb[0].mxu0
      %v945 = vpop.f32.mrb[0].mxu0
      %v946 = vadd.f32 0.0, %v945
      %v947 = vpop.f32.mrb[0].mxu0
      %948 = vmatprep.mubr.bf16.mxu0 0
      %949 = vmatmul.mubr.bf16.gmra.mrb[0].mxu0 %v809
      %v950 = vpop.f32.mrb[0].mxu0
      %v951 = vadd.f32 0.0, %v950
      %v952 = vpop.f32.mrb[0].mxu0
      %v953 = vpop.f32.mrb[0].mxu0
      %v954 = vadd.f32 0.0, %v953
      %v955 = vpop.f32.mrb[0].mxu0
      %956 = vmatprep.mubr.bf16.mxu0 0
      %957 = vmatmul.mubr.bf16.gmra.mrb[0].mxu0 %v812
      %v958 = vpop.f32.mrb[0].mxu0
      %v959 = vadd.f32 0.0, %v958
      %v960 = vpop.f32.mrb[0].mxu0
      %v961 = vpop.f32.mrb[0].mxu0
      %v962 = vadd.f32 0.0, %v961
      %v963 = vpop.f32.mrb[0].mxu0
      %964 = vmatprep.mubr.bf16.mxu0 0
      %965 = vmatmul.mubr.bf16.gmra.mrb[0].mxu0 %v815
      %v966 = vpop.f32.mrb[0].mxu0
      %v967 = vadd.f32 0.0, %v966
      %v968 = vpop.f32.mrb[0].mxu0
      %v969 = vpop.f32.mrb[0].mxu0
      %v970 = vadd.f32 0.0, %v969
      %v971 = vpop.f32.mrb[0].mxu0
      %972 = vmatprep.mubr.bf16.mxu0 0
      %973 = vmatmul.mubr.bf16.gmra.mrb[0].mxu0 %v818
      %v974 = vpop.f32.mrb[0].mxu0
      %v975 = vadd.f32 0.0, %v974
      %v976 = vpop.f32.mrb[0].mxu0
      %v977 = vpop.f32.mrb[0].mxu0
      %v978 = vadd.f32 0.0, %v977
      %v979 = vpop.f32.mrb[0].mxu0
      %980 = vdwg.mxu0
      %v981 = vmax.f32 %v534, %v855
      %v982 = vmax.f32 %v537, %v858
      %v983 = vmax.f32 %v542, %v863
      %v984 = vmax.f32 %v545, %v866
      %v985 = vmax.f32 %v550, %v871
      %v986 = vmax.f32 %v553, %v874
      %v987 = vmax.f32 %v558, %v879
      %v988 = vmax.f32 %v561, %v882
      %v989 = vmax.f32 %v566, %v887
      %v990 = vmax.f32 %v569, %v890
      %v991 = vmax.f32 %v574, %v895
      %v992 = vmax.f32 %v577, %v898
      %v993 = vmax.f32 %v582, %v903
      %v994 = vmax.f32 %v585, %v906
      %v995 = vmax.f32 %v590, %v911
      %v996 = vmax.f32 %v593, %v914
      %v997 = vmax.f32 %v598, %v919
      %v998 = vmax.f32 %v601, %v922
      %v999 = vmax.f32 %v606, %v927
      %v1000 = vmax.f32 %v609, %v930
      %v1001 = vmax.f32 %v614, %v935
      %v1002 = vmax.f32 %v617, %v938
      %v1003 = vmax.f32 %v622, %v943
      %v1004 = vmax.f32 %v625, %v946
      %v1005 = vmax.f32 %v630, %v951
      %v1006 = vmax.f32 %v633, %v954
      %v1007 = vmax.f32 %v638, %v959
      %v1008 = vmax.f32 %v641, %v962
      %v1009 = vmax.f32 %v646, %v967
      %v1010 = vmax.f32 %v649, %v970
      %v1011 = vmax.f32 %v654, %v975
      %v1012 = vmax.f32 %v657, %v978
      %v1013 = vld [vmem:[%s307] sm:$0xf]
      %v1014 = vld [vmem:[%s307 + $0x4] sm:$0xf]
      %v1015 = vld [vmem:[%s307 + $0x8] sm:$0xf]
      %v1016 = vld [vmem:[%s307 + $0xc] sm:$0xf]
      %v1017 = vld [vmem:[%s307 + $0x10] sm:$0xf]
      %v1018 = vld [vmem:[%s307 + $0x14] sm:$0xf]
      %v1019 = vld [vmem:[%s307 + $0x18] sm:$0xf]
      %v1020 = vld [vmem:[%s307 + $0x1c] sm:$0xf]
      %v1021 = vld [vmem:[%s307 + $0x20] sm:$0xf]
      %v1022 = vld [vmem:[%s307 + $0x24] sm:$0xf]
      %v1023 = vld [vmem:[%s307 + $0x28] sm:$0xf]
      %v1024 = vld [vmem:[%s307 + $0x2c] sm:$0xf]
      %v1025 = vld [vmem:[%s307 + $0x30] sm:$0xf]
      %v1026 = vld [vmem:[%s307 + $0x34] sm:$0xf]
      %v1027 = vld [vmem:[%s307 + $0x38] sm:$0xf]
      %v1028 = vld [vmem:[%s307 + $0x3c] sm:$0xf]
      %v1029 = vld [vmem:[%s307 + $0x40] sm:$0xf]
      %v1030 = vld [vmem:[%s307 + $0x44] sm:$0xf]
      %v1031 = vld [vmem:[%s307 + $0x48] sm:$0xf]
      %v1032 = vld [vmem:[%s307 + $0x4c] sm:$0xf]
      %v1033 = vld [vmem:[%s307 + $0x50] sm:$0xf]
      %v1034 = vld [vmem:[%s307 + $0x54] sm:$0xf]
      %v1035 = vld [vmem:[%s307 + $0x58] sm:$0xf]
      %v1036 = vld [vmem:[%s307 + $0x5c] sm:$0xf]
      %v1037 = vld [vmem:[%s307 + $0x60] sm:$0xf]
      %v1038 = vld [vmem:[%s307 + $0x64] sm:$0xf]
      %v1039 = vld [vmem:[%s307 + $0x68] sm:$0xf]
      %v1040 = vld [vmem:[%s307 + $0x6c] sm:$0xf]
      %v1041 = vld [vmem:[%s307 + $0x70] sm:$0xf]
      %v1042 = vld [vmem:[%s307 + $0x74] sm:$0xf]
      %v1043 = vld [vmem:[%s307 + $0x78] sm:$0xf]
      %v1044 = vld [vmem:[%s307 + $0x7c] sm:$0xf]
      %v1077 = vunpack.c.l.b16 %v1013
      %v1078 = vunpack.c.l.b16 %v1014
      %v1079 = vunpack.c.l.b16 %v1015
      %v1080 = vunpack.c.l.b16 %v1016
      %v1081 = vunpack.c.l.b16 %v1017
      %v1082 = vunpack.c.l.b16 %v1018
      %v1083 = vunpack.c.l.b16 %v1019
      %v1084 = vunpack.c.l.b16 %v1020
      %v1085 = vunpack.c.l.b16 %v1021
      %v1086 = vunpack.c.l.b16 %v1022
      %v1087 = vunpack.c.l.b16 %v1023
      %v1088 = vunpack.c.l.b16 %v1024
      %v1089 = vunpack.c.l.b16 %v1025
      %v1090 = vunpack.c.l.b16 %v1026
      %v1091 = vunpack.c.l.b16 %v1027
      %v1092 = vunpack.c.l.b16 %v1028
      %v1093 = vunpack.c.l.b16 %v1029
      %v1094 = vunpack.c.l.b16 %v1030
      %v1095 = vunpack.c.l.b16 %v1031
      %v1096 = vunpack.c.l.b16 %v1032
      %v1097 = vunpack.c.l.b16 %v1033
      %v1098 = vunpack.c.l.b16 %v1034
      %v1099 = vunpack.c.l.b16 %v1035
      %v1100 = vunpack.c.l.b16 %v1036
      %v1101 = vunpack.c.l.b16 %v1037
      %v1102 = vunpack.c.l.b16 %v1038
      %v1103 = vunpack.c.l.b16 %v1039
      %v1104 = vunpack.c.l.b16 %v1040
      %v1105 = vunpack.c.l.b16 %v1041
      %v1106 = vunpack.c.l.b16 %v1042
      %v1107 = vunpack.c.l.b16 %v1043
      %v1108 = vunpack.c.l.b16 %v1044
      %v1109 = vpack.c.b16 %v1078, %v1077
      %v1110 = vpack.c.b16 %v1080, %v1079
      %v1111 = vpack.c.b16 %v1082, %v1081
      %v1112 = vpack.c.b16 %v1084, %v1083
      %v1113 = vpack.c.b16 %v1086, %v1085
      %v1114 = vpack.c.b16 %v1088, %v1087
      %v1115 = vpack.c.b16 %v1090, %v1089
      %v1116 = vpack.c.b16 %v1092, %v1091
      %v1117 = vpack.c.b16 %v1094, %v1093
      %v1118 = vpack.c.b16 %v1096, %v1095
      %v1119 = vpack.c.b16 %v1098, %v1097
      %v1120 = vpack.c.b16 %v1100, %v1099
      %v1121 = vpack.c.b16 %v1102, %v1101
      %v1122 = vpack.c.b16 %v1104, %v1103
      %v1123 = vpack.c.b16 %v1106, %v1105
      %v1124 = vpack.c.b16 %v1108, %v1107
      %v1126 = vsel %vm450, %v1109, 0
      %v1129 = vsel %vm450, %v1110, 0
      %v1132 = vsel %vm450, %v1111, 0
      %v1135 = vsel %vm450, %v1112, 0
      %v1138 = vsel %vm450, %v1113, 0
      %v1141 = vsel %vm450, %v1114, 0
      %v1144 = vsel %vm450, %v1115, 0
      %v1147 = vsel %vm450, %v1116, 0
      %v1150 = vsel %vm450, %v1117, 0
      %v1153 = vsel %vm450, %v1118, 0
      %v1156 = vsel %vm450, %v1119, 0
      %v1159 = vsel %vm450, %v1120, 0
      %v1162 = vsel %vm450, %v1121, 0
      %v1165 = vsel %vm450, %v1122, 0
      %v1168 = vsel %vm450, %v1123, 0
      %v1171 = vsel %vm450, %v1124, 0
      %1173 = vmatprep.subr.bf16.mxu0 0
      %1174 = vmatpush1.bf16.msra.mxu0 %v446
      %1175 = vmatprep.subr.bf16.mxu0 0
      %1176 = vmatpush1.bf16.msra.mxu0 %v447
      %1177 = vmatprep.subr.bf16.mxu0 0
      %1178 = vmatpush1.bf16.msra.mxu0 0
      %1179 = vmatprep.subr.bf16.mxu0 0
      %1180 = vmatpush1.bf16.msra.mxu0 0
      %1181 = vmatprep.subr.bf16.mxu0 0
      %1182 = vmatpush1.bf16.msra.mxu0 0
      %1183 = vmatprep.subr.bf16.mxu0 0
      %1184 = vmatpush1.bf16.msra.mxu0 0
      %1185 = vmatprep.subr.bf16.mxu0 0
      %1186 = vmatpush1.bf16.msra.mxu0 0
      %1187 = vmatprep.subr.bf16.mxu0 0
      %1188 = vmatpush1.bf16.msra.mxu0 0
      %1189 = vmatprep.subr.bf16.mxu0 0
      %1190 = vmatpush1.bf16.msra.mxu0 0
      %1191 = vmatprep.subr.bf16.mxu0 0
      %1192 = vmatpush1.bf16.msra.mxu0 0
      %1193 = vmatprep.subr.bf16.mxu0 0
      %1194 = vmatpush1.bf16.msra.mxu0 0
      %1195 = vmatprep.subr.bf16.mxu0 0
      %1196 = vmatpush1.bf16.msra.mxu0 0
      %1197 = vmatprep.subr.bf16.mxu0 0
      %1198 = vmatpush1.bf16.msra.mxu0 0
      %1199 = vmatprep.subr.bf16.mxu0 0
      %1200 = vmatpush1.bf16.msra.mxu0 0
      %1201 = vmatprep.subr.bf16.mxu0 0
      %1202 = vmatpush1.bf16.msra.mxu0 0
      %1203 = vmatprep.subr.bf16.mxu0 0
      %1204 = vmatpush1.bf16.msra.mxu0 0
      %1205 = vmatprep.mubr.bf16.mxu0 0
      %1206 = vmatmul.mubr.bf16.gmra.mrb[0].mxu0 %v1126
      %v1207 = vpop.f32.mrb[0].mxu0
      %v1208 = vadd.f32 0.0, %v1207
      %v1209 = vpop.f32.mrb[0].mxu0
      %v1210 = vpop.f32.mrb[0].mxu0
      %v1211 = vadd.f32 0.0, %v1210
      %v1212 = vpop.f32.mrb[0].mxu0
      %1213 = vmatprep.mubr.bf16.mxu0 0
      %1214 = vmatmul.mubr.bf16.gmra.mrb[0].mxu0 %v1129
      %v1215 = vpop.f32.mrb[0].mxu0
      %v1216 = vadd.f32 0.0, %v1215
      %v1217 = vpop.f32.mrb[0].mxu0
      %v1218 = vpop.f32.mrb[0].mxu0
      %v1219 = vadd.f32 0.0, %v1218
      %v1220 = vpop.f32.mrb[0].mxu0
      %1221 = vmatprep.mubr.bf16.mxu0 0
      %1222 = vmatmul.mubr.bf16.gmra.mrb[0].mxu0 %v1132
      %v1223 = vpop.f32.mrb[0].mxu0
      %v1224 = vadd.f32 0.0, %v1223
      %v1225 = vpop.f32.mrb[0].mxu0
      %v1226 = vpop.f32.mrb[0].mxu0
      %v1227 = vadd.f32 0.0, %v1226
      %v1228 = vpop.f32.mrb[0].mxu0
      %1229 = vmatprep.mubr.bf16.mxu0 0
      %1230 = vmatmul.mubr.bf16.gmra.mrb[0].mxu0 %v1135
      %v1231 = vpop.f32.mrb[0].mxu0
      %v1232 = vadd.f32 0.0, %v1231
      %v1233 = vpop.f32.mrb[0].mxu0
      %v1234 = vpop.f32.mrb[0].mxu0
      %v1235 = vadd.f32 0.0, %v1234
      %v1236 = vpop.f32.mrb[0].mxu0
      %1237 = vmatprep.mubr.bf16.mxu0 0
      %1238 = vmatmul.mubr.bf16.gmra.mrb[0].mxu0 %v1138
      %v1239 = vpop.f32.mrb[0].mxu0
      %v1240 = vadd.f32 0.0, %v1239
      %v1241 = vpop.f32.mrb[0].mxu0
      %v1242 = vpop.f32.mrb[0].mxu0
      %v1243 = vadd.f32 0.0, %v1242
      %v1244 = vpop.f32.mrb[0].mxu0
      %1245 = vmatprep.mubr.bf16.mxu0 0
      %1246 = vmatmul.mubr.bf16.gmra.mrb[0].mxu0 %v1141
      %v1247 = vpop.f32.mrb[0].mxu0
      %v1248 = vadd.f32 0.0, %v1247
      %v1249 = vpop.f32.mrb[0].mxu0
      %v1250 = vpop.f32.mrb[0].mxu0
      %v1251 = vadd.f32 0.0, %v1250
      %v1252 = vpop.f32.mrb[0].mxu0
      %1253 = vmatprep.mubr.bf16.mxu0 0
      %1254 = vmatmul.mubr.bf16.gmra.mrb[0].mxu0 %v1144
      %v1255 = vpop.f32.mrb[0].mxu0
      %v1256 = vadd.f32 0.0, %v1255
      %v1257 = vpop.f32.mrb[0].mxu0
      %v1258 = vpop.f32.mrb[0].mxu0
      %v1259 = vadd.f32 0.0, %v1258
      %v1260 = vpop.f32.mrb[0].mxu0
      %1261 = vmatprep.mubr.bf16.mxu0 0
      %1262 = vmatmul.mubr.bf16.gmra.mrb[0].mxu0 %v1147
      %v1263 = vpop.f32.mrb[0].mxu0
      %v1264 = vadd.f32 0.0, %v1263
      %v1265 = vpop.f32.mrb[0].mxu0
      %v1266 = vpop.f32.mrb[0].mxu0
      %v1267 = vadd.f32 0.0, %v1266
      %v1268 = vpop.f32.mrb[0].mxu0
      %1269 = vmatprep.mubr.bf16.mxu0 0
      %1270 = vmatmul.mubr.bf16.gmra.mrb[0].mxu0 %v1150
      %v1271 = vpop.f32.mrb[0].mxu0
      %v1272 = vadd.f32 0.0, %v1271
      %v1273 = vpop.f32.mrb[0].mxu0
      %v1274 = vpop.f32.mrb[0].mxu0
      %v1275 = vadd.f32 0.0, %v1274
      %v1276 = vpop.f32.mrb[0].mxu0
      %1277 = vmatprep.mubr.bf16.mxu0 0
      %1278 = vmatmul.mubr.bf16.gmra.mrb[0].mxu0 %v1153
      %v1279 = vpop.f32.mrb[0].mxu0
      %v1280 = vadd.f32 0.0, %v1279
      %v1281 = vpop.f32.mrb[0].mxu0
      %v1282 = vpop.f32.mrb[0].mxu0
      %v1283 = vadd.f32 0.0, %v1282
      %v1284 = vpop.f32.mrb[0].mxu0
      %1285 = vmatprep.mubr.bf16.mxu0 0
      %1286 = vmatmul.mubr.bf16.gmra.mrb[0].mxu0 %v1156
      %v1287 = vpop.f32.mrb[0].mxu0
      %v1288 = vadd.f32 0.0, %v1287
      %v1289 = vpop.f32.mrb[0].mxu0
      %v1290 = vpop.f32.mrb[0].mxu0
      %v1291 = vadd.f32 0.0, %v1290
      %v1292 = vpop.f32.mrb[0].mxu0
      %1293 = vmatprep.mubr.bf16.mxu0 0
      %1294 = vmatmul.mubr.bf16.gmra.mrb[0].mxu0 %v1159
      %v1295 = vpop.f32.mrb[0].mxu0
      %v1296 = vadd.f32 0.0, %v1295
      %v1297 = vpop.f32.mrb[0].mxu0
      %v1298 = vpop.f32.mrb[0].mxu0
      %v1299 = vadd.f32 0.0, %v1298
      %v1300 = vpop.f32.mrb[0].mxu0
      %1301 = vmatprep.mubr.bf16.mxu0 0
      %1302 = vmatmul.mubr.bf16.gmra.mrb[0].mxu0 %v1162
      %v1303 = vpop.f32.mrb[0].mxu0
      %v1304 = vadd.f32 0.0, %v1303
      %v1305 = vpop.f32.mrb[0].mxu0
      %v1306 = vpop.f32.mrb[0].mxu0
      %v1307 = vadd.f32 0.0, %v1306
      %v1308 = vpop.f32.mrb[0].mxu0
      %1309 = vmatprep.mubr.bf16.mxu0 0
      %1310 = vmatmul.mubr.bf16.gmra.mrb[0].mxu0 %v1165
      %v1311 = vpop.f32.mrb[0].mxu0
      %v1312 = vadd.f32 0.0, %v1311
      %v1313 = vpop.f32.mrb[0].mxu0
      %v1314 = vpop.f32.mrb[0].mxu0
      %v1315 = vadd.f32 0.0, %v1314
      %v1316 = vpop.f32.mrb[0].mxu0
      %1317 = vmatprep.mubr.bf16.mxu0 0
      %1318 = vmatmul.mubr.bf16.gmra.mrb[0].mxu0 %v1168
      %v1319 = vpop.f32.mrb[0].mxu0
      %v1320 = vadd.f32 0.0, %v1319
      %v1321 = vpop.f32.mrb[0].mxu0
      %v1322 = vpop.f32.mrb[0].mxu0
      %v1323 = vadd.f32 0.0, %v1322
      %v1324 = vpop.f32.mrb[0].mxu0
      %1325 = vmatprep.mubr.bf16.mxu0 0
      %1326 = vmatmul.mubr.bf16.gmra.mrb[0].mxu0 %v1171
      %v1327 = vpop.f32.mrb[0].mxu0
      %v1328 = vadd.f32 0.0, %v1327
      %v1329 = vpop.f32.mrb[0].mxu0
      %v1330 = vpop.f32.mrb[0].mxu0
      %v1331 = vadd.f32 0.0, %v1330
      %v1332 = vpop.f32.mrb[0].mxu0
      %1333 = vdwg.mxu0
      %v1334 = vld [vmem:[%s313] sm:$0xf]
      %v1335 = vld [vmem:[%s313 + $0x4] sm:$0xf]
      %v1336 = vld [vmem:[%s313 + $0x8] sm:$0xf]
      %v1337 = vld [vmem:[%s313 + $0xc] sm:$0xf]
      %v1338 = vld [vmem:[%s313 + $0x10] sm:$0xf]
      %v1339 = vld [vmem:[%s313 + $0x14] sm:$0xf]
      %v1340 = vld [vmem:[%s313 + $0x18] sm:$0xf]
      %v1341 = vld [vmem:[%s313 + $0x1c] sm:$0xf]
      %v1342 = vld [vmem:[%s313 + $0x20] sm:$0xf]
      %v1343 = vld [vmem:[%s313 + $0x24] sm:$0xf]
      %v1344 = vld [vmem:[%s313 + $0x28] sm:$0xf]
      %v1345 = vld [vmem:[%s313 + $0x2c] sm:$0xf]
      %v1346 = vld [vmem:[%s313 + $0x30] sm:$0xf]
      %v1347 = vld [vmem:[%s313 + $0x34] sm:$0xf]
      %v1348 = vld [vmem:[%s313 + $0x38] sm:$0xf]
      %v1349 = vld [vmem:[%s313 + $0x3c] sm:$0xf]
      %v1350 = vld [vmem:[%s313 + $0x40] sm:$0xf]
      %v1351 = vld [vmem:[%s313 + $0x44] sm:$0xf]
      %v1352 = vld [vmem:[%s313 + $0x48] sm:$0xf]
      %v1353 = vld [vmem:[%s313 + $0x4c] sm:$0xf]
      %v1354 = vld [vmem:[%s313 + $0x50] sm:$0xf]
      %v1355 = vld [vmem:[%s313 + $0x54] sm:$0xf]
      %v1356 = vld [vmem:[%s313 + $0x58] sm:$0xf]
      %v1357 = vld [vmem:[%s313 + $0x5c] sm:$0xf]
      %v1358 = vld [vmem:[%s313 + $0x60] sm:$0xf]
      %v1359 = vld [vmem:[%s313 + $0x64] sm:$0xf]
      %v1360 = vld [vmem:[%s313 + $0x68] sm:$0xf]
      %v1361 = vld [vmem:[%s313 + $0x6c] sm:$0xf]
      %v1362 = vld [vmem:[%s313 + $0x70] sm:$0xf]
      %v1363 = vld [vmem:[%s313 + $0x74] sm:$0xf]
      %v1364 = vld [vmem:[%s313 + $0x78] sm:$0xf]
      %v1365 = vld [vmem:[%s313 + $0x7c] sm:$0xf]
      %v1398 = vunpack.c.l.b16 %v1334
      %v1399 = vunpack.c.l.b16 %v1335
      %v1400 = vunpack.c.l.b16 %v1336
      %v1401 = vunpack.c.l.b16 %v1337
      %v1402 = vunpack.c.l.b16 %v1338
      %v1403 = vunpack.c.l.b16 %v1339
      %v1404 = vunpack.c.l.b16 %v1340
      %v1405 = vunpack.c.l.b16 %v1341
      %v1406 = vunpack.c.l.b16 %v1342
      %v1407 = vunpack.c.l.b16 %v1343
      %v1408 = vunpack.c.l.b16 %v1344
      %v1409 = vunpack.c.l.b16 %v1345
      %v1410 = vunpack.c.l.b16 %v1346
      %v1411 = vunpack.c.l.b16 %v1347
      %v1412 = vunpack.c.l.b16 %v1348
      %v1413 = vunpack.c.l.b16 %v1349
      %v1414 = vunpack.c.l.b16 %v1350
      %v1415 = vunpack.c.l.b16 %v1351
      %v1416 = vunpack.c.l.b16 %v1352
      %v1417 = vunpack.c.l.b16 %v1353
      %v1418 = vunpack.c.l.b16 %v1354
      %v1419 = vunpack.c.l.b16 %v1355
      %v1420 = vunpack.c.l.b16 %v1356
      %v1421 = vunpack.c.l.b16 %v1357
      %v1422 = vunpack.c.l.b16 %v1358
      %v1423 = vunpack.c.l.b16 %v1359
      %v1424 = vunpack.c.l.b16 %v1360
      %v1425 = vunpack.c.l.b16 %v1361
      %v1426 = vunpack.c.l.b16 %v1362
      %v1427 = vunpack.c.l.b16 %v1363
      %v1428 = vunpack.c.l.b16 %v1364
      %v1429 = vunpack.c.l.b16 %v1365
      %v1430 = vpack.c.b16 %v1399, %v1398
      %v1431 = vpack.c.b16 %v1401, %v1400
      %v1432 = vpack.c.b16 %v1403, %v1402
      %v1433 = vpack.c.b16 %v1405, %v1404
      %v1434 = vpack.c.b16 %v1407, %v1406
      %v1435 = vpack.c.b16 %v1409, %v1408
      %v1436 = vpack.c.b16 %v1411, %v1410
      %v1437 = vpack.c.b16 %v1413, %v1412
      %v1438 = vpack.c.b16 %v1415, %v1414
      %v1439 = vpack.c.b16 %v1417, %v1416
      %v1440 = vpack.c.b16 %v1419, %v1418
      %v1441 = vpack.c.b16 %v1421, %v1420
      %v1442 = vpack.c.b16 %v1423, %v1422
      %v1443 = vpack.c.b16 %v1425, %v1424
      %v1444 = vpack.c.b16 %v1427, %v1426
      %v1445 = vpack.c.b16 %v1429, %v1428
      %v1447 = vsel %vm450, %v1430, 0
      %v1450 = vsel %vm450, %v1431, 0
      %v1453 = vsel %vm450, %v1432, 0
      %v1456 = vsel %vm450, %v1433, 0
      %v1459 = vsel %vm450, %v1434, 0
      %v1462 = vsel %vm450, %v1435, 0
      %v1465 = vsel %vm450, %v1436, 0
      %v1468 = vsel %vm450, %v1437, 0
      %v1471 = vsel %vm450, %v1438, 0
      %v1474 = vsel %vm450, %v1439, 0
      %v1477 = vsel %vm450, %v1440, 0
      %v1480 = vsel %vm450, %v1441, 0
      %v1483 = vsel %vm450, %v1442, 0
      %v1486 = vsel %vm450, %v1443, 0
      %v1489 = vsel %vm450, %v1444, 0
      %v1492 = vsel %vm450, %v1445, 0
      %1494 = vmatprep.subr.bf16.mxu0 0
      %1495 = vmatpush1.bf16.msra.mxu0 %v446
      %1496 = vmatprep.subr.bf16.mxu0 0
      %1497 = vmatpush1.bf16.msra.mxu0 %v447
      %1498 = vmatprep.subr.bf16.mxu0 0
      %1499 = vmatpush1.bf16.msra.mxu0 0
      %1500 = vmatprep.subr.bf16.mxu0 0
      %1501 = vmatpush1.bf16.msra.mxu0 0
      %1502 = vmatprep.subr.bf16.mxu0 0
      %1503 = vmatpush1.bf16.msra.mxu0 0
      %1504 = vmatprep.subr.bf16.mxu0 0
      %1505 = vmatpush1.bf16.msra.mxu0 0
      %1506 = vmatprep.subr.bf16.mxu0 0
      %1507 = vmatpush1.bf16.msra.mxu0 0
      %1508 = vmatprep.subr.bf16.mxu0 0
      %1509 = vmatpush1.bf16.msra.mxu0 0
      %1510 = vmatprep.subr.bf16.mxu0 0
      %1511 = vmatpush1.bf16.msra.mxu0 0
      %1512 = vmatprep.subr.bf16.mxu0 0
      %1513 = vmatpush1.bf16.msra.mxu0 0
      %1514 = vmatprep.subr.bf16.mxu0 0
      %1515 = vmatpush1.bf16.msra.mxu0 0
      %1516 = vmatprep.subr.bf16.mxu0 0
      %1517 = vmatpush1.bf16.msra.mxu0 0
      %1518 = vmatprep.subr.bf16.mxu0 0
      %1519 = vmatpush1.bf16.msra.mxu0 0
      %1520 = vmatprep.subr.bf16.mxu0 0
      %1521 = vmatpush1.bf16.msra.mxu0 0
      %1522 = vmatprep.subr.bf16.mxu0 0
      %1523 = vmatpush1.bf16.msra.mxu0 0
      %1524 = vmatprep.subr.bf16.mxu0 0
      %1525 = vmatpush1.bf16.msra.mxu0 0
      %1526 = vmatprep.mubr.bf16.mxu0 0
      %1527 = vmatmul.mubr.bf16.gmra.mrb[0].mxu0 %v1447
      %v1528 = vpop.f32.mrb[0].mxu0
      %v1529 = vadd.f32 0.0, %v1528
      %v1530 = vpop.f32.mrb[0].mxu0
      %v1531 = vpop.f32.mrb[0].mxu0
      %v1532 = vadd.f32 0.0, %v1531
      %v1533 = vpop.f32.mrb[0].mxu0
      %1534 = vmatprep.mubr.bf16.mxu0 0
      %1535 = vmatmul.mubr.bf16.gmra.mrb[0].mxu0 %v1450
      %v1536 = vpop.f32.mrb[0].mxu0
      %v1537 = vadd.f32 0.0, %v1536
      %v1538 = vpop.f32.mrb[0].mxu0
      %v1539 = vpop.f32.mrb[0].mxu0
      %v1540 = vadd.f32 0.0, %v1539
      %v1541 = vpop.f32.mrb[0].mxu0
      %1542 = vmatprep.mubr.bf16.mxu0 0
      %1543 = vmatmul.mubr.bf16.gmra.mrb[0].mxu0 %v1453
      %v1544 = vpop.f32.mrb[0].mxu0
      %v1545 = vadd.f32 0.0, %v1544
      %v1546 = vpop.f32.mrb[0].mxu0
      %v1547 = vpop.f32.mrb[0].mxu0
      %v1548 = vadd.f32 0.0, %v1547
      %v1549 = vpop.f32.mrb[0].mxu0
      %1550 = vmatprep.mubr.bf16.mxu0 0
      %1551 = vmatmul.mubr.bf16.gmra.mrb[0].mxu0 %v1456
      %v1552 = vpop.f32.mrb[0].mxu0
      %v1553 = vadd.f32 0.0, %v1552
      %v1554 = vpop.f32.mrb[0].mxu0
      %v1555 = vpop.f32.mrb[0].mxu0
      %v1556 = vadd.f32 0.0, %v1555
      %v1557 = vpop.f32.mrb[0].mxu0
      %1558 = vmatprep.mubr.bf16.mxu0 0
      %1559 = vmatmul.mubr.bf16.gmra.mrb[0].mxu0 %v1459
      %v1560 = vpop.f32.mrb[0].mxu0
      %v1561 = vadd.f32 0.0, %v1560
      %v1562 = vpop.f32.mrb[0].mxu0
      %v1563 = vpop.f32.mrb[0].mxu0
      %v1564 = vadd.f32 0.0, %v1563
      %v1565 = vpop.f32.mrb[0].mxu0
      %1566 = vmatprep.mubr.bf16.mxu0 0
      %1567 = vmatmul.mubr.bf16.gmra.mrb[0].mxu0 %v1462
      %v1568 = vpop.f32.mrb[0].mxu0
      %v1569 = vadd.f32 0.0, %v1568
      %v1570 = vpop.f32.mrb[0].mxu0
      %v1571 = vpop.f32.mrb[0].mxu0
      %v1572 = vadd.f32 0.0, %v1571
      %v1573 = vpop.f32.mrb[0].mxu0
      %1574 = vmatprep.mubr.bf16.mxu0 0
      %1575 = vmatmul.mubr.bf16.gmra.mrb[0].mxu0 %v1465
      %v1576 = vpop.f32.mrb[0].mxu0
      %v1577 = vadd.f32 0.0, %v1576
      %v1578 = vpop.f32.mrb[0].mxu0
      %v1579 = vpop.f32.mrb[0].mxu0
      %v1580 = vadd.f32 0.0, %v1579
      %v1581 = vpop.f32.mrb[0].mxu0
      %1582 = vmatprep.mubr.bf16.mxu0 0
      %1583 = vmatmul.mubr.bf16.gmra.mrb[0].mxu0 %v1468
      %v1584 = vpop.f32.mrb[0].mxu0
      %v1585 = vadd.f32 0.0, %v1584
      %v1586 = vpop.f32.mrb[0].mxu0
      %v1587 = vpop.f32.mrb[0].mxu0
      %v1588 = vadd.f32 0.0, %v1587
      %v1589 = vpop.f32.mrb[0].mxu0
      %1590 = vmatprep.mubr.bf16.mxu0 0
      %1591 = vmatmul.mubr.bf16.gmra.mrb[0].mxu0 %v1471
      %v1592 = vpop.f32.mrb[0].mxu0
      %v1593 = vadd.f32 0.0, %v1592
      %v1594 = vpop.f32.mrb[0].mxu0
      %v1595 = vpop.f32.mrb[0].mxu0
      %v1596 = vadd.f32 0.0, %v1595
      %v1597 = vpop.f32.mrb[0].mxu0
      %1598 = vmatprep.mubr.bf16.mxu0 0
      %1599 = vmatmul.mubr.bf16.gmra.mrb[0].mxu0 %v1474
      %v1600 = vpop.f32.mrb[0].mxu0
      %v1601 = vadd.f32 0.0, %v1600
      %v1602 = vpop.f32.mrb[0].mxu0
      %v1603 = vpop.f32.mrb[0].mxu0
      %v1604 = vadd.f32 0.0, %v1603
      %v1605 = vpop.f32.mrb[0].mxu0
      %1606 = vmatprep.mubr.bf16.mxu0 0
      %1607 = vmatmul.mubr.bf16.gmra.mrb[0].mxu0 %v1477
      %v1608 = vpop.f32.mrb[0].mxu0
      %v1609 = vadd.f32 0.0, %v1608
      %v1610 = vpop.f32.mrb[0].mxu0
      %v1611 = vpop.f32.mrb[0].mxu0
      %v1612 = vadd.f32 0.0, %v1611
      %v1613 = vpop.f32.mrb[0].mxu0
      %1614 = vmatprep.mubr.bf16.mxu0 0
      %1615 = vmatmul.mubr.bf16.gmra.mrb[0].mxu0 %v1480
      %v1616 = vpop.f32.mrb[0].mxu0
      %v1617 = vadd.f32 0.0, %v1616
      %v1618 = vpop.f32.mrb[0].mxu0
      %v1619 = vpop.f32.mrb[0].mxu0
      %v1620 = vadd.f32 0.0, %v1619
      %v1621 = vpop.f32.mrb[0].mxu0
      %1622 = vmatprep.mubr.bf16.mxu0 0
      %1623 = vmatmul.mubr.bf16.gmra.mrb[0].mxu0 %v1483
      %v1624 = vpop.f32.mrb[0].mxu0
      %v1625 = vadd.f32 0.0, %v1624
      %v1626 = vpop.f32.mrb[0].mxu0
      %v1627 = vpop.f32.mrb[0].mxu0
      %v1628 = vadd.f32 0.0, %v1627
      %v1629 = vpop.f32.mrb[0].mxu0
      %1630 = vmatprep.mubr.bf16.mxu0 0
      %1631 = vmatmul.mubr.bf16.gmra.mrb[0].mxu0 %v1486
      %v1632 = vpop.f32.mrb[0].mxu0
      %v1633 = vadd.f32 0.0, %v1632
      %v1634 = vpop.f32.mrb[0].mxu0
      %v1635 = vpop.f32.mrb[0].mxu0
      %v1636 = vadd.f32 0.0, %v1635
      %v1637 = vpop.f32.mrb[0].mxu0
      %1638 = vmatprep.mubr.bf16.mxu0 0
      %1639 = vmatmul.mubr.bf16.gmra.mrb[0].mxu0 %v1489
      %v1640 = vpop.f32.mrb[0].mxu0
      %v1641 = vadd.f32 0.0, %v1640
      %v1642 = vpop.f32.mrb[0].mxu0
      %v1643 = vpop.f32.mrb[0].mxu0
      %v1644 = vadd.f32 0.0, %v1643
      %v1645 = vpop.f32.mrb[0].mxu0
      %1646 = vmatprep.mubr.bf16.mxu0 0
      %1647 = vmatmul.mubr.bf16.gmra.mrb[0].mxu0 %v1492
      %v1648 = vpop.f32.mrb[0].mxu0
      %v1649 = vadd.f32 0.0, %v1648
      %v1650 = vpop.f32.mrb[0].mxu0
      %v1651 = vpop.f32.mrb[0].mxu0
      %v1652 = vadd.f32 0.0, %v1651
      %v1653 = vpop.f32.mrb[0].mxu0
      %1654 = vdwg.mxu0
      %v1655 = vmax.f32 %v1208, %v1529
      %v1656 = vmax.f32 %v1211, %v1532
      %v1657 = vmax.f32 %v1216, %v1537
      %v1658 = vmax.f32 %v1219, %v1540
      %v1659 = vmax.f32 %v1224, %v1545
      %v1660 = vmax.f32 %v1227, %v1548
      %v1661 = vmax.f32 %v1232, %v1553
      %v1662 = vmax.f32 %v1235, %v1556
      %v1663 = vmax.f32 %v1240, %v1561
      %v1664 = vmax.f32 %v1243, %v1564
      %v1665 = vmax.f32 %v1248, %v1569
      %v1666 = vmax.f32 %v1251, %v1572
      %v1667 = vmax.f32 %v1256, %v1577
      %v1668 = vmax.f32 %v1259, %v1580
      %v1669 = vmax.f32 %v1264, %v1585
      %v1670 = vmax.f32 %v1267, %v1588
      %v1671 = vmax.f32 %v1272, %v1593
      %v1672 = vmax.f32 %v1275, %v1596
      %v1673 = vmax.f32 %v1280, %v1601
      %v1674 = vmax.f32 %v1283, %v1604
      %v1675 = vmax.f32 %v1288, %v1609
      %v1676 = vmax.f32 %v1291, %v1612
      %v1677 = vmax.f32 %v1296, %v1617
      %v1678 = vmax.f32 %v1299, %v1620
      %v1679 = vmax.f32 %v1304, %v1625
      %v1680 = vmax.f32 %v1307, %v1628
      %v1681 = vmax.f32 %v1312, %v1633
      %v1682 = vmax.f32 %v1315, %v1636
      %v1683 = vmax.f32 %v1320, %v1641
      %v1684 = vmax.f32 %v1323, %v1644
      %v1685 = vmax.f32 %v1328, %v1649
      %v1686 = vmax.f32 %v1331, %v1652
      %v1687 = vmax.f32 %v981, %v1655
      %v1688 = vmax.f32 %v982, %v1656
      %v1689 = vmax.f32 %v983, %v1657
      %v1690 = vmax.f32 %v984, %v1658
      %v1691 = vmax.f32 %v985, %v1659
      %v1692 = vmax.f32 %v986, %v1660
      %v1693 = vmax.f32 %v987, %v1661
      %v1694 = vmax.f32 %v988, %v1662
      %v1695 = vmax.f32 %v989, %v1663
      %v1696 = vmax.f32 %v990, %v1664
      %v1697 = vmax.f32 %v991, %v1665
      %v1698 = vmax.f32 %v992, %v1666
      %v1699 = vmax.f32 %v993, %v1667
      %v1700 = vmax.f32 %v994, %v1668
      %v1701 = vmax.f32 %v995, %v1669
      %v1702 = vmax.f32 %v996, %v1670
      %v1703 = vmax.f32 %v997, %v1671
      %v1704 = vmax.f32 %v998, %v1672
      %v1705 = vmax.f32 %v999, %v1673
      %v1706 = vmax.f32 %v1000, %v1674
      %v1707 = vmax.f32 %v1001, %v1675
      %v1708 = vmax.f32 %v1002, %v1676
      %v1709 = vmax.f32 %v1003, %v1677
      %v1710 = vmax.f32 %v1004, %v1678
      %v1711 = vmax.f32 %v1005, %v1679
      %v1712 = vmax.f32 %v1006, %v1680
      %v1713 = vmax.f32 %v1007, %v1681
      %v1714 = vmax.f32 %v1008, %v1682
      %v1715 = vmax.f32 %v1009, %v1683
      %v1716 = vmax.f32 %v1010, %v1684
      %v1717 = vmax.f32 %v1011, %v1685
      %v1718 = vmax.f32 %v1012, %v1686
      %v1719 = vld [vmem:[%s5] sm:$0x1]
      %v1721 = vlaneseq
      %v1722 = vshrl.u32 %v1721, 7
      %v1723 = vsub.s32 0, %v1722
      %v1724 = vrot.slane %v1719, %v1723
      %v1726 = vadd.f32 %v1687, %v1724
      %v1727 = vadd.f32 %v1688, %v1724
      %v1728 = vadd.f32 %v1689, %v1724
      %v1729 = vadd.f32 %v1690, %v1724
      %v1730 = vadd.f32 %v1691, %v1724
      %v1731 = vadd.f32 %v1692, %v1724
      %v1732 = vadd.f32 %v1693, %v1724
      %v1733 = vadd.f32 %v1694, %v1724
      %v1734 = vadd.f32 %v1695, %v1724
      %v1735 = vadd.f32 %v1696, %v1724
      %v1736 = vadd.f32 %v1697, %v1724
      %v1737 = vadd.f32 %v1698, %v1724
      %v1738 = vadd.f32 %v1699, %v1724
      %v1739 = vadd.f32 %v1700, %v1724
      %v1740 = vadd.f32 %v1701, %v1724
      %v1741 = vadd.f32 %v1702, %v1724
      %v1742 = vadd.f32 %v1703, %v1724
      %v1743 = vadd.f32 %v1704, %v1724
      %v1744 = vadd.f32 %v1705, %v1724
      %v1745 = vadd.f32 %v1706, %v1724
      %v1746 = vadd.f32 %v1707, %v1724
      %v1747 = vadd.f32 %v1708, %v1724
      %v1748 = vadd.f32 %v1709, %v1724
      %v1749 = vadd.f32 %v1710, %v1724
      %v1750 = vadd.f32 %v1711, %v1724
      %v1751 = vadd.f32 %v1712, %v1724
      %v1752 = vadd.f32 %v1713, %v1724
      %v1753 = vadd.f32 %v1714, %v1724
      %v1754 = vadd.f32 %v1715, %v1724
      %v1755 = vadd.f32 %v1716, %v1724
      %v1756 = vadd.f32 %v1717, %v1724
      %v1757 = vadd.f32 %v1718, %v1724
      %v1758 = vmax.f32 %v1726, 0.0
      %v1759 = vmax.f32 %v1727, 0.0
      %v1760 = vmax.f32 %v1728, 0.0
      %v1761 = vmax.f32 %v1729, 0.0
      %v1762 = vmax.f32 %v1730, 0.0
      %v1763 = vmax.f32 %v1731, 0.0
      %v1764 = vmax.f32 %v1732, 0.0
      %v1765 = vmax.f32 %v1733, 0.0
      %v1766 = vmax.f32 %v1734, 0.0
      %v1767 = vmax.f32 %v1735, 0.0
      %v1768 = vmax.f32 %v1736, 0.0
      %v1769 = vmax.f32 %v1737, 0.0
      %v1770 = vmax.f32 %v1738, 0.0
      %v1771 = vmax.f32 %v1739, 0.0
      %v1772 = vmax.f32 %v1740, 0.0
      %v1773 = vmax.f32 %v1741, 0.0
      %v1774 = vmax.f32 %v1742, 0.0
      %v1775 = vmax.f32 %v1743, 0.0
      %v1776 = vmax.f32 %v1744, 0.0
      %v1777 = vmax.f32 %v1745, 0.0
      %v1778 = vmax.f32 %v1746, 0.0
      %v1779 = vmax.f32 %v1747, 0.0
      %v1780 = vmax.f32 %v1748, 0.0
      %v1781 = vmax.f32 %v1749, 0.0
      %v1782 = vmax.f32 %v1750, 0.0
      %v1783 = vmax.f32 %v1751, 0.0
      %v1784 = vmax.f32 %v1752, 0.0
      %v1785 = vmax.f32 %v1753, 0.0
      %v1786 = vmax.f32 %v1754, 0.0
      %v1787 = vmax.f32 %v1755, 0.0
      %v1788 = vmax.f32 %v1756, 0.0
      %v1789 = vmax.f32 %v1757, 0.0
      %v1790 = vpack.c.bf16 %v1759, %v1758
      %v1791 = vpack.c.bf16 %v1761, %v1760
      %v1792 = vpack.c.bf16 %v1763, %v1762
      %v1793 = vpack.c.bf16 %v1765, %v1764
      %v1794 = vpack.c.bf16 %v1767, %v1766
      %v1795 = vpack.c.bf16 %v1769, %v1768
      %v1796 = vpack.c.bf16 %v1771, %v1770
      %v1797 = vpack.c.bf16 %v1773, %v1772
      %v1798 = vpack.c.bf16 %v1775, %v1774
      %v1799 = vpack.c.bf16 %v1777, %v1776
      %v1800 = vpack.c.bf16 %v1779, %v1778
      %v1801 = vpack.c.bf16 %v1781, %v1780
      %v1802 = vpack.c.bf16 %v1783, %v1782
      %v1803 = vpack.c.bf16 %v1785, %v1784
      %v1804 = vpack.c.bf16 %v1787, %v1786
      %v1805 = vpack.c.bf16 %v1789, %v1788
      %v1822 = vunpack.c.l.b16 %v1790
      %v1823 = vunpack.c.h.b16 %v1790
      %v1824 = vunpack.c.l.b16 %v1791
      %v1825 = vunpack.c.h.b16 %v1791
      %v1826 = vunpack.c.l.b16 %v1792
      %v1827 = vunpack.c.h.b16 %v1792
      %v1828 = vunpack.c.l.b16 %v1793
      %v1829 = vunpack.c.h.b16 %v1793
      %v1830 = vunpack.c.l.b16 %v1794
      %v1831 = vunpack.c.h.b16 %v1794
      %v1832 = vunpack.c.l.b16 %v1795
      %v1833 = vunpack.c.h.b16 %v1795
      %v1834 = vunpack.c.l.b16 %v1796
      %v1835 = vunpack.c.h.b16 %v1796
      %v1836 = vunpack.c.l.b16 %v1797
      %v1837 = vunpack.c.h.b16 %v1797
      %v1838 = vunpack.c.l.b16 %v1798
      %v1839 = vunpack.c.h.b16 %v1798
      %v1840 = vunpack.c.l.b16 %v1799
      %v1841 = vunpack.c.h.b16 %v1799
      %v1842 = vunpack.c.l.b16 %v1800
      %v1843 = vunpack.c.h.b16 %v1800
      %v1844 = vunpack.c.l.b16 %v1801
      %v1845 = vunpack.c.h.b16 %v1801
      %v1846 = vunpack.c.l.b16 %v1802
      %v1847 = vunpack.c.h.b16 %v1802
      %v1848 = vunpack.c.l.b16 %v1803
      %v1849 = vunpack.c.h.b16 %v1803
      %v1850 = vunpack.c.l.b16 %v1804
      %v1851 = vunpack.c.h.b16 %v1804
      %v1852 = vunpack.c.l.b16 %v1805
      %v1853 = vunpack.c.h.b16 %v1805
      %v1854 = vpack.c.b16 %v1822, %v1822
      %v1855 = vpack.c.b16 %v1823, %v1823
      %v1856 = vpack.c.b16 %v1824, %v1824
      %v1857 = vpack.c.b16 %v1825, %v1825
      %v1858 = vpack.c.b16 %v1826, %v1826
      %v1859 = vpack.c.b16 %v1827, %v1827
      %v1860 = vpack.c.b16 %v1828, %v1828
      %v1861 = vpack.c.b16 %v1829, %v1829
      %v1862 = vpack.c.b16 %v1830, %v1830
      %v1863 = vpack.c.b16 %v1831, %v1831
      %v1864 = vpack.c.b16 %v1832, %v1832
      %v1865 = vpack.c.b16 %v1833, %v1833
      %v1866 = vpack.c.b16 %v1834, %v1834
      %v1867 = vpack.c.b16 %v1835, %v1835
      %v1868 = vpack.c.b16 %v1836, %v1836
      %v1869 = vpack.c.b16 %v1837, %v1837
      %v1870 = vpack.c.b16 %v1838, %v1838
      %v1871 = vpack.c.b16 %v1839, %v1839
      %v1872 = vpack.c.b16 %v1840, %v1840
      %v1873 = vpack.c.b16 %v1841, %v1841
      %v1874 = vpack.c.b16 %v1842, %v1842
      %v1875 = vpack.c.b16 %v1843, %v1843
      %v1876 = vpack.c.b16 %v1844, %v1844
      %v1877 = vpack.c.b16 %v1845, %v1845
      %v1878 = vpack.c.b16 %v1846, %v1846
      %v1879 = vpack.c.b16 %v1847, %v1847
      %v1880 = vpack.c.b16 %v1848, %v1848
      %v1881 = vpack.c.b16 %v1849, %v1849
      %v1882 = vpack.c.b16 %v1850, %v1850
      %v1883 = vpack.c.b16 %v1851, %v1851
      %v1884 = vpack.c.b16 %v1852, %v1852
      %v1885 = vpack.c.b16 %v1853, %v1853
      %vm1918 = vcmask 257024
      %1919 = vst.msk [vmem:[%s319] sm:$0xf] %vm1918, %v1854
      %1920 = vst.msk [vmem:[%s319 + $0x4] sm:$0xf] %vm1918, %v1855
      %1921 = vst.msk [vmem:[%s319 + $0x8] sm:$0xf] %vm1918, %v1856
      %1922 = vst.msk [vmem:[%s319 + $0xc] sm:$0xf] %vm1918, %v1857
      %1923 = vst.msk [vmem:[%s319 + $0x10] sm:$0xf] %vm1918, %v1858
      %1924 = vst.msk [vmem:[%s319 + $0x14] sm:$0xf] %vm1918, %v1859
      %1925 = vst.msk [vmem:[%s319 + $0x18] sm:$0xf] %vm1918, %v1860
      %1926 = vst.msk [vmem:[%s319 + $0x1c] sm:$0xf] %vm1918, %v1861
      %1927 = vst.msk [vmem:[%s319 + $0x20] sm:$0xf] %vm1918, %v1862
      %1928 = vst.msk [vmem:[%s319 + $0x24] sm:$0xf] %vm1918, %v1863
      %1929 = vst.msk [vmem:[%s319 + $0x28] sm:$0xf] %vm1918, %v1864
      %1930 = vst.msk [vmem:[%s319 + $0x2c] sm:$0xf] %vm1918, %v1865
      %1931 = vst.msk [vmem:[%s319 + $0x30] sm:$0xf] %vm1918, %v1866
      %1932 = vst.msk [vmem:[%s319 + $0x34] sm:$0xf] %vm1918, %v1867
      %1933 = vst.msk [vmem:[%s319 + $0x38] sm:$0xf] %vm1918, %v1868
      %1934 = vst.msk [vmem:[%s319 + $0x3c] sm:$0xf] %vm1918, %v1869
      %1935 = vst.msk [vmem:[%s319 + $0x40] sm:$0xf] %vm1918, %v1870
      %1936 = vst.msk [vmem:[%s319 + $0x44] sm:$0xf] %vm1918, %v1871
      %1937 = vst.msk [vmem:[%s319 + $0x48] sm:$0xf] %vm1918, %v1872
      %1938 = vst.msk [vmem:[%s319 + $0x4c] sm:$0xf] %vm1918, %v1873
      %1939 = vst.msk [vmem:[%s319 + $0x50] sm:$0xf] %vm1918, %v1874
      %1940 = vst.msk [vmem:[%s319 + $0x54] sm:$0xf] %vm1918, %v1875
      %1941 = vst.msk [vmem:[%s319 + $0x58] sm:$0xf] %vm1918, %v1876
      %1942 = vst.msk [vmem:[%s319 + $0x5c] sm:$0xf] %vm1918, %v1877
      %1943 = vst.msk [vmem:[%s319 + $0x60] sm:$0xf] %vm1918, %v1878
      %1944 = vst.msk [vmem:[%s319 + $0x64] sm:$0xf] %vm1918, %v1879
      %1945 = vst.msk [vmem:[%s319 + $0x68] sm:$0xf] %vm1918, %v1880
      %1946 = vst.msk [vmem:[%s319 + $0x6c] sm:$0xf] %vm1918, %v1881
      %1947 = vst.msk [vmem:[%s319 + $0x70] sm:$0xf] %vm1918, %v1882
      %1948 = vst.msk [vmem:[%s319 + $0x74] sm:$0xf] %vm1918, %v1883
      %1949 = vst.msk [vmem:[%s319 + $0x78] sm:$0xf] %vm1918, %v1884
      %1950 = vst.msk [vmem:[%s319 + $0x7c] sm:$0xf] %vm1918, %v1885
      %s1951 = smul.u32 32, %s17
      %p1952 = scmp.lt.s32.totalorder %s1951, 63
      %s1953 = scalar_select %p1952, %s1951, 63
      %s1954 = smul.addr %s1953, 4
      %s1955 = scalar_lea.vmem %s6, %s1954
      // Predicated region
      $region45: #{net_forward.4} parent=43 // pred_check
        %p1956 = pneg %p181
      $region46: #{net_forward.4} parent=43 // pred_check_branch
        %1958 = sbr.rel (%p1956) target = $region48
      $region47: #{net_forward.4} parent=43 // pred_region
        %s1959 = smul.u32 32, %s17
      $region48: #{net_forward.4} parent=43 // pred_fallthru
        _
    $region44: #{net_forward.4} parent=5 // pred_fallthru
      _
    %p1960 = scmp.le.s32.totalorder 2, %s12
    // Predicated region
    $region49: #{net_forward.4} parent=5 // pred_check
      %p1961 = pneg %p1960
    $region50: #{net_forward.4} parent=5 // pred_check_branch
      %1963 = sbr.rel (%p1961) target = $region52
    $region51: #{net_forward.4} parent=5 // pred_region
      %s1964 = ssub.s32 %s12, 2
      // Predicated region
      $region53: #{net_forward.4} parent=51 // pred_check
        %p1965 = pneg %p187
      $region54: #{net_forward.4} parent=51 // pred_check_branch
        %1967 = sbr.rel (%p1965) target = $region56
      $region55: #{net_forward.4} parent=51 // pred_region
        %s1968 = smul.u32 32, %s18
        %p1969 = scmp.lt.s32.totalorder %s1968, 63
        %s1970 = scalar_select %p1969, %s1968, 63
        %s1971 = smul.addr %s1970, 4
        %s1972 = scalar_lea.vmem %s6, %s1971
      $region56: #{net_forward.4} parent=51 // pred_fallthru
        _
    $region52: #{net_forward.4} parent=5 // pred_fallthru
      _
  $region6: #{net_forward.4} parent=0 // loop_footer
    %s16 = sadd.s32 1, %s12
  $region7: #{net_forward.4} parent=0 // loop_footer_branch
    %11 = sbr.rel target = $region3
  $region8: #{net_forward.4} parent=0 // loop_exit
    _

// kernel: net_forward.5
$region0: #{net_forward.5}
  #allocation0 [shape = 'u32[]', space=smem, size = 0x4, offset = 0x4, fixed_abs, tag = 'smem constant byte address 0x4 - core index']
  #allocation1 [shape = 'u32[144,128]{1,0:T(1,128)}', space=vmem, size = 0x12000, scoped, tag = 'internal scratch']
  %s0 = inlined_call_operand.vmem [shape: bf16[128,288], index: 0, kind: input, shape index: {}]
  %s1 = inlined_call_operand.vmem [shape: bf16[128,288], index: 1, kind: input, shape index: {}]
  %s2 = inlined_call_operand.vmem [shape: bf16[128,288], index: 2, kind: input, shape index: {}]
  %s3 = inlined_call_operand.vmem [shape: bf16[128,288], index: 3, kind: input, shape index: {}]
  %s4 = inlined_call_operand.vmem [shape: bf16[288,32], index: 4, kind: input, shape index: {}]
  %s5 = inlined_call_operand.vmem [shape: f32[1,32], index: 5, kind: input, shape index: {}]
  %s6 = inlined_call_operand.vmem [shape: bf16[128,32], index: 6, kind: output, shape index: {}]
  %s7 = sld [smem:[#allocation0]]
  $region57: #{net_forward.5} parent=0
    _
  %s9 = ssub.s32 1, %s7
  %s10 = scalar_select 0, %s9, %s7
  loop: start=0, step=1, limit=4
  $region2: #{net_forward.5} parent=0 // loop_pre_header
    _
  $region3: #{net_forward.5} parent=0 // loop_header
    %s12 = sphi 0, %s16
    %p13 = scmp.ge.s32.totalorder %s12, 4
    %s22 = sphi 0, %s24
    %s25 = sphi 0, %s22
    %s26 = sphi 0, %s25
    %s42 = sphi 0, %s26
    %s48 = sphi 0, %s50
    %s51 = sphi 0, %s48
    %s52 = sphi 0, %s51
    %s68 = sphi 0, %s52
    %s74 = sphi 0, %s76
    %s77 = sphi 0, %s74
    %s78 = sphi 0, %s77
    %s94 = sphi 0, %s78
    %s100 = sphi 0, %s102
    %s103 = sphi 0, %s100
    %s104 = sphi 0, %s103
    %s120 = sphi 0, %s104
    %s124 = sphi 0, %s124
    %s126 = sphi 0, %s124
    %s127 = sphi 0, %s126
    %s141 = sphi 0, %s127
    %s145 = sphi 0, %s145
    %s147 = sphi 0, %s145
    %s148 = sphi 0, %s147
    %s162 = sphi 0, %s148
    %s168 = sphi 0, %s170
    %s171 = sphi 0, %s168
    %s172 = sphi 0, %s171
    %s188 = sphi 0, %s172
  $region4: #{net_forward.5} parent=0 // loop_header_branch
    %15 = sbr.rel (%p13) target = $region8
  $region5: #{net_forward.5} parent=0 // loop_body
    %s17 = ssub.s32 %s12, 1
    %s18 = ssub.s32 %s12, 2
    %s19 = sadd.s32 %s12, 1
    %s20 = ssub.s32 %s12, %s19
    %p21 = scmp.eq.s32.totalorder %s20, 0
    %s23 = sadd.s32 %s22, 1
    %s24 = scalar_select %p21, %s22, %s23
    %p27 = pneg %p21
    %p28 = scmp.eq.s32.totalorder %s12, 1
    %p29 = por %p27, %p28
    %p30 = scmp.ne.s32.totalorder %s22, %s25
    %p31 = scmp.eq.s32.totalorder %s12, 0
    %p32 = por %p30, %p31
    %p33 = scmp.ne.s32.totalorder %s22, %s25
    %p34 = scmp.eq.s32.totalorder %s17, 1
    %p35 = por %p33, %p34
    %p36 = scmp.ne.s32.totalorder %s25, %s26
    %p37 = scmp.eq.s32.totalorder %s17, 0
    %p38 = por %p36, %p37
    %p39 = scmp.ne.s32.totalorder %s25, %s26
    %p40 = scmp.eq.s32.totalorder %s18, 1
    %p41 = por %p39, %p40
    %p43 = scmp.ne.s32.totalorder %s26, %s42
    %p44 = scmp.eq.s32.totalorder %s18, 0
    %p45 = por %p43, %p44
    %s46 = ssub.s32 %s12, %s19
    %p47 = scmp.eq.s32.totalorder %s46, 0
    %s49 = sadd.s32 %s48, 1
    %s50 = scalar_select %p47, %s48, %s49
    %p53 = pneg %p47
    %p54 = scmp.eq.s32.totalorder %s12, 1
    %p55 = por %p53, %p54
    %p56 = scmp.ne.s32.totalorder %s48, %s51
    %p57 = scmp.eq.s32.totalorder %s12, 0
    %p58 = por %p56, %p57
    %p59 = scmp.ne.s32.totalorder %s48, %s51
    %p60 = scmp.eq.s32.totalorder %s17, 1
    %p61 = por %p59, %p60
    %p62 = scmp.ne.s32.totalorder %s51, %s52
    %p63 = scmp.eq.s32.totalorder %s17, 0
    %p64 = por %p62, %p63
    %p65 = scmp.ne.s32.totalorder %s51, %s52
    %p66 = scmp.eq.s32.totalorder %s18, 1
    %p67 = por %p65, %p66
    %p69 = scmp.ne.s32.totalorder %s52, %s68
    %p70 = scmp.eq.s32.totalorder %s18, 0
    %p71 = por %p69, %p70
    %s72 = ssub.s32 %s12, %s19
    %p73 = scmp.eq.s32.totalorder %s72, 0
    %s75 = sadd.s32 %s74, 1
    %s76 = scalar_select %p73, %s74, %s75
    %p79 = pneg %p73
    %p80 = scmp.eq.s32.totalorder %s12, 1
    %p81 = por %p79, %p80
    %p82 = scmp.ne.s32.totalorder %s74, %s77
    %p83 = scmp.eq.s32.totalorder %s12, 0
    %p84 = por %p82, %p83
    %p85 = scmp.ne.s32.totalorder %s74, %s77
    %p86 = scmp.eq.s32.totalorder %s17, 1
    %p87 = por %p85, %p86
    %p88 = scmp.ne.s32.totalorder %s77, %s78
    %p89 = scmp.eq.s32.totalorder %s17, 0
    %p90 = por %p88, %p89
    %p91 = scmp.ne.s32.totalorder %s77, %s78
    %p92 = scmp.eq.s32.totalorder %s18, 1
    %p93 = por %p91, %p92
    %p95 = scmp.ne.s32.totalorder %s78, %s94
    %p96 = scmp.eq.s32.totalorder %s18, 0
    %p97 = por %p95, %p96
    %s98 = ssub.s32 %s12, %s19
    %p99 = scmp.eq.s32.totalorder %s98, 0
    %s101 = sadd.s32 %s100, 1
    %s102 = scalar_select %p99, %s100, %s101
    %p105 = pneg %p99
    %p106 = scmp.eq.s32.totalorder %s12, 1
    %p107 = por %p105, %p106
    %p108 = scmp.ne.s32.totalorder %s100, %s103
    %p109 = scmp.eq.s32.totalorder %s12, 0
    %p110 = por %p108, %p109
    %p111 = scmp.ne.s32.totalorder %s100, %s103
    %p112 = scmp.eq.s32.totalorder %s17, 1
    %p113 = por %p111, %p112
    %p114 = scmp.ne.s32.totalorder %s103, %s104
    %p115 = scmp.eq.s32.totalorder %s17, 0
    %p116 = por %p114, %p115
    %p117 = scmp.ne.s32.totalorder %s103, %s104
    %p118 = scmp.eq.s32.totalorder %s18, 1
    %p119 = por %p117, %p118
    %p121 = scmp.ne.s32.totalorder %s104, %s120
    %p122 = scmp.eq.s32.totalorder %s18, 0
    %p123 = por %p121, %p122
    %s125 = sadd.s32 %s124, 1
    %p128 = scmp.eq.s32.totalorder %s12, 1
    %p129 = scmp.ne.s32.totalorder %s124, %s126
    %p130 = scmp.eq.s32.totalorder %s12, 0
    %p131 = por %p129, %p130
    %p132 = scmp.ne.s32.totalorder %s124, %s126
    %p133 = scmp.eq.s32.totalorder %s17, 1
    %p134 = por %p132, %p133
    %p135 = scmp.ne.s32.totalorder %s126, %s127
    %p136 = scmp.eq.s32.totalorder %s17, 0
    %p137 = por %p135, %p136
    %p138 = scmp.ne.s32.totalorder %s126, %s127
    %p139 = scmp.eq.s32.totalorder %s18, 1
    %p140 = por %p138, %p139
    %p142 = scmp.ne.s32.totalorder %s127, %s141
    %p143 = scmp.eq.s32.totalorder %s18, 0
    %p144 = por %p142, %p143
    %s146 = sadd.s32 %s145, 1
    %p149 = scmp.eq.s32.totalorder %s12, 1
    %p150 = scmp.ne.s32.totalorder %s145, %s147
    %p151 = scmp.eq.s32.totalorder %s12, 0
    %p152 = por %p150, %p151
    %p153 = scmp.ne.s32.totalorder %s145, %s147
    %p154 = scmp.eq.s32.totalorder %s17, 1
    %p155 = por %p153, %p154
    %p156 = scmp.ne.s32.totalorder %s147, %s148
    %p157 = scmp.eq.s32.totalorder %s17, 0
    %p158 = por %p156, %p157
    %p159 = scmp.ne.s32.totalorder %s147, %s148
    %p160 = scmp.eq.s32.totalorder %s18, 1
    %p161 = por %p159, %p160
    %p163 = scmp.ne.s32.totalorder %s148, %s162
    %p164 = scmp.eq.s32.totalorder %s18, 0
    %p165 = por %p163, %p164
    %s166 = ssub.s32 %s12, %s19
    %p167 = scmp.eq.s32.totalorder %s166, 0
    %s169 = sadd.s32 %s168, 1
    %s170 = scalar_select %p167, %s168, %s169
    %p173 = pneg %p167
    %p174 = scmp.eq.s32.totalorder %s12, 1
    %p175 = por %p173, %p174
    %p176 = scmp.ne.s32.totalorder %s168, %s171
    %p177 = scmp.eq.s32.totalorder %s12, 0
    %p178 = por %p176, %p177
    %p179 = scmp.ne.s32.totalorder %s168, %s171
    %p180 = scmp.eq.s32.totalorder %s17, 1
    %p181 = por %p179, %p180
    %p182 = scmp.ne.s32.totalorder %s171, %s172
    %p183 = scmp.eq.s32.totalorder %s17, 0
    %p184 = por %p182, %p183
    %p185 = scmp.ne.s32.totalorder %s171, %s172
    %p186 = scmp.eq.s32.totalorder %s18, 1
    %p187 = por %p185, %p186
    %p189 = scmp.ne.s32.totalorder %s172, %s188
    %p190 = scmp.eq.s32.totalorder %s18, 0
    %p191 = por %p189, %p190
    %p192 = scmp.le.s32.totalorder 1, %s12
    %p193 = scmp.lt.s32.totalorder %s12, 3
    %p194 = pnand %p192, %p193
    %p195 = pneg %p194
    // Predicated region
    $region9: #{net_forward.5} parent=5 // pred_check
      _
    $region10: #{net_forward.5} parent=5 // pred_check_branch
      %197 = sbr.rel (%p194) target = $region12
    $region11: #{net_forward.5} parent=5 // pred_region
      %s198 = ssub.s32 %s12, 1
      // Predicated region
      $region13: #{net_forward.5} parent=11 // pred_check
        %p199 = pneg %p137
      $region14: #{net_forward.5} parent=11 // pred_check_branch
        %201 = sbr.rel (%p199) target = $region16
      $region15: #{net_forward.5} parent=11 // pred_region
        _
      $region16: #{net_forward.5} parent=11 // pred_fallthru
        _
      // Predicated region
      $region17: #{net_forward.5} parent=11 // pred_check
        %p202 = pneg %p158
      $region18: #{net_forward.5} parent=11 // pred_check_branch
        %204 = sbr.rel (%p202) target = $region20
      $region19: #{net_forward.5} parent=11 // pred_region
        _
      $region20: #{net_forward.5} parent=11 // pred_fallthru
        _
    $region12: #{net_forward.5} parent=5 // pred_fallthru
      _
    %p205 = scmp.lt.s32.totalorder %s12, 2
    // Predicated region
    $region21: #{net_forward.5} parent=5 // pred_check
      %p206 = pneg %p205
    $region22: #{net_forward.5} parent=5 // pred_check_branch
      %208 = sbr.rel (%p206) target = $region24
    $region23: #{net_forward.5} parent=5 // pred_region
      // Predicated region
      $region25: #{net_forward.5} parent=23 // pred_check
        %p209 = pneg %p32
      $region26: #{net_forward.5} parent=23 // pred_check_branch
        %211 = sbr.rel (%p209) target = $region28
      $region27: #{net_forward.5} parent=23 // pred_region
        %s212 = smul.u32 8, %s12
        %p213 = scmp.lt.s32.totalorder %s212, 15
        %s214 = scalar_select %p213, %s212, 15
        %s215 = smul.addr %s214, 3
        %s216 = smul.addr %s215, 4
        %s217 = scalar_lea.vmem %s0, %s216
        %s218 = smul.u32 8, %s12
      $region28: #{net_forward.5} parent=23 // pred_fallthru
        _
      // Predicated region
      $region29: #{net_forward.5} parent=23 // pred_check
        %p219 = pneg %p58
      $region30: #{net_forward.5} parent=23 // pred_check_branch
        %221 = sbr.rel (%p219) target = $region32
      $region31: #{net_forward.5} parent=23 // pred_region
        %s222 = smul.u32 8, %s12
        %p223 = scmp.lt.s32.totalorder %s222, 15
        %s224 = scalar_select %p223, %s222, 15
        %s225 = smul.addr %s224, 3
        %s226 = smul.addr %s225, 4
        %s227 = scalar_lea.vmem %s1, %s226
        %s228 = smul.u32 8, %s12
      $region32: #{net_forward.5} parent=23 // pred_fallthru
        _
      // Predicated region
      $region33: #{net_forward.5} parent=23 // pred_check
        %p229 = pneg %p84
      $region34: #{net_forward.5} parent=23 // pred_check_branch
        %231 = sbr.rel (%p229) target = $region36
      $region35: #{net_forward.5} parent=23 // pred_region
        %s232 = smul.u32 8, %s12
        %p233 = scmp.lt.s32.totalorder %s232, 15
        %s234 = scalar_select %p233, %s232, 15
        %s235 = smul.addr %s234, 3
        %s236 = smul.addr %s235, 4
        %s237 = scalar_lea.vmem %s2, %s236
        %s238 = smul.u32 8, %s12
      $region36: #{net_forward.5} parent=23 // pred_fallthru
        _
      // Predicated region
      $region37: #{net_forward.5} parent=23 // pred_check
        %p239 = pneg %p110
      $region38: #{net_forward.5} parent=23 // pred_check_branch
        %241 = sbr.rel (%p239) target = $region40
      $region39: #{net_forward.5} parent=23 // pred_region
        %s242 = smul.u32 8, %s12
        %p243 = scmp.lt.s32.totalorder %s242, 15
        %s244 = scalar_select %p243, %s242, 15
        %s245 = smul.addr %s244, 3
        %s246 = smul.addr %s245, 4
        %s247 = scalar_lea.vmem %s3, %s246
        %s248 = smul.u32 8, %s12
      $region40: #{net_forward.5} parent=23 // pred_fallthru
        _
    $region24: #{net_forward.5} parent=5 // pred_fallthru
      _
    %p249 = scmp.le.s32.totalorder 1, %s12
    %p250 = scmp.lt.s32.totalorder %s12, 3
    %p251 = pnand %p249, %p250
    %p252 = pneg %p251
    // Predicated region
    $region41: #{net_forward.5} parent=5 // pred_check
      _
    $region42: #{net_forward.5} parent=5 // pred_check_branch
      %254 = sbr.rel (%p251) target = $region44
    $region43: #{net_forward.5} parent=5 // pred_region
      %s255 = ssub.s32 %s12, 1
      %s256 = smul.u32 8, %s17
      %p257 = scmp.lt.s32.totalorder %s256, 15
      %s258 = scalar_select %p257, %s256, 15
      %s259 = smul.addr %s258, 3
      %s260 = smul.addr %s259, 4
      %s261 = scalar_lea.vmem %s0, %s260
      %p262 = pneg %p38
      %p263 = pneg %p35
      %s264 = smul.u32 8, %s17
      %p265 = scmp.lt.s32.totalorder %s264, 15
      %s266 = scalar_select %p265, %s264, 15
      %s267 = smul.addr %s266, 3
      %s268 = smul.addr %s267, 4
      %s269 = scalar_lea.vmem %s1, %s268
      %p270 = pneg %p64
      %p271 = pneg %p61
      %s272 = smul.u32 8, %s17
      %p273 = scmp.lt.s32.totalorder %s272, 15
      %s274 = scalar_select %p273, %s272, 15
      %s275 = smul.addr %s274, 3
      %s276 = smul.addr %s275, 4
      %s277 = scalar_lea.vmem %s2, %s276
      %p278 = pneg %p90
      %p279 = pneg %p87
      %s280 = smul.u32 8, %s17
      %p281 = scmp.lt.s32.totalorder %s280, 15
      %s282 = scalar_select %p281, %s280, 15
      %s283 = smul.addr %s282, 3
      %s284 = smul.addr %s283, 4
      %s285 = scalar_lea.vmem %s3, %s284
      %p286 = pneg %p116
      %p287 = pneg %p113
      %p288 = pneg %p137
      %p289 = pneg %p134
      %p290 = pneg %p158
      %p291 = pneg %p155
      %p292 = pneg %p184
      %p293 = pneg %p181
      %s294 = smul.u32 8, %s17
      %p295 = scmp.lt.s32.totalorder %s294, 15
      %s296 = scalar_select %p295, %s294, 15
      %s297 = smul.addr %s296, 4
      %s298 = scalar_lea.vmem %s6, %s297
      %s299 = smul.u32 8, %s17
      %p300 = scmp.lt.s32.totalorder %s299, 15
      %s301 = scalar_select %p300, %s299, 15
      %s302 = smul.addr %s301, 3
      %s303 = smul.addr %s302, 4
      %s304 = scalar_lea.vmem %s0, %s303
      %s305 = smul.u32 8, %s17
      %s306 = smul.u32 8, %s17
      %p307 = scmp.lt.s32.totalorder %s306, 15
      %s308 = scalar_select %p307, %s306, 15
      %s309 = smul.addr %s308, 3
      %s310 = smul.addr %s309, 4
      %s311 = scalar_lea.vmem %s1, %s310
      %s312 = smul.u32 8, %s17
      %s313 = smul.u32 8, %s17
      %p314 = scmp.lt.s32.totalorder %s313, 15
      %s315 = scalar_select %p314, %s313, 15
      %s316 = smul.addr %s315, 3
      %s317 = smul.addr %s316, 4
      %s318 = scalar_lea.vmem %s2, %s317
      %s319 = smul.u32 8, %s17
      %s320 = smul.u32 8, %s17
      %p321 = scmp.lt.s32.totalorder %s320, 15
      %s322 = scalar_select %p321, %s320, 15
      %s323 = smul.addr %s322, 3
      %s324 = smul.addr %s323, 4
      %s325 = scalar_lea.vmem %s3, %s324
      %s326 = smul.u32 8, %s17
      %s327 = smul.u32 8, %s17
      %p328 = scmp.lt.s32.totalorder %s327, 15
      %s329 = scalar_select %p328, %s327, 15
      %s330 = smul.addr %s329, 4
      %s331 = scalar_lea.vmem %s6, %s330
      %s332 = smul.u32 8, %s17
      %v334 = vld [vmem:[%s4] sm:$0xf]
      %v335 = vld [vmem:[%s4 + $0x4] sm:$0xf]
      %v336 = vld [vmem:[%s4 + $0x8] sm:$0xf]
      %v337 = vld [vmem:[%s4 + $0xc] sm:$0xf]
      %v338 = vld [vmem:[%s4 + $0x10] sm:$0xf]
      %v339 = vld [vmem:[%s4 + $0x14] sm:$0xf]
      %v340 = vld [vmem:[%s4 + $0x18] sm:$0xf]
      %v341 = vld [vmem:[%s4 + $0x1c] sm:$0xf]
      %v342 = vld [vmem:[%s4 + $0x20] sm:$0xf]
      %v343 = vld [vmem:[%s4 + $0x24] sm:$0xf]
      %v344 = vld [vmem:[%s4 + $0x28] sm:$0xf]
      %v345 = vld [vmem:[%s4 + $0x2c] sm:$0xf]
      %v346 = vld [vmem:[%s4 + $0x30] sm:$0xf]
      %v347 = vld [vmem:[%s4 + $0x34] sm:$0xf]
      %v348 = vld [vmem:[%s4 + $0x38] sm:$0xf]
      %v349 = vld [vmem:[%s4 + $0x3c] sm:$0xf]
      %v350 = vld [vmem:[%s4 + $0x40] sm:$0xf]
      %v351 = vld [vmem:[%s4 + $0x44] sm:$0xf]
      %v352 = vld [vmem:[%s4 + $0x48] sm:$0xf]
      %v353 = vld [vmem:[%s4 + $0x4c] sm:$0xf]
      %v354 = vld [vmem:[%s4 + $0x50] sm:$0xf]
      %v355 = vld [vmem:[%s4 + $0x54] sm:$0xf]
      %v356 = vld [vmem:[%s4 + $0x58] sm:$0xf]
      %v357 = vld [vmem:[%s4 + $0x5c] sm:$0xf]
      %v358 = vld [vmem:[%s4 + $0x60] sm:$0xf]
      %v359 = vld [vmem:[%s4 + $0x64] sm:$0xf]
      %v360 = vld [vmem:[%s4 + $0x68] sm:$0xf]
      %v361 = vld [vmem:[%s4 + $0x6c] sm:$0xf]
      %v362 = vld [vmem:[%s4 + $0x70] sm:$0xf]
      %v363 = vld [vmem:[%s4 + $0x74] sm:$0xf]
      %v364 = vld [vmem:[%s4 + $0x78] sm:$0xf]
      %v365 = vld [vmem:[%s4 + $0x7c] sm:$0xf]
      %v366 = vld [vmem:[%s4 + $0x80] sm:$0xf]
      %v367 = vld [vmem:[%s4 + $0x84] sm:$0xf]
      %v368 = vld [vmem:[%s4 + $0x88] sm:$0xf]
      %v369 = vld [vmem:[%s4 + $0x8c] sm:$0xf]
      %v370 = vld [vmem:[%s304] sm:$0xff]
      %v371 = vld [vmem:[%s304 + $0x8] sm:$0xf]
      %v372 = vld [vmem:[%s304 + $0xc] sm:$0xff]
      %v373 = vld [vmem:[%s304 + $0x14] sm:$0xf]
      %v374 = vld [vmem:[%s304 + $0x18] sm:$0xff]
      %v375 = vld [vmem:[%s304 + $0x20] sm:$0xf]
      %v376 = vld [vmem:[%s304 + $0x24] sm:$0xff]
      %v377 = vld [vmem:[%s304 + $0x2c] sm:$0xf]
      %v378 = vld [vmem:[%s304 + $0x30] sm:$0xff]
      %v379 = vld [vmem:[%s304 + $0x38] sm:$0xf]
      %v380 = vld [vmem:[%s304 + $0x3c] sm:$0xff]
      %v381 = vld [vmem:[%s304 + $0x44] sm:$0xf]
      %v382 = vld [vmem:[%s304 + $0x48] sm:$0xff]
      %v383 = vld [vmem:[%s304 + $0x50] sm:$0xf]
      %v384 = vld [vmem:[%s304 + $0x54] sm:$0xff]
      %v385 = vld [vmem:[%s304 + $0x5c] sm:$0xf]
      %v402 = vunpack.c.l.b16 %v370
      %v403 = vunpack.c.h.b16 %v370
      %v404 = vunpack.c.l.b16 %v371
      %v405 = vunpack.c.l.b16 %v372
      %v406 = vunpack.c.h.b16 %v372
      %v407 = vunpack.c.l.b16 %v373
      %v408 = vunpack.c.l.b16 %v374
      %v409 = vunpack.c.h.b16 %v374
      %v410 = vunpack.c.l.b16 %v375
      %v411 = vunpack.c.l.b16 %v376
      %v412 = vunpack.c.h.b16 %v376
      %v413 = vunpack.c.l.b16 %v377
      %v414 = vunpack.c.l.b16 %v378
      %v415 = vunpack.c.h.b16 %v378
      %v416 = vunpack.c.l.b16 %v379
      %v417 = vunpack.c.l.b16 %v380
      %v418 = vunpack.c.h.b16 %v380
      %v419 = vunpack.c.l.b16 %v381
      %v420 = vunpack.c.l.b16 %v382
      %v421 = vunpack.c.h.b16 %v382
      %v422 = vunpack.c.l.b16 %v383
      %v423 = vunpack.c.l.b16 %v384
      %v424 = vunpack.c.h.b16 %v384
      %v425 = vunpack.c.l.b16 %v385
      %v426 = vpack.c.b16 %v405, %v402
      %v427 = vpack.c.b16 %v406, %v403
      %v428 = vpack.c.b16 %v407, %v404
      %v429 = vpack.c.b16 %v411, %v408
      %v430 = vpack.c.b16 %v412, %v409
      %v431 = vpack.c.b16 %v413, %v410
      %v432 = vpack.c.b16 %v417, %v414
      %v433 = vpack.c.b16 %v418, %v415
      %v434 = vpack.c.b16 %v419, %v416
      %v435 = vpack.c.b16 %v423, %v420
      %v436 = vpack.c.b16 %v424, %v421
      %v437 = vpack.c.b16 %v425, %v422
      %v482 = vunpack.c.l.b16 %v334
      %v483 = vunpack.c.l.b16 %v335
      %v484 = vunpack.c.l.b16 %v336
      %v485 = vunpack.c.l.b16 %v337
      %v486 = vunpack.c.l.b16 %v338
      %v487 = vunpack.c.l.b16 %v339
      %v488 = vunpack.c.l.b16 %v340
      %v489 = vunpack.c.l.b16 %v341
      %v490 = vunpack.c.l.b16 %v342
      %v491 = vunpack.c.l.b16 %v343
      %v492 = vunpack.c.l.b16 %v344
      %v493 = vunpack.c.l.b16 %v345
      %v494 = vunpack.c.l.b16 %v346
      %v495 = vunpack.c.l.b16 %v347
      %v496 = vunpack.c.l.b16 %v348
      %v497 = vunpack.c.l.b16 %v349
      %v498 = vunpack.c.l.b16 %v350
      %v499 = vunpack.c.l.b16 %v351
      %v500 = vunpack.c.l.b16 %v352
      %v501 = vunpack.c.l.b16 %v353
      %v502 = vunpack.c.l.b16 %v354
      %v503 = vunpack.c.l.b16 %v355
      %v504 = vunpack.c.l.b16 %v356
      %v505 = vunpack.c.l.b16 %v357
      %v506 = vunpack.c.l.b16 %v358
      %v507 = vunpack.c.l.b16 %v359
      %v508 = vunpack.c.l.b16 %v360
      %v509 = vunpack.c.l.b16 %v361
      %v510 = vunpack.c.l.b16 %v362
      %v511 = vunpack.c.l.b16 %v363
      %v512 = vunpack.c.l.b16 %v364
      %v513 = vunpack.c.l.b16 %v365
      %v514 = vunpack.c.l.b16 %v366
      %v515 = vunpack.c.l.b16 %v367
      %v516 = vunpack.c.l.b16 %v368
      %v517 = vunpack.c.l.b16 %v369
      %v518 = vpack.c.b16 %v483, %v482
      %v519 = vpack.c.b16 %v485, %v484
      %v520 = vpack.c.b16 %v487, %v486
      %v521 = vpack.c.b16 %v489, %v488
      %v522 = vpack.c.b16 %v491, %v490
      %v523 = vpack.c.b16 %v493, %v492
      %v524 = vpack.c.b16 %v495, %v494
      %v525 = vpack.c.b16 %v497, %v496
      %v526 = vpack.c.b16 %v499, %v498
      %v527 = vpack.c.b16 %v501, %v500
      %v528 = vpack.c.b16 %v503, %v502
      %v529 = vpack.c.b16 %v505, %v504
      %v530 = vpack.c.b16 %v507, %v506
      %v531 = vpack.c.b16 %v509, %v508
      %v532 = vpack.c.b16 %v511, %v510
      %v533 = vpack.c.b16 %v513, %v512
      %v534 = vpack.c.b16 %v515, %v514
      %v535 = vpack.c.b16 %v517, %v516
      %vm554 = vcmask 261120
      %v556 = vsel %vm554, %v428, 0
      %v559 = vsel %vm554, %v431, 0
      %v562 = vsel %vm554, %v434, 0
      %v565 = vsel %vm554, %v437, 0
      %567 = vmatprep.subr.bf16.mxu0 0
      %568 = vmatpush1.bf16.msra.mxu0 %v518
      %569 = vmatprep.subr.bf16.mxu0 0
      %570 = vmatpush1.bf16.msra.mxu0 %v519
      %571 = vmatprep.subr.bf16.mxu0 0
      %572 = vmatpush1.bf16.msra.mxu0 %v520
      %573 = vmatprep.subr.bf16.mxu0 0
      %574 = vmatpush1.bf16.msra.mxu0 %v521
      %575 = vmatprep.subr.bf16.mxu0 0
      %576 = vmatpush1.bf16.msra.mxu0 %v522
      %577 = vmatprep.subr.bf16.mxu0 0
      %578 = vmatpush1.bf16.msra.mxu0 %v523
      %579 = vmatprep.subr.bf16.mxu0 0
      %580 = vmatpush1.bf16.msra.mxu0 %v524
      %581 = vmatprep.subr.bf16.mxu0 0
      %582 = vmatpush1.bf16.msra.mxu0 %v525
      %583 = vmatprep.subr.bf16.mxu0 0
      %584 = vmatpush1.bf16.msra.mxu0 %v526
      %585 = vmatprep.subr.bf16.mxu0 0
      %586 = vmatpush1.bf16.msra.mxu0 %v527
      %587 = vmatprep.subr.bf16.mxu0 0
      %588 = vmatpush1.bf16.msra.mxu0 %v528
      %589 = vmatprep.subr.bf16.mxu0 0
      %590 = vmatpush1.bf16.msra.mxu0 %v529
      %591 = vmatprep.subr.bf16.mxu0 0
      %592 = vmatpush1.bf16.msra.mxu0 %v530
      %593 = vmatprep.subr.bf16.mxu0 0
      %594 = vmatpush1.bf16.msra.mxu0 %v531
      %595 = vmatprep.subr.bf16.mxu0 0
      %596 = vmatpush1.bf16.msra.mxu0 %v532
      %597 = vmatprep.subr.bf16.mxu0 0
      %598 = vmatpush1.bf16.msra.mxu0 %v533
      %599 = vmatprep.mubr.bf16.mxu0 %v427
      %600 = vmatmul.mubr.bf16.gmra.mrb[0].mxu0 %v426
      %v601 = vpop.f32.mrb[0].mxu0
      %v602 = vadd.f32 0.0, %v601
      %v603 = vpop.f32.mrb[0].mxu0
      %v604 = vpop.f32.mrb[0].mxu0
      %v605 = vadd.f32 0.0, %v604
      %v606 = vpop.f32.mrb[0].mxu0
      %607 = vmatprep.mubr.bf16.mxu0 %v430
      %608 = vmatmul.mubr.bf16.gmra.mrb[0].mxu0 %v429
      %v609 = vpop.f32.mrb[0].mxu0
      %v610 = vadd.f32 0.0, %v609
      %v611 = vpop.f32.mrb[0].mxu0
      %v612 = vpop.f32.mrb[0].mxu0
      %v613 = vadd.f32 0.0, %v612
      %v614 = vpop.f32.mrb[0].mxu0
      %615 = vmatprep.mubr.bf16.mxu0 %v433
      %616 = vmatmul.mubr.bf16.gmra.mrb[0].mxu0 %v432
      %v617 = vpop.f32.mrb[0].mxu0
      %v618 = vadd.f32 0.0, %v617
      %v619 = vpop.f32.mrb[0].mxu0
      %v620 = vpop.f32.mrb[0].mxu0
      %v621 = vadd.f32 0.0, %v620
      %v622 = vpop.f32.mrb[0].mxu0
      %623 = vmatprep.mubr.bf16.mxu0 %v436
      %624 = vmatmul.mubr.bf16.gmra.mrb[0].mxu0 %v435
      %v625 = vpop.f32.mrb[0].mxu0
      %v626 = vadd.f32 0.0, %v625
      %v627 = vpop.f32.mrb[0].mxu0
      %v628 = vpop.f32.mrb[0].mxu0
      %v629 = vadd.f32 0.0, %v628
      %v630 = vpop.f32.mrb[0].mxu0
      %631 = vdwg.mxu0
      %632 = vmatprep.subr.bf16.mxu0 0
      %633 = vmatpush1.bf16.msra.mxu0 %v534
      %634 = vmatprep.subr.bf16.mxu0 0
      %635 = vmatpush1.bf16.msra.mxu0 %v535
      %636 = vmatprep.subr.bf16.mxu0 0
      %637 = vmatpush1.bf16.msra.mxu0 0
      %638 = vmatprep.subr.bf16.mxu0 0
      %639 = vmatpush1.bf16.msra.mxu0 0
      %640 = vmatprep.subr.bf16.mxu0 0
      %641 = vmatpush1.bf16.msra.mxu0 0
      %642 = vmatprep.subr.bf16.mxu0 0
      %643 = vmatpush1.bf16.msra.mxu0 0
      %644 = vmatprep.subr.bf16.mxu0 0
      %645 = vmatpush1.bf16.msra.mxu0 0
      %646 = vmatprep.subr.bf16.mxu0 0
      %647 = vmatpush1.bf16.msra.mxu0 0
      %648 = vmatprep.subr.bf16.mxu0 0
      %649 = vmatpush1.bf16.msra.mxu0 0
      %650 = vmatprep.subr.bf16.mxu0 0
      %651 = vmatpush1.bf16.msra.mxu0 0
      %652 = vmatprep.subr.bf16.mxu0 0
      %653 = vmatpush1.bf16.msra.mxu0 0
      %654 = vmatprep.subr.bf16.mxu0 0
      %655 = vmatpush1.bf16.msra.mxu0 0
      %656 = vmatprep.subr.bf16.mxu0 0
      %657 = vmatpush1.bf16.msra.mxu0 0
      %658 = vmatprep.subr.bf16.mxu0 0
      %659 = vmatpush1.bf16.msra.mxu0 0
      %660 = vmatprep.subr.bf16.mxu0 0
      %661 = vmatpush1.bf16.msra.mxu0 0
      %662 = vmatprep.subr.bf16.mxu0 0
      %663 = vmatpush1.bf16.msra.mxu0 0
      %664 = vmatprep.mubr.bf16.mxu0 0
      %665 = vmatmul.mubr.bf16.gmra.mrb[0].mxu0 %v556
      %v666 = vpop.f32.mrb[0].mxu0
      %v667 = vadd.f32 %v602, %v666
      %v668 = vpop.f32.mrb[0].mxu0
      %v669 = vpop.f32.mrb[0].mxu0
      %v670 = vadd.f32 %v605, %v669
      %v671 = vpop.f32.mrb[0].mxu0
      %672 = vmatprep.mubr.bf16.mxu0 0
      %673 = vmatmul.mubr.bf16.gmra.mrb[0].mxu0 %v559
      %v674 = vpop.f32.mrb[0].mxu0
      %v675 = vadd.f32 %v610, %v674
      %v676 = vpop.f32.mrb[0].mxu0
      %v677 = vpop.f32.mrb[0].mxu0
      %v678 = vadd.f32 %v613, %v677
      %v679 = vpop.f32.mrb[0].mxu0
      %680 = vmatprep.mubr.bf16.mxu0 0
      %681 = vmatmul.mubr.bf16.gmra.mrb[0].mxu0 %v562
      %v682 = vpop.f32.mrb[0].mxu0
      %v683 = vadd.f32 %v618, %v682
      %v684 = vpop.f32.mrb[0].mxu0
      %v685 = vpop.f32.mrb[0].mxu0
      %v686 = vadd.f32 %v621, %v685
      %v687 = vpop.f32.mrb[0].mxu0
      %688 = vmatprep.mubr.bf16.mxu0 0
      %689 = vmatmul.mubr.bf16.gmra.mrb[0].mxu0 %v565
      %v690 = vpop.f32.mrb[0].mxu0
      %v691 = vadd.f32 %v626, %v690
      %v692 = vpop.f32.mrb[0].mxu0
      %v693 = vpop.f32.mrb[0].mxu0
      %v694 = vadd.f32 %v629, %v693
      %v695 = vpop.f32.mrb[0].mxu0
      %696 = vdwg.mxu0
      %v697 = vld [vmem:[%s311] sm:$0xff]
      %v698 = vld [vmem:[%s311 + $0x8] sm:$0xf]
      %v699 = vld [vmem:[%s311 + $0xc] sm:$0xff]
      %v700 = vld [vmem:[%s311 + $0x14] sm:$0xf]
      %v701 = vld [vmem:[%s311 + $0x18] sm:$0xff]
      %v702 = vld [vmem:[%s311 + $0x20] sm:$0xf]
      %v703 = vld [vmem:[%s311 + $0x24] sm:$0xff]
      %v704 = vld [vmem:[%s311 + $0x2c] sm:$0xf]
      %v705 = vld [vmem:[%s311 + $0x30] sm:$0xff]
      %v706 = vld [vmem:[%s311 + $0x38] sm:$0xf]
      %v707 = vld [vmem:[%s311 + $0x3c] sm:$0xff]
      %v708 = vld [vmem:[%s311 + $0x44] sm:$0xf]
      %v709 = vld [vmem:[%s311 + $0x48] sm:$0xff]
      %v710 = vld [vmem:[%s311 + $0x50] sm:$0xf]
      %v711 = vld [vmem:[%s311 + $0x54] sm:$0xff]
      %v712 = vld [vmem:[%s311 + $0x5c] sm:$0xf]
      %v729 = vunpack.c.l.b16 %v697
      %v730 = vunpack.c.h.b16 %v697
      %v731 = vunpack.c.l.b16 %v698
      %v732 = vunpack.c.l.b16 %v699
      %v733 = vunpack.c.h.b16 %v699
      %v734 = vunpack.c.l.b16 %v700
      %v735 = vunpack.c.l.b16 %v701
      %v736 = vunpack.c.h.b16 %v701
      %v737 = vunpack.c.l.b16 %v702
      %v738 = vunpack.c.l.b16 %v703
      %v739 = vunpack.c.h.b16 %v703
      %v740 = vunpack.c.l.b16 %v704
      %v741 = vunpack.c.l.b16 %v705
      %v742 = vunpack.c.h.b16 %v705
      %v743 = vunpack.c.l.b16 %v706
      %v744 = vunpack.c.l.b16 %v707
      %v745 = vunpack.c.h.b16 %v707
      %v746 = vunpack.c.l.b16 %v708
      %v747 = vunpack.c.l.b16 %v709
      %v748 = vunpack.c.h.b16 %v709
      %v749 = vunpack.c.l.b16 %v710
      %v750 = vunpack.c.l.b16 %v711
      %v751 = vunpack.c.h.b16 %v711
      %v752 = vunpack.c.l.b16 %v712
      %v753 = vpack.c.b16 %v732, %v729
      %v754 = vpack.c.b16 %v733, %v730
      %v755 = vpack.c.b16 %v734, %v731
      %v756 = vpack.c.b16 %v738, %v735
      %v757 = vpack.c.b16 %v739, %v736
      %v758 = vpack.c.b16 %v740, %v737
      %v759 = vpack.c.b16 %v744, %v741
      %v760 = vpack.c.b16 %v745, %v742
      %v761 = vpack.c.b16 %v746, %v743
      %v762 = vpack.c.b16 %v750, %v747
      %v763 = vpack.c.b16 %v751, %v748
      %v764 = vpack.c.b16 %v752, %v749
      %v774 = vsel %vm554, %v755, 0
      %v777 = vsel %vm554, %v758, 0
      %v780 = vsel %vm554, %v761, 0
      %v783 = vsel %vm554, %v764, 0
      %785 = vmatprep.subr.bf16.mxu0 0
      %786 = vmatpush1.bf16.msra.mxu0 %v518
      %787 = vmatprep.subr.bf16.mxu0 0
      %788 = vmatpush1.bf16.msra.mxu0 %v519
      %789 = vmatprep.subr.bf16.mxu0 0
      %790 = vmatpush1.bf16.msra.mxu0 %v520
      %791 = vmatprep.subr.bf16.mxu0 0
      %792 = vmatpush1.bf16.msra.mxu0 %v521
      %793 = vmatprep.subr.bf16.mxu0 0
      %794 = vmatpush1.bf16.msra.mxu0 %v522
      %795 = vmatprep.subr.bf16.mxu0 0
      %796 = vmatpush1.bf16.msra.mxu0 %v523
      %797 = vmatprep.subr.bf16.mxu0 0
      %798 = vmatpush1.bf16.msra.mxu0 %v524
      %799 = vmatprep.subr.bf16.mxu0 0
      %800 = vmatpush1.bf16.msra.mxu0 %v525
      %801 = vmatprep.subr.bf16.mxu0 0
      %802 = vmatpush1.bf16.msra.mxu0 %v526
      %803 = vmatprep.subr.bf16.mxu0 0
      %804 = vmatpush1.bf16.msra.mxu0 %v527
      %805 = vmatprep.subr.bf16.mxu0 0
      %806 = vmatpush1.bf16.msra.mxu0 %v528
      %807 = vmatprep.subr.bf16.mxu0 0
      %808 = vmatpush1.bf16.msra.mxu0 %v529
      %809 = vmatprep.subr.bf16.mxu0 0
      %810 = vmatpush1.bf16.msra.mxu0 %v530
      %811 = vmatprep.subr.bf16.mxu0 0
      %812 = vmatpush1.bf16.msra.mxu0 %v531
      %813 = vmatprep.subr.bf16.mxu0 0
      %814 = vmatpush1.bf16.msra.mxu0 %v532
      %815 = vmatprep.subr.bf16.mxu0 0
      %816 = vmatpush1.bf16.msra.mxu0 %v533
      %817 = vmatprep.mubr.bf16.mxu0 %v754
      %818 = vmatmul.mubr.bf16.gmra.mrb[0].mxu0 %v753
      %v819 = vpop.f32.mrb[0].mxu0
      %v820 = vadd.f32 0.0, %v819
      %v821 = vpop.f32.mrb[0].mxu0
      %v822 = vpop.f32.mrb[0].mxu0
      %v823 = vadd.f32 0.0, %v822
      %v824 = vpop.f32.mrb[0].mxu0
      %825 = vmatprep.mubr.bf16.mxu0 %v757
      %826 = vmatmul.mubr.bf16.gmra.mrb[0].mxu0 %v756
      %v827 = vpop.f32.mrb[0].mxu0
      %v828 = vadd.f32 0.0, %v827
      %v829 = vpop.f32.mrb[0].mxu0
      %v830 = vpop.f32.mrb[0].mxu0
      %v831 = vadd.f32 0.0, %v830
      %v832 = vpop.f32.mrb[0].mxu0
      %833 = vmatprep.mubr.bf16.mxu0 %v760
      %834 = vmatmul.mubr.bf16.gmra.mrb[0].mxu0 %v759
      %v835 = vpop.f32.mrb[0].mxu0
      %v836 = vadd.f32 0.0, %v835
      %v837 = vpop.f32.mrb[0].mxu0
      %v838 = vpop.f32.mrb[0].mxu0
      %v839 = vadd.f32 0.0, %v838
      %v840 = vpop.f32.mrb[0].mxu0
      %841 = vmatprep.mubr.bf16.mxu0 %v763
      %842 = vmatmul.mubr.bf16.gmra.mrb[0].mxu0 %v762
      %v843 = vpop.f32.mrb[0].mxu0
      %v844 = vadd.f32 0.0, %v843
      %v845 = vpop.f32.mrb[0].mxu0
      %v846 = vpop.f32.mrb[0].mxu0
      %v847 = vadd.f32 0.0, %v846
      %v848 = vpop.f32.mrb[0].mxu0
      %849 = vdwg.mxu0
      %850 = vmatprep.subr.bf16.mxu0 0
      %851 = vmatpush1.bf16.msra.mxu0 %v534
      %852 = vmatprep.subr.bf16.mxu0 0
      %853 = vmatpush1.bf16.msra.mxu0 %v535
      %854 = vmatprep.subr.bf16.mxu0 0
      %855 = vmatpush1.bf16.msra.mxu0 0
      %856 = vmatprep.subr.bf16.mxu0 0
      %857 = vmatpush1.bf16.msra.mxu0 0
      %858 = vmatprep.subr.bf16.mxu0 0
      %859 = vmatpush1.bf16.msra.mxu0 0
      %860 = vmatprep.subr.bf16.mxu0 0
      %861 = vmatpush1.bf16.msra.mxu0 0
      %862 = vmatprep.subr.bf16.mxu0 0
      %863 = vmatpush1.bf16.msra.mxu0 0
      %864 = vmatprep.subr.bf16.mxu0 0
      %865 = vmatpush1.bf16.msra.mxu0 0
      %866 = vmatprep.subr.bf16.mxu0 0
      %867 = vmatpush1.bf16.msra.mxu0 0
      %868 = vmatprep.subr.bf16.mxu0 0
      %869 = vmatpush1.bf16.msra.mxu0 0
      %870 = vmatprep.subr.bf16.mxu0 0
      %871 = vmatpush1.bf16.msra.mxu0 0
      %872 = vmatprep.subr.bf16.mxu0 0
      %873 = vmatpush1.bf16.msra.mxu0 0
      %874 = vmatprep.subr.bf16.mxu0 0
      %875 = vmatpush1.bf16.msra.mxu0 0
      %876 = vmatprep.subr.bf16.mxu0 0
      %877 = vmatpush1.bf16.msra.mxu0 0
      %878 = vmatprep.subr.bf16.mxu0 0
      %879 = vmatpush1.bf16.msra.mxu0 0
      %880 = vmatprep.subr.bf16.mxu0 0
      %881 = vmatpush1.bf16.msra.mxu0 0
      %882 = vmatprep.mubr.bf16.mxu0 0
      %883 = vmatmul.mubr.bf16.gmra.mrb[0].mxu0 %v774
      %v884 = vpop.f32.mrb[0].mxu0
      %v885 = vadd.f32 %v820, %v884
      %v886 = vpop.f32.mrb[0].mxu0
      %v887 = vpop.f32.mrb[0].mxu0
      %v888 = vadd.f32 %v823, %v887
      %v889 = vpop.f32.mrb[0].mxu0
      %890 = vmatprep.mubr.bf16.mxu0 0
      %891 = vmatmul.mubr.bf16.gmra.mrb[0].mxu0 %v777
      %v892 = vpop.f32.mrb[0].mxu0
      %v893 = vadd.f32 %v828, %v892
      %v894 = vpop.f32.mrb[0].mxu0
      %v895 = vpop.f32.mrb[0].mxu0
      %v896 = vadd.f32 %v831, %v895
      %v897 = vpop.f32.mrb[0].mxu0
      %898 = vmatprep.mubr.bf16.mxu0 0
      %899 = vmatmul.mubr.bf16.gmra.mrb[0].mxu0 %v780
      %v900 = vpop.f32.mrb[0].mxu0
      %v901 = vadd.f32 %v836, %v900
      %v902 = vpop.f32.mrb[0].mxu0
      %v903 = vpop.f32.mrb[0].mxu0
      %v904 = vadd.f32 %v839, %v903
      %v905 = vpop.f32.mrb[0].mxu0
      %906 = vmatprep.mubr.bf16.mxu0 0
      %907 = vmatmul.mubr.bf16.gmra.mrb[0].mxu0 %v783
      %v908 = vpop.f32.mrb[0].mxu0
      %v909 = vadd.f32 %v844, %v908
      %v910 = vpop.f32.mrb[0].mxu0
      %v911 = vpop.f32.mrb[0].mxu0
      %v912 = vadd.f32 %v847, %v911
      %v913 = vpop.f32.mrb[0].mxu0
      %914 = vdwg.mxu0
      %v915 = vmax.f32 %v667, %v885
      %v916 = vmax.f32 %v670, %v888
      %v917 = vmax.f32 %v675, %v893
      %v918 = vmax.f32 %v678, %v896
      %v919 = vmax.f32 %v683, %v901
      %v920 = vmax.f32 %v686, %v904
      %v921 = vmax.f32 %v691, %v909
      %v922 = vmax.f32 %v694, %v912
      %v923 = vld [vmem:[%s318] sm:$0xff]
      %v924 = vld [vmem:[%s318 + $0x8] sm:$0xf]
      %v925 = vld [vmem:[%s318 + $0xc] sm:$0xff]
      %v926 = vld [vmem:[%s318 + $0x14] sm:$0xf]
      %v927 = vld [vmem:[%s318 + $0x18] sm:$0xff]
      %v928 = vld [vmem:[%s318 + $0x20] sm:$0xf]
      %v929 = vld [vmem:[%s318 + $0x24] sm:$0xff]
      %v930 = vld [vmem:[%s318 + $0x2c] sm:$0xf]
      %v931 = vld [vmem:[%s318 + $0x30] sm:$0xff]
      %v932 = vld [vmem:[%s318 + $0x38] sm:$0xf]
      %v933 = vld [vmem:[%s318 + $0x3c] sm:$0xff]
      %v934 = vld [vmem:[%s318 + $0x44] sm:$0xf]
      %v935 = vld [vmem:[%s318 + $0x48] sm:$0xff]
      %v936 = vld [vmem:[%s318 + $0x50] sm:$0xf]
      %v937 = vld [vmem:[%s318 + $0x54] sm:$0xff]
      %v938 = vld [vmem:[%s318 + $0x5c] sm:$0xf]
      %v955 = vunpack.c.l.b16 %v923
      %v956 = vunpack.c.h.b16 %v923
      %v957 = vunpack.c.l.b16 %v924
      %v958 = vunpack.c.l.b16 %v925
      %v959 = vunpack.c.h.b16 %v925
      %v960 = vunpack.c.l.b16 %v926
      %v961 = vunpack.c.l.b16 %v927
      %v962 = vunpack.c.h.b16 %v927
      %v963 = vunpack.c.l.b16 %v928
      %v964 = vunpack.c.l.b16 %v929
      %v965 = vunpack.c.h.b16 %v929
      %v966 = vunpack.c.l.b16 %v930
      %v967 = vunpack.c.l.b16 %v931
      %v968 = vunpack.c.h.b16 %v931
      %v969 = vunpack.c.l.b16 %v932
      %v970 = vunpack.c.l.b16 %v933
      %v971 = vunpack.c.h.b16 %v933
      %v972 = vunpack.c.l.b16 %v934
      %v973 = vunpack.c.l.b16 %v935
      %v974 = vunpack.c.h.b16 %v935
      %v975 = vunpack.c.l.b16 %v936
      %v976 = vunpack.c.l.b16 %v937
      %v977 = vunpack.c.h.b16 %v937
      %v978 = vunpack.c.l.b16 %v938
      %v979 = vpack.c.b16 %v958, %v955
      %v980 = vpack.c.b16 %v959, %v956
      %v981 = vpack.c.b16 %v960, %v957
      %v982 = vpack.c.b16 %v964, %v961
      %v983 = vpack.c.b16 %v965, %v962
      %v984 = vpack.c.b16 %v966, %v963
      %v985 = vpack.c.b16 %v970, %v967
      %v986 = vpack.c.b16 %v971, %v968
      %v987 = vpack.c.b16 %v972, %v969
      %v988 = vpack.c.b16 %v976, %v973
      %v989 = vpack.c.b16 %v977, %v974
      %v990 = vpack.c.b16 %v978, %v975
      %v1000 = vsel %vm554, %v981, 0
      %v1003 = vsel %vm554, %v984, 0
      %v1006 = vsel %vm554, %v987, 0
      %v1009 = vsel %vm554, %v990, 0
      %1011 = vmatprep.subr.bf16.mxu0 0
      %1012 = vmatpush1.bf16.msra.mxu0 %v518
      %1013 = vmatprep.subr.bf16.mxu0 0
      %1014 = vmatpush1.bf16.msra.mxu0 %v519
      %1015 = vmatprep.subr.bf16.mxu0 0
      %1016 = vmatpush1.bf16.msra.mxu0 %v520
      %1017 = vmatprep.subr.bf16.mxu0 0
      %1018 = vmatpush1.bf16.msra.mxu0 %v521
      %1019 = vmatprep.subr.bf16.mxu0 0
      %1020 = vmatpush1.bf16.msra.mxu0 %v522
      %1021 = vmatprep.subr.bf16.mxu0 0
      %1022 = vmatpush1.bf16.msra.mxu0 %v523
      %1023 = vmatprep.subr.bf16.mxu0 0
      %1024 = vmatpush1.bf16.msra.mxu0 %v524
      %1025 = vmatprep.subr.bf16.mxu0 0
      %1026 = vmatpush1.bf16.msra.mxu0 %v525
      %1027 = vmatprep.subr.bf16.mxu0 0
      %1028 = vmatpush1.bf16.msra.mxu0 %v526
      %1029 = vmatprep.subr.bf16.mxu0 0
      %1030 = vmatpush1.bf16.msra.mxu0 %v527
      %1031 = vmatprep.subr.bf16.mxu0 0
      %1032 = vmatpush1.bf16.msra.mxu0 %v528
      %1033 = vmatprep.subr.bf16.mxu0 0
      %1034 = vmatpush1.bf16.msra.mxu0 %v529
      %1035 = vmatprep.subr.bf16.mxu0 0
      %1036 = vmatpush1.bf16.msra.mxu0 %v530
      %1037 = vmatprep.subr.bf16.mxu0 0
      %1038 = vmatpush1.bf16.msra.mxu0 %v531
      %1039 = vmatprep.subr.bf16.mxu0 0
      %1040 = vmatpush1.bf16.msra.mxu0 %v532
      %1041 = vmatprep.subr.bf16.mxu0 0
      %1042 = vmatpush1.bf16.msra.mxu0 %v533
      %1043 = vmatprep.mubr.bf16.mxu0 %v980
      %1044 = vmatmul.mubr.bf16.gmra.mrb[0].mxu0 %v979
      %v1045 = vpop.f32.mrb[0].mxu0
      %v1046 = vadd.f32 0.0, %v1045
      %v1047 = vpop.f32.mrb[0].mxu0
      %v1048 = vpop.f32.mrb[0].mxu0
      %v1049 = vadd.f32 0.0, %v1048
      %v1050 = vpop.f32.mrb[0].mxu0
      %1051 = vmatprep.mubr.bf16.mxu0 %v983
      %1052 = vmatmul.mubr.bf16.gmra.mrb[0].mxu0 %v982
      %v1053 = vpop.f32.mrb[0].mxu0
      %v1054 = vadd.f32 0.0, %v1053
      %v1055 = vpop.f32.mrb[0].mxu0
      %v1056 = vpop.f32.mrb[0].mxu0
      %v1057 = vadd.f32 0.0, %v1056
      %v1058 = vpop.f32.mrb[0].mxu0
      %1059 = vmatprep.mubr.bf16.mxu0 %v986
      %1060 = vmatmul.mubr.bf16.gmra.mrb[0].mxu0 %v985
      %v1061 = vpop.f32.mrb[0].mxu0
      %v1062 = vadd.f32 0.0, %v1061
      %v1063 = vpop.f32.mrb[0].mxu0
      %v1064 = vpop.f32.mrb[0].mxu0
      %v1065 = vadd.f32 0.0, %v1064
      %v1066 = vpop.f32.mrb[0].mxu0
      %1067 = vmatprep.mubr.bf16.mxu0 %v989
      %1068 = vmatmul.mubr.bf16.gmra.mrb[0].mxu0 %v988
      %v1069 = vpop.f32.mrb[0].mxu0
      %v1070 = vadd.f32 0.0, %v1069
      %v1071 = vpop.f32.mrb[0].mxu0
      %v1072 = vpop.f32.mrb[0].mxu0
      %v1073 = vadd.f32 0.0, %v1072
      %v1074 = vpop.f32.mrb[0].mxu0
      %1075 = vdwg.mxu0
      %1076 = vmatprep.subr.bf16.mxu0 0
      %1077 = vmatpush1.bf16.msra.mxu0 %v534
      %1078 = vmatprep.subr.bf16.mxu0 0
      %1079 = vmatpush1.bf16.msra.mxu0 %v535
      %1080 = vmatprep.subr.bf16.mxu0 0
      %1081 = vmatpush1.bf16.msra.mxu0 0
      %1082 = vmatprep.subr.bf16.mxu0 0
      %1083 = vmatpush1.bf16.msra.mxu0 0
      %1084 = vmatprep.subr.bf16.mxu0 0
      %1085 = vmatpush1.bf16.msra.mxu0 0
      %1086 = vmatprep.subr.bf16.mxu0 0
      %1087 = vmatpush1.bf16.msra.mxu0 0
      %1088 = vmatprep.subr.bf16.mxu0 0
      %1089 = vmatpush1.bf16.msra.mxu0 0
      %1090 = vmatprep.subr.bf16.mxu0 0
      %1091 = vmatpush1.bf16.msra.mxu0 0
      %1092 = vmatprep.subr.bf16.mxu0 0
      %1093 = vmatpush1.bf16.msra.mxu0 0
      %1094 = vmatprep.subr.bf16.mxu0 0
      %1095 = vmatpush1.bf16.msra.mxu0 0
      %1096 = vmatprep.subr.bf16.mxu0 0
      %1097 = vmatpush1.bf16.msra.mxu0 0
      %1098 = vmatprep.subr.bf16.mxu0 0
      %1099 = vmatpush1.bf16.msra.mxu0 0
      %1100 = vmatprep.subr.bf16.mxu0 0
      %1101 = vmatpush1.bf16.msra.mxu0 0
      %1102 = vmatprep.subr.bf16.mxu0 0
      %1103 = vmatpush1.bf16.msra.mxu0 0
      %1104 = vmatprep.subr.bf16.mxu0 0
      %1105 = vmatpush1.bf16.msra.mxu0 0
      %1106 = vmatprep.subr.bf16.mxu0 0
      %1107 = vmatpush1.bf16.msra.mxu0 0
      %1108 = vmatprep.mubr.bf16.mxu0 0
      %1109 = vmatmul.mubr.bf16.gmra.mrb[0].mxu0 %v1000
      %v1110 = vpop.f32.mrb[0].mxu0
      %v1111 = vadd.f32 %v1046, %v1110
      %v1112 = vpop.f32.mrb[0].mxu0
      %v1113 = vpop.f32.mrb[0].mxu0
      %v1114 = vadd.f32 %v1049, %v1113
      %v1115 = vpop.f32.mrb[0].mxu0
      %1116 = vmatprep.mubr.bf16.mxu0 0
      %1117 = vmatmul.mubr.bf16.gmra.mrb[0].mxu0 %v1003
      %v1118 = vpop.f32.mrb[0].mxu0
      %v1119 = vadd.f32 %v1054, %v1118
      %v1120 = vpop.f32.mrb[0].mxu0
      %v1121 = vpop.f32.mrb[0].mxu0
      %v1122 = vadd.f32 %v1057, %v1121
      %v1123 = vpop.f32.mrb[0].mxu0
      %1124 = vmatprep.mubr.bf16.mxu0 0
      %1125 = vmatmul.mubr.bf16.gmra.mrb[0].mxu0 %v1006
      %v1126 = vpop.f32.mrb[0].mxu0
      %v1127 = vadd.f32 %v1062, %v1126
      %v1128 = vpop.f32.mrb[0].mxu0
      %v1129 = vpop.f32.mrb[0].mxu0
      %v1130 = vadd.f32 %v1065, %v1129
      %v1131 = vpop.f32.mrb[0].mxu0
      %1132 = vmatprep.mubr.bf16.mxu0 0
      %1133 = vmatmul.mubr.bf16.gmra.mrb[0].mxu0 %v1009
      %v1134 = vpop.f32.mrb[0].mxu0
      %v1135 = vadd.f32 %v1070, %v1134
      %v1136 = vpop.f32.mrb[0].mxu0
      %v1137 = vpop.f32.mrb[0].mxu0
      %v1138 = vadd.f32 %v1073, %v1137
      %v1139 = vpop.f32.mrb[0].mxu0
      %1140 = vdwg.mxu0
      %v1141 = vld [vmem:[%s325] sm:$0xff]
      %v1142 = vld [vmem:[%s325 + $0x8] sm:$0xf]
      %v1143 = vld [vmem:[%s325 + $0xc] sm:$0xff]
      %v1144 = vld [vmem:[%s325 + $0x14] sm:$0xf]
      %v1145 = vld [vmem:[%s325 + $0x18] sm:$0xff]
      %v1146 = vld [vmem:[%s325 + $0x20] sm:$0xf]
      %v1147 = vld [vmem:[%s325 + $0x24] sm:$0xff]
      %v1148 = vld [vmem:[%s325 + $0x2c] sm:$0xf]
      %v1149 = vld [vmem:[%s325 + $0x30] sm:$0xff]
      %v1150 = vld [vmem:[%s325 + $0x38] sm:$0xf]
      %v1151 = vld [vmem:[%s325 + $0x3c] sm:$0xff]
      %v1152 = vld [vmem:[%s325 + $0x44] sm:$0xf]
      %v1153 = vld [vmem:[%s325 + $0x48] sm:$0xff]
      %v1154 = vld [vmem:[%s325 + $0x50] sm:$0xf]
      %v1155 = vld [vmem:[%s325 + $0x54] sm:$0xff]
      %v1156 = vld [vmem:[%s325 + $0x5c] sm:$0xf]
      %v1173 = vunpack.c.l.b16 %v1141
      %v1174 = vunpack.c.h.b16 %v1141
      %v1175 = vunpack.c.l.b16 %v1142
      %v1176 = vunpack.c.l.b16 %v1143
      %v1177 = vunpack.c.h.b16 %v1143
      %v1178 = vunpack.c.l.b16 %v1144
      %v1179 = vunpack.c.l.b16 %v1145
      %v1180 = vunpack.c.h.b16 %v1145
      %v1181 = vunpack.c.l.b16 %v1146
      %v1182 = vunpack.c.l.b16 %v1147
      %v1183 = vunpack.c.h.b16 %v1147
      %v1184 = vunpack.c.l.b16 %v1148
      %v1185 = vunpack.c.l.b16 %v1149
      %v1186 = vunpack.c.h.b16 %v1149
      %v1187 = vunpack.c.l.b16 %v1150
      %v1188 = vunpack.c.l.b16 %v1151
      %v1189 = vunpack.c.h.b16 %v1151
      %v1190 = vunpack.c.l.b16 %v1152
      %v1191 = vunpack.c.l.b16 %v1153
      %v1192 = vunpack.c.h.b16 %v1153
      %v1193 = vunpack.c.l.b16 %v1154
      %v1194 = vunpack.c.l.b16 %v1155
      %v1195 = vunpack.c.h.b16 %v1155
      %v1196 = vunpack.c.l.b16 %v1156
      %v1197 = vpack.c.b16 %v1176, %v1173
      %v1198 = vpack.c.b16 %v1177, %v1174
      %v1199 = vpack.c.b16 %v1178, %v1175
      %v1200 = vpack.c.b16 %v1182, %v1179
      %v1201 = vpack.c.b16 %v1183, %v1180
      %v1202 = vpack.c.b16 %v1184, %v1181
      %v1203 = vpack.c.b16 %v1188, %v1185
      %v1204 = vpack.c.b16 %v1189, %v1186
      %v1205 = vpack.c.b16 %v1190, %v1187
      %v1206 = vpack.c.b16 %v1194, %v1191
      %v1207 = vpack.c.b16 %v1195, %v1192
      %v1208 = vpack.c.b16 %v1196, %v1193
      %v1218 = vsel %vm554, %v1199, 0
      %v1221 = vsel %vm554, %v1202, 0
      %v1224 = vsel %vm554, %v1205, 0
      %v1227 = vsel %vm554, %v1208, 0
      %1229 = vmatprep.subr.bf16.mxu0 0
      %1230 = vmatpush1.bf16.msra.mxu0 %v518
      %1231 = vmatprep.subr.bf16.mxu0 0
      %1232 = vmatpush1.bf16.msra.mxu0 %v519
      %1233 = vmatprep.subr.bf16.mxu0 0
      %1234 = vmatpush1.bf16.msra.mxu0 %v520
      %1235 = vmatprep.subr.bf16.mxu0 0
      %1236 = vmatpush1.bf16.msra.mxu0 %v521
      %1237 = vmatprep.subr.bf16.mxu0 0
      %1238 = vmatpush1.bf16.msra.mxu0 %v522
      %1239 = vmatprep.subr.bf16.mxu0 0
      %1240 = vmatpush1.bf16.msra.mxu0 %v523
      %1241 = vmatprep.subr.bf16.mxu0 0
      %1242 = vmatpush1.bf16.msra.mxu0 %v524
      %1243 = vmatprep.subr.bf16.mxu0 0
      %1244 = vmatpush1.bf16.msra.mxu0 %v525
      %1245 = vmatprep.subr.bf16.mxu0 0
      %1246 = vmatpush1.bf16.msra.mxu0 %v526
      %1247 = vmatprep.subr.bf16.mxu0 0
      %1248 = vmatpush1.bf16.msra.mxu0 %v527
      %1249 = vmatprep.subr.bf16.mxu0 0
      %1250 = vmatpush1.bf16.msra.mxu0 %v528
      %1251 = vmatprep.subr.bf16.mxu0 0
      %1252 = vmatpush1.bf16.msra.mxu0 %v529
      %1253 = vmatprep.subr.bf16.mxu0 0
      %1254 = vmatpush1.bf16.msra.mxu0 %v530
      %1255 = vmatprep.subr.bf16.mxu0 0
      %1256 = vmatpush1.bf16.msra.mxu0 %v531
      %1257 = vmatprep.subr.bf16.mxu0 0
      %1258 = vmatpush1.bf16.msra.mxu0 %v532
      %1259 = vmatprep.subr.bf16.mxu0 0
      %1260 = vmatpush1.bf16.msra.mxu0 %v533
      %1261 = vmatprep.mubr.bf16.mxu0 %v1198
      %1262 = vmatmul.mubr.bf16.gmra.mrb[0].mxu0 %v1197
      %v1263 = vpop.f32.mrb[0].mxu0
      %v1264 = vadd.f32 0.0, %v1263
      %v1265 = vpop.f32.mrb[0].mxu0
      %v1266 = vpop.f32.mrb[0].mxu0
      %v1267 = vadd.f32 0.0, %v1266
      %v1268 = vpop.f32.mrb[0].mxu0
      %1269 = vmatprep.mubr.bf16.mxu0 %v1201
      %1270 = vmatmul.mubr.bf16.gmra.mrb[0].mxu0 %v1200
      %v1271 = vpop.f32.mrb[0].mxu0
      %v1272 = vadd.f32 0.0, %v1271
      %v1273 = vpop.f32.mrb[0].mxu0
      %v1274 = vpop.f32.mrb[0].mxu0
      %v1275 = vadd.f32 0.0, %v1274
      %v1276 = vpop.f32.mrb[0].mxu0
      %1277 = vmatprep.mubr.bf16.mxu0 %v1204
      %1278 = vmatmul.mubr.bf16.gmra.mrb[0].mxu0 %v1203
      %v1279 = vpop.f32.mrb[0].mxu0
      %v1280 = vadd.f32 0.0, %v1279
      %v1281 = vpop.f32.mrb[0].mxu0
      %v1282 = vpop.f32.mrb[0].mxu0
      %v1283 = vadd.f32 0.0, %v1282
      %v1284 = vpop.f32.mrb[0].mxu0
      %1285 = vmatprep.mubr.bf16.mxu0 %v1207
      %1286 = vmatmul.mubr.bf16.gmra.mrb[0].mxu0 %v1206
      %v1287 = vpop.f32.mrb[0].mxu0
      %v1288 = vadd.f32 0.0, %v1287
      %v1289 = vpop.f32.mrb[0].mxu0
      %v1290 = vpop.f32.mrb[0].mxu0
      %v1291 = vadd.f32 0.0, %v1290
      %v1292 = vpop.f32.mrb[0].mxu0
      %1293 = vdwg.mxu0
      %1294 = vmatprep.subr.bf16.mxu0 0
      %1295 = vmatpush1.bf16.msra.mxu0 %v534
      %1296 = vmatprep.subr.bf16.mxu0 0
      %1297 = vmatpush1.bf16.msra.mxu0 %v535
      %1298 = vmatprep.subr.bf16.mxu0 0
      %1299 = vmatpush1.bf16.msra.mxu0 0
      %1300 = vmatprep.subr.bf16.mxu0 0
      %1301 = vmatpush1.bf16.msra.mxu0 0
      %1302 = vmatprep.subr.bf16.mxu0 0
      %1303 = vmatpush1.bf16.msra.mxu0 0
      %1304 = vmatprep.subr.bf16.mxu0 0
      %1305 = vmatpush1.bf16.msra.mxu0 0
      %1306 = vmatprep.subr.bf16.mxu0 0
      %1307 = vmatpush1.bf16.msra.mxu0 0
      %1308 = vmatprep.subr.bf16.mxu0 0
      %1309 = vmatpush1.bf16.msra.mxu0 0
      %1310 = vmatprep.subr.bf16.mxu0 0
      %1311 = vmatpush1.bf16.msra.mxu0 0
      %1312 = vmatprep.subr.bf16.mxu0 0
      %1313 = vmatpush1.bf16.msra.mxu0 0
      %1314 = vmatprep.subr.bf16.mxu0 0
      %1315 = vmatpush1.bf16.msra.mxu0 0
      %1316 = vmatprep.subr.bf16.mxu0 0
      %1317 = vmatpush1.bf16.msra.mxu0 0
      %1318 = vmatprep.subr.bf16.mxu0 0
      %1319 = vmatpush1.bf16.msra.mxu0 0
      %1320 = vmatprep.subr.bf16.mxu0 0
      %1321 = vmatpush1.bf16.msra.mxu0 0
      %1322 = vmatprep.subr.bf16.mxu0 0
      %1323 = vmatpush1.bf16.msra.mxu0 0
      %1324 = vmatprep.subr.bf16.mxu0 0
      %1325 = vmatpush1.bf16.msra.mxu0 0
      %1326 = vmatprep.mubr.bf16.mxu0 0
      %1327 = vmatmul.mubr.bf16.gmra.mrb[0].mxu0 %v1218
      %v1328 = vpop.f32.mrb[0].mxu0
      %v1329 = vadd.f32 %v1264, %v1328
      %v1330 = vpop.f32.mrb[0].mxu0
      %v1331 = vpop.f32.mrb[0].mxu0
      %v1332 = vadd.f32 %v1267, %v1331
      %v1333 = vpop.f32.mrb[0].mxu0
      %1334 = vmatprep.mubr.bf16.mxu0 0
      %1335 = vmatmul.mubr.bf16.gmra.mrb[0].mxu0 %v1221
      %v1336 = vpop.f32.mrb[0].mxu0
      %v1337 = vadd.f32 %v1272, %v1336
      %v1338 = vpop.f32.mrb[0].mxu0
      %v1339 = vpop.f32.mrb[0].mxu0
      %v1340 = vadd.f32 %v1275, %v1339
      %v1341 = vpop.f32.mrb[0].mxu0
      %1342 = vmatprep.mubr.bf16.mxu0 0
      %1343 = vmatmul.mubr.bf16.gmra.mrb[0].mxu0 %v1224
      %v1344 = vpop.f32.mrb[0].mxu0
      %v1345 = vadd.f32 %v1280, %v1344
      %v1346 = vpop.f32.mrb[0].mxu0
      %v1347 = vpop.f32.mrb[0].mxu0
      %v1348 = vadd.f32 %v1283, %v1347
      %v1349 = vpop.f32.mrb[0].mxu0
      %1350 = vmatprep.mubr.bf16.mxu0 0
      %1351 = vmatmul.mubr.bf16.gmra.mrb[0].mxu0 %v1227
      %v1352 = vpop.f32.mrb[0].mxu0
      %v1353 = vadd.f32 %v1288, %v1352
      %v1354 = vpop.f32.mrb[0].mxu0
      %v1355 = vpop.f32.mrb[0].mxu0
      %v1356 = vadd.f32 %v1291, %v1355
      %v1357 = vpop.f32.mrb[0].mxu0
      %1358 = vdwg.mxu0
      %v1359 = vmax.f32 %v1111, %v1329
      %v1360 = vmax.f32 %v1114, %v1332
      %v1361 = vmax.f32 %v1119, %v1337
      %v1362 = vmax.f32 %v1122, %v1340
      %v1363 = vmax.f32 %v1127, %v1345
      %v1364 = vmax.f32 %v1130, %v1348
      %v1365 = vmax.f32 %v1135, %v1353
      %v1366 = vmax.f32 %v1138, %v1356
      %v1367 = vmax.f32 %v915, %v1359
      %v1368 = vmax.f32 %v916, %v1360
      %v1369 = vmax.f32 %v917, %v1361
      %v1370 = vmax.f32 %v918, %v1362
      %v1371 = vmax.f32 %v919, %v1363
      %v1372 = vmax.f32 %v920, %v1364
      %v1373 = vmax.f32 %v921, %v1365
      %v1374 = vmax.f32 %v922, %v1366
      %v1375 = vld [vmem:[%s5] sm:$0x1]
      %v1377 = vlaneseq
      %v1378 = vshrl.u32 %v1377, 7
      %v1379 = vsub.s32 0, %v1378
      %v1380 = vrot.slane %v1375, %v1379
      %v1382 = vadd.f32 %v1367, %v1380
      %v1383 = vadd.f32 %v1368, %v1380
      %v1384 = vadd.f32 %v1369, %v1380
      %v1385 = vadd.f32 %v1370, %v1380
      %v1386 = vadd.f32 %v1371, %v1380
      %v1387 = vadd.f32 %v1372, %v1380
      %v1388 = vadd.f32 %v1373, %v1380
      %v1389 = vadd.f32 %v1374, %v1380
      %v1390 = vmax.f32 %v1382, 0.0
      %v1391 = vmax.f32 %v1383, 0.0
      %v1392 = vmax.f32 %v1384, 0.0
      %v1393 = vmax.f32 %v1385, 0.0
      %v1394 = vmax.f32 %v1386, 0.0
      %v1395 = vmax.f32 %v1387, 0.0
      %v1396 = vmax.f32 %v1388, 0.0
      %v1397 = vmax.f32 %v1389, 0.0
      %v1398 = vpack.c.bf16 %v1391, %v1390
      %v1399 = vpack.c.bf16 %v1393, %v1392
      %v1400 = vpack.c.bf16 %v1395, %v1394
      %v1401 = vpack.c.bf16 %v1397, %v1396
      %v1406 = vunpack.c.l.b16 %v1398
      %v1407 = vunpack.c.h.b16 %v1398
      %v1408 = vunpack.c.l.b16 %v1399
      %v1409 = vunpack.c.h.b16 %v1399
      %v1410 = vunpack.c.l.b16 %v1400
      %v1411 = vunpack.c.h.b16 %v1400
      %v1412 = vunpack.c.l.b16 %v1401
      %v1413 = vunpack.c.h.b16 %v1401
      %v1414 = vpack.c.b16 %v1406, %v1406
      %v1415 = vpack.c.b16 %v1407, %v1407
      %v1416 = vpack.c.b16 %v1408, %v1408
      %v1417 = vpack.c.b16 %v1409, %v1409
      %v1418 = vpack.c.b16 %v1410, %v1410
      %v1419 = vpack.c.b16 %v1411, %v1411
      %v1420 = vpack.c.b16 %v1412, %v1412
      %v1421 = vpack.c.b16 %v1413, %v1413
      %vm1430 = vcmask 257024
      %1431 = vst.msk [vmem:[%s331] sm:$0xf] %vm1430, %v1414
      %1432 = vst.msk [vmem:[%s331 + $0x4] sm:$0xf] %vm1430, %v1415
      %1433 = vst.msk [vmem:[%s331 + $0x8] sm:$0xf] %vm1430, %v1416
      %1434 = vst.msk [vmem:[%s331 + $0xc] sm:$0xf] %vm1430, %v1417
      %1435 = vst.msk [vmem:[%s331 + $0x10] sm:$0xf] %vm1430, %v1418
      %1436 = vst.msk [vmem:[%s331 + $0x14] sm:$0xf] %vm1430, %v1419
      %1437 = vst.msk [vmem:[%s331 + $0x18] sm:$0xf] %vm1430, %v1420
      %1438 = vst.msk [vmem:[%s331 + $0x1c] sm:$0xf] %vm1430, %v1421
      %s1439 = smul.u32 8, %s17
      %p1440 = scmp.lt.s32.totalorder %s1439, 15
      %s1441 = scalar_select %p1440, %s1439, 15
      %s1442 = smul.addr %s1441, 4
      %s1443 = scalar_lea.vmem %s6, %s1442
      // Predicated region
      $region45: #{net_forward.5} parent=43 // pred_check
        %p1444 = pneg %p181
      $region46: #{net_forward.5} parent=43 // pred_check_branch
        %1446 = sbr.rel (%p1444) target = $region48
      $region47: #{net_forward.5} parent=43 // pred_region
        %s1447 = smul.u32 8, %s17
      $region48: #{net_forward.5} parent=43 // pred_fallthru
        _
    $region44: #{net_forward.5} parent=5 // pred_fallthru
      _
    %p1448 = scmp.le.s32.totalorder 2, %s12
    // Predicated region
    $region49: #{net_forward.5} parent=5 // pred_check
      %p1449 = pneg %p1448
    $region50: #{net_forward.5} parent=5 // pred_check_branch
      %1451 = sbr.rel (%p1449) target = $region52
    $region51: #{net_forward.5} parent=5 // pred_region
      %s1452 = ssub.s32 %s12, 2
      // Predicated region
      $region53: #{net_forward.5} parent=51 // pred_check
        %p1453 = pneg %p187
      $region54: #{net_forward.5} parent=51 // pred_check_branch
        %1455 = sbr.rel (%p1453) target = $region56
      $region55: #{net_forward.5} parent=51 // pred_region
        %s1456 = smul.u32 8, %s18
        %p1457 = scmp.lt.s32.totalorder %s1456, 15
        %s1458 = scalar_select %p1457, %s1456, 15
        %s1459 = smul.addr %s1458, 4
        %s1460 = scalar_lea.vmem %s6, %s1459
      $region56: #{net_forward.5} parent=51 // pred_fallthru
        _
    $region52: #{net_forward.5} parent=5 // pred_fallthru
      _
  $region6: #{net_forward.5} parent=0 // loop_footer
    %s16 = sadd.s32 1, %s12
  $region7: #{net_forward.5} parent=0 // loop_footer_branch
    %11 = sbr.rel target = $region3
  $region8: #{net_forward.5} parent=0 // loop_exit
    _

// kernel: net_forward.6
$region0: #{net_forward.6}
  #allocation0 [shape = 'u32[]', space=smem, size = 0x4, offset = 0x4, fixed_abs, tag = 'smem constant byte address 0x4 - core index']
  #allocation1 [shape = 'u32[144,128]{1,0:T(1,128)}', space=vmem, size = 0x12000, scoped, tag = 'internal scratch']
  %s0 = inlined_call_operand.vmem [shape: bf16[64,288], index: 0, kind: input, shape index: {}]
  %s1 = inlined_call_operand.vmem [shape: bf16[288,32], index: 1, kind: input, shape index: {}]
  %s2 = inlined_call_operand.vmem [shape: f32[1,32], index: 2, kind: input, shape index: {}]
  %s3 = inlined_call_operand.vmem [shape: bf16[64,32], index: 3, kind: output, shape index: {}]
  %s4 = sld [smem:[#allocation0]]
  $region45: #{net_forward.6} parent=0
    _
  %s6 = ssub.s32 1, %s4
  %s7 = scalar_select 0, %s6, %s4
  loop: start=0, step=1, limit=4
  $region2: #{net_forward.6} parent=0 // loop_pre_header
    _
  $region3: #{net_forward.6} parent=0 // loop_header
    %s9 = sphi 0, %s13
    %p10 = scmp.ge.s32.totalorder %s9, 4
    %s19 = sphi 0, %s21
    %s22 = sphi 0, %s19
    %s23 = sphi 0, %s22
    %s39 = sphi 0, %s23
    %s43 = sphi 0, %s43
    %s45 = sphi 0, %s43
    %s46 = sphi 0, %s45
    %s60 = sphi 0, %s46
    %s64 = sphi 0, %s64
    %s66 = sphi 0, %s64
    %s67 = sphi 0, %s66
    %s81 = sphi 0, %s67
    %s87 = sphi 0, %s89
    %s90 = sphi 0, %s87
    %s91 = sphi 0, %s90
    %s107 = sphi 0, %s91
  $region4: #{net_forward.6} parent=0 // loop_header_branch
    %12 = sbr.rel (%p10) target = $region8
  $region5: #{net_forward.6} parent=0 // loop_body
    %s14 = ssub.s32 %s9, 1
    %s15 = ssub.s32 %s9, 2
    %s16 = sadd.s32 %s9, 1
    %s17 = ssub.s32 %s9, %s16
    %p18 = scmp.eq.s32.totalorder %s17, 0
    %s20 = sadd.s32 %s19, 1
    %s21 = scalar_select %p18, %s19, %s20
    %p24 = pneg %p18
    %p25 = scmp.eq.s32.totalorder %s9, 1
    %p26 = por %p24, %p25
    %p27 = scmp.ne.s32.totalorder %s19, %s22
    %p28 = scmp.eq.s32.totalorder %s9, 0
    %p29 = por %p27, %p28
    %p30 = scmp.ne.s32.totalorder %s19, %s22
    %p31 = scmp.eq.s32.totalorder %s14, 1
    %p32 = por %p30, %p31
    %p33 = scmp.ne.s32.totalorder %s22, %s23
    %p34 = scmp.eq.s32.totalorder %s14, 0
    %p35 = por %p33, %p34
    %p36 = scmp.ne.s32.totalorder %s22, %s23
    %p37 = scmp.eq.s32.totalorder %s15, 1
    %p38 = por %p36, %p37
    %p40 = scmp.ne.s32.totalorder %s23, %s39
    %p41 = scmp.eq.s32.totalorder %s15, 0
    %p42 = por %p40, %p41
    %s44 = sadd.s32 %s43, 1
    %p47 = scmp.eq.s32.totalorder %s9, 1
    %p48 = scmp.ne.s32.totalorder %s43, %s45
    %p49 = scmp.eq.s32.totalorder %s9, 0
    %p50 = por %p48, %p49
    %p51 = scmp.ne.s32.totalorder %s43, %s45
    %p52 = scmp.eq.s32.totalorder %s14, 1
    %p53 = por %p51, %p52
    %p54 = scmp.ne.s32.totalorder %s45, %s46
    %p55 = scmp.eq.s32.totalorder %s14, 0
    %p56 = por %p54, %p55
    %p57 = scmp.ne.s32.totalorder %s45, %s46
    %p58 = scmp.eq.s32.totalorder %s15, 1
    %p59 = por %p57, %p58
    %p61 = scmp.ne.s32.totalorder %s46, %s60
    %p62 = scmp.eq.s32.totalorder %s15, 0
    %p63 = por %p61, %p62
    %s65 = sadd.s32 %s64, 1
    %p68 = scmp.eq.s32.totalorder %s9, 1
    %p69 = scmp.ne.s32.totalorder %s64, %s66
    %p70 = scmp.eq.s32.totalorder %s9, 0
    %p71 = por %p69, %p70
    %p72 = scmp.ne.s32.totalorder %s64, %s66
    %p73 = scmp.eq.s32.totalorder %s14, 1
    %p74 = por %p72, %p73
    %p75 = scmp.ne.s32.totalorder %s66, %s67
    %p76 = scmp.eq.s32.totalorder %s14, 0
    %p77 = por %p75, %p76
    %p78 = scmp.ne.s32.totalorder %s66, %s67
    %p79 = scmp.eq.s32.totalorder %s15, 1
    %p80 = por %p78, %p79
    %p82 = scmp.ne.s32.totalorder %s67, %s81
    %p83 = scmp.eq.s32.totalorder %s15, 0
    %p84 = por %p82, %p83
    %s85 = ssub.s32 %s9, %s16
    %p86 = scmp.eq.s32.totalorder %s85, 0
    %s88 = sadd.s32 %s87, 1
    %s89 = scalar_select %p86, %s87, %s88
    %p92 = pneg %p86
    %p93 = scmp.eq.s32.totalorder %s9, 1
    %p94 = por %p92, %p93
    %p95 = scmp.ne.s32.totalorder %s87, %s90
    %p96 = scmp.eq.s32.totalorder %s9, 0
    %p97 = por %p95, %p96
    %p98 = scmp.ne.s32.totalorder %s87, %s90
    %p99 = scmp.eq.s32.totalorder %s14, 1
    %p100 = por %p98, %p99
    %p101 = scmp.ne.s32.totalorder %s90, %s91
    %p102 = scmp.eq.s32.totalorder %s14, 0
    %p103 = por %p101, %p102
    %p104 = scmp.ne.s32.totalorder %s90, %s91
    %p105 = scmp.eq.s32.totalorder %s15, 1
    %p106 = por %p104, %p105
    %p108 = scmp.ne.s32.totalorder %s91, %s107
    %p109 = scmp.eq.s32.totalorder %s15, 0
    %p110 = por %p108, %p109
    %p111 = scmp.le.s32.totalorder 1, %s9
    %p112 = scmp.lt.s32.totalorder %s9, 3
    %p113 = pnand %p111, %p112
    %p114 = pneg %p113
    // Predicated region
    $region9: #{net_forward.6} parent=5 // pred_check
      _
    $region10: #{net_forward.6} parent=5 // pred_check_branch
      %116 = sbr.rel (%p113) target = $region12
    $region11: #{net_forward.6} parent=5 // pred_region
      %s117 = ssub.s32 %s9, 1
      // Predicated region
      $region13: #{net_forward.6} parent=11 // pred_check
        %p118 = pneg %p56
      $region14: #{net_forward.6} parent=11 // pred_check_branch
        %120 = sbr.rel (%p118) target = $region16
      $region15: #{net_forward.6} parent=11 // pred_region
        _
      $region16: #{net_forward.6} parent=11 // pred_fallthru
        _
      // Predicated region
      $region17: #{net_forward.6} parent=11 // pred_check
        %p121 = pneg %p77
      $region18: #{net_forward.6} parent=11 // pred_check_branch
        %123 = sbr.rel (%p121) target = $region20
      $region19: #{net_forward.6} parent=11 // pred_region
        _
      $region20: #{net_forward.6} parent=11 // pred_fallthru
        _
    $region12: #{net_forward.6} parent=5 // pred_fallthru
      _
    %p124 = scmp.lt.s32.totalorder %s9, 2
    // Predicated region
    $region21: #{net_forward.6} parent=5 // pred_check
      %p125 = pneg %p124
    $region22: #{net_forward.6} parent=5 // pred_check_branch
      %127 = sbr.rel (%p125) target = $region24
    $region23: #{net_forward.6} parent=5 // pred_region
      // Predicated region
      $region25: #{net_forward.6} parent=23 // pred_check
        %p128 = pneg %p29
      $region26: #{net_forward.6} parent=23 // pred_check_branch
        %130 = sbr.rel (%p128) target = $region28
      $region27: #{net_forward.6} parent=23 // pred_region
        %s131 = smul.u32 4, %s9
        %p132 = scmp.lt.s32.totalorder %s131, 7
        %s133 = scalar_select %p132, %s131, 7
        %s134 = smul.addr %s133, 3
        %s135 = smul.addr %s134, 4
        %s136 = scalar_lea.vmem %s0, %s135
        %s137 = smul.u32 4, %s9
      $region28: #{net_forward.6} parent=23 // pred_fallthru
        _
    $region24: #{net_forward.6} parent=5 // pred_fallthru
      _
    %p138 = scmp.le.s32.totalorder 1, %s9
    %p139 = scmp.lt.s32.totalorder %s9, 3
    %p140 = pnand %p138, %p139
    %p141 = pneg %p140
    // Predicated region
    $region29: #{net_forward.6} parent=5 // pred_check
      _
    $region30: #{net_forward.6} parent=5 // pred_check_branch
      %143 = sbr.rel (%p140) target = $region32
    $region31: #{net_forward.6} parent=5 // pred_region
      %s144 = ssub.s32 %s9, 1
      %s145 = smul.u32 4, %s14
      %p146 = scmp.lt.s32.totalorder %s145, 7
      %s147 = scalar_select %p146, %s145, 7
      %s148 = smul.addr %s147, 3
      %s149 = smul.addr %s148, 4
      %s150 = scalar_lea.vmem %s0, %s149
      %p151 = pneg %p35
      %p152 = pneg %p32
      %p153 = pneg %p56
      %p154 = pneg %p53
      %p155 = pneg %p77
      %p156 = pneg %p74
      %p157 = pneg %p103
      %p158 = pneg %p100
      %s159 = smul.u32 4, %s14
      %p160 = scmp.lt.s32.totalorder %s159, 7
      %s161 = scalar_select %p160, %s159, 7
      %s162 = smul.addr %s161, 4
      %s163 = scalar_lea.vmem %s3, %s162
      %s164 = smul.u32 4, %s14
      %p165 = scmp.lt.s32.totalorder %s164, 7
      %s166 = scalar_select %p165, %s164, 7
      %s167 = smul.addr %s166, 3
      %s168 = smul.addr %s167, 4
      %s169 = scalar_lea.vmem %s0, %s168
      %s170 = smul.u32 4, %s14
      %s171 = smul.u32 4, %s14
      %p172 = scmp.lt.s32.totalorder %s171, 7
      %s173 = scalar_select %p172, %s171, 7
      %s174 = smul.addr %s173, 4
      %s175 = scalar_lea.vmem %s3, %s174
      %s176 = smul.u32 4, %s14
      %v178 = vld [vmem:[%s169] sm:$0xff]
      %v179 = vld [vmem:[%s169 + $0x8] sm:$0xf]
      %v180 = vld [vmem:[%s169 + $0xc] sm:$0xff]
      %v181 = vld [vmem:[%s169 + $0x14] sm:$0xf]
      %v182 = vld [vmem:[%s169 + $0x18] sm:$0xff]
      %v183 = vld [vmem:[%s169 + $0x20] sm:$0xf]
      %v184 = vld [vmem:[%s169 + $0x24] sm:$0xff]
      %v185 = vld [vmem:[%s169 + $0x2c] sm:$0xf]
      %v186 = vld [vmem:[%s1] sm:$0xf]
      %v187 = vld [vmem:[%s1 + $0x4] sm:$0xf]
      %v188 = vld [vmem:[%s1 + $0x8] sm:$0xf]
      %v189 = vld [vmem:[%s1 + $0xc] sm:$0xf]
      %v190 = vld [vmem:[%s1 + $0x10] sm:$0xf]
      %v191 = vld [vmem:[%s1 + $0x14] sm:$0xf]
      %v192 = vld [vmem:[%s1 + $0x18] sm:$0xf]
      %v193 = vld [vmem:[%s1 + $0x1c] sm:$0xf]
      %v194 = vld [vmem:[%s1 + $0x20] sm:$0xf]
      %v195 = vld [vmem:[%s1 + $0x24] sm:$0xf]
      %v196 = vld [vmem:[%s1 + $0x28] sm:$0xf]
      %v197 = vld [vmem:[%s1 + $0x2c] sm:$0xf]
      %v198 = vld [vmem:[%s1 + $0x30] sm:$0xf]
      %v199 = vld [vmem:[%s1 + $0x34] sm:$0xf]
      %v200 = vld [vmem:[%s1 + $0x38] sm:$0xf]
      %v201 = vld [vmem:[%s1 + $0x3c] sm:$0xf]
      %v202 = vld [vmem:[%s1 + $0x40] sm:$0xf]
      %v203 = vld [vmem:[%s1 + $0x44] sm:$0xf]
      %v204 = vld [vmem:[%s1 + $0x48] sm:$0xf]
      %v205 = vld [vmem:[%s1 + $0x4c] sm:$0xf]
      %v206 = vld [vmem:[%s1 + $0x50] sm:$0xf]
      %v207 = vld [vmem:[%s1 + $0x54] sm:$0xf]
      %v208 = vld [vmem:[%s1 + $0x58] sm:$0xf]
      %v209 = vld [vmem:[%s1 + $0x5c] sm:$0xf]
      %v210 = vld [vmem:[%s1 + $0x60] sm:$0xf]
      %v211 = vld [vmem:[%s1 + $0x64] sm:$0xf]
      %v212 = vld [vmem:[%s1 + $0x68] sm:$0xf]
      %v213 = vld [vmem:[%s1 + $0x6c] sm:$0xf]
      %v214 = vld [vmem:[%s1 + $0x70] sm:$0xf]
      %v215 = vld [vmem:[%s1 + $0x74] sm:$0xf]
      %v216 = vld [vmem:[%s1 + $0x78] sm:$0xf]
      %v217 = vld [vmem:[%s1 + $0x7c] sm:$0xf]
      %v218 = vld [vmem:[%s1 + $0x80] sm:$0xf]
      %v219 = vld [vmem:[%s1 + $0x84] sm:$0xf]
      %v220 = vld [vmem:[%s1 + $0x88] sm:$0xf]
      %v221 = vld [vmem:[%s1 + $0x8c] sm:$0xf]
      %v222 = vld [vmem:[%s2] sm:$0x1]
      %v224 = vlaneseq
      %v225 = vshrl.u32 %v224, 7
      %v226 = vsub.s32 0, %v225
      %v227 = vrot.slane %v222, %v226
      %v237 = vunpack.c.l.b16 %v178
      %v238 = vunpack.c.h.b16 %v178
      %v239 = vunpack.c.l.b16 %v179
      %v240 = vunpack.c.l.b16 %v180
      %v241 = vunpack.c.h.b16 %v180
      %v242 = vunpack.c.l.b16 %v181
      %v243 = vunpack.c.l.b16 %v182
      %v244 = vunpack.c.h.b16 %v182
      %v245 = vunpack.c.l.b16 %v183
      %v246 = vunpack.c.l.b16 %v184
      %v247 = vunpack.c.h.b16 %v184
      %v248 = vunpack.c.l.b16 %v185
      %v249 = vpack.c.b16 %v240, %v237
      %v250 = vpack.c.b16 %v241, %v238
      %v251 = vpack.c.b16 %v242, %v239
      %v252 = vpack.c.b16 %v246, %v243
      %v253 = vpack.c.b16 %v247, %v244
      %v254 = vpack.c.b16 %v248, %v245
      %v295 = vunpack.c.l.b16 %v186
      %v296 = vunpack.c.l.b16 %v187
      %v297 = vunpack.c.l.b16 %v188
      %v298 = vunpack.c.l.b16 %v189
      %v299 = vunpack.c.l.b16 %v190
      %v300 = vunpack.c.l.b16 %v191
      %v301 = vunpack.c.l.b16 %v192
      %v302 = vunpack.c.l.b16 %v193
      %v303 = vunpack.c.l.b16 %v194
      %v304 = vunpack.c.l.b16 %v195
      %v305 = vunpack.c.l.b16 %v196
      %v306 = vunpack.c.l.b16 %v197
      %v307 = vunpack.c.l.b16 %v198
      %v308 = vunpack.c.l.b16 %v199
      %v309 = vunpack.c.l.b16 %v200
      %v310 = vunpack.c.l.b16 %v201
      %v311 = vunpack.c.l.b16 %v202
      %v312 = vunpack.c.l.b16 %v203
      %v313 = vunpack.c.l.b16 %v204
      %v314 = vunpack.c.l.b16 %v205
      %v315 = vunpack.c.l.b16 %v206
      %v316 = vunpack.c.l.b16 %v207
      %v317 = vunpack.c.l.b16 %v208
      %v318 = vunpack.c.l.b16 %v209
      %v319 = vunpack.c.l.b16 %v210
      %v320 = vunpack.c.l.b16 %v211
      %v321 = vunpack.c.l.b16 %v212
      %v322 = vunpack.c.l.b16 %v213
      %v323 = vunpack.c.l.b16 %v214
      %v324 = vunpack.c.l.b16 %v215
      %v325 = vunpack.c.l.b16 %v216
      %v326 = vunpack.c.l.b16 %v217
      %v327 = vunpack.c.l.b16 %v218
      %v328 = vunpack.c.l.b16 %v219
      %v329 = vunpack.c.l.b16 %v220
      %v330 = vunpack.c.l.b16 %v221
      %v331 = vpack.c.b16 %v296, %v295
      %v332 = vpack.c.b16 %v298, %v297
      %v333 = vpack.c.b16 %v300, %v299
      %v334 = vpack.c.b16 %v302, %v301
      %v335 = vpack.c.b16 %v304, %v303
      %v336 = vpack.c.b16 %v306, %v305
      %v337 = vpack.c.b16 %v308, %v307
      %v338 = vpack.c.b16 %v310, %v309
      %v339 = vpack.c.b16 %v312, %v311
      %v340 = vpack.c.b16 %v314, %v313
      %v341 = vpack.c.b16 %v316, %v315
      %v342 = vpack.c.b16 %v318, %v317
      %v343 = vpack.c.b16 %v320, %v319
      %v344 = vpack.c.b16 %v322, %v321
      %v345 = vpack.c.b16 %v324, %v323
      %v346 = vpack.c.b16 %v326, %v325
      %v347 = vpack.c.b16 %v328, %v327
      %v348 = vpack.c.b16 %v330, %v329
      %vm367 = vcmask 261120
      %v369 = vsel %vm367, %v251, 0
      %v372 = vsel %vm367, %v254, 0
      %374 = vmatprep.subr.bf16.mxu0 0
      %375 = vmatpush1.bf16.msra.mxu0 %v331
      %376 = vmatprep.subr.bf16.mxu0 0
      %377 = vmatpush1.bf16.msra.mxu0 %v332
      %378 = vmatprep.subr.bf16.mxu0 0
      %379 = vmatpush1.bf16.msra.mxu0 %v333
      %380 = vmatprep.subr.bf16.mxu0 0
      %381 = vmatpush1.bf16.msra.mxu0 %v334
      %382 = vmatprep.subr.bf16.mxu0 0
      %383 = vmatpush1.bf16.msra.mxu0 %v335
      %384 = vmatprep.subr.bf16.mxu0 0
      %385 = vmatpush1.bf16.msra.mxu0 %v336
      %386 = vmatprep.subr.bf16.mxu0 0
      %387 = vmatpush1.bf16.msra.mxu0 %v337
      %388 = vmatprep.subr.bf16.mxu0 0
      %389 = vmatpush1.bf16.msra.mxu0 %v338
      %390 = vmatprep.subr.bf16.mxu0 0
      %391 = vmatpush1.bf16.msra.mxu0 %v339
      %392 = vmatprep.subr.bf16.mxu0 0
      %393 = vmatpush1.bf16.msra.mxu0 %v340
      %394 = vmatprep.subr.bf16.mxu0 0
      %395 = vmatpush1.bf16.msra.mxu0 %v341
      %396 = vmatprep.subr.bf16.mxu0 0
      %397 = vmatpush1.bf16.msra.mxu0 %v342
      %398 = vmatprep.subr.bf16.mxu0 0
      %399 = vmatpush1.bf16.msra.mxu0 %v343
      %400 = vmatprep.subr.bf16.mxu0 0
      %401 = vmatpush1.bf16.msra.mxu0 %v344
      %402 = vmatprep.subr.bf16.mxu0 0
      %403 = vmatpush1.bf16.msra.mxu0 %v345
      %404 = vmatprep.subr.bf16.mxu0 0
      %405 = vmatpush1.bf16.msra.mxu0 %v346
      %406 = vmatprep.mubr.bf16.mxu0 %v250
      %407 = vmatmul.mubr.bf16.gmra.mrb[0].mxu0 %v249
      %v408 = vpop.f32.mrb[0].mxu0
      %v409 = vadd.f32 %v227, %v408
      %v410 = vpop.f32.mrb[0].mxu0
      %v411 = vpop.f32.mrb[0].mxu0
      %v412 = vadd.f32 %v227, %v411
      %v413 = vpop.f32.mrb[0].mxu0
      %414 = vmatprep.mubr.bf16.mxu0 %v253
      %415 = vmatmul.mubr.bf16.gmra.mrb[0].mxu0 %v252
      %v416 = vpop.f32.mrb[0].mxu0
      %v417 = vadd.f32 %v227, %v416
      %v418 = vpop.f32.mrb[0].mxu0
      %v419 = vpop.f32.mrb[0].mxu0
      %v420 = vadd.f32 %v227, %v419
      %v421 = vpop.f32.mrb[0].mxu0
      %422 = vdwg.mxu0
      %423 = vmatprep.subr.bf16.mxu0 0
      %424 = vmatpush1.bf16.msra.mxu0 %v347
      %425 = vmatprep.subr.bf16.mxu0 0
      %426 = vmatpush1.bf16.msra.mxu0 %v348
      %427 = vmatprep.subr.bf16.mxu0 0
      %428 = vmatpush1.bf16.msra.mxu0 0
      %429 = vmatprep.subr.bf16.mxu0 0
      %430 = vmatpush1.bf16.msra.mxu0 0
      %431 = vmatprep.subr.bf16.mxu0 0
      %432 = vmatpush1.bf16.msra.mxu0 0
      %433 = vmatprep.subr.bf16.mxu0 0
      %434 = vmatpush1.bf16.msra.mxu0 0
      %435 = vmatprep.subr.bf16.mxu0 0
      %436 = vmatpush1.bf16.msra.mxu0 0
      %437 = vmatprep.subr.bf16.mxu0 0
      %438 = vmatpush1.bf16.msra.mxu0 0
      %439 = vmatprep.subr.bf16.mxu0 0
      %440 = vmatpush1.bf16.msra.mxu0 0
      %441 = vmatprep.subr.bf16.mxu0 0
      %442 = vmatpush1.bf16.msra.mxu0 0
      %443 = vmatprep.subr.bf16.mxu0 0
      %444 = vmatpush1.bf16.msra.mxu0 0
      %445 = vmatprep.subr.bf16.mxu0 0
      %446 = vmatpush1.bf16.msra.mxu0 0
      %447 = vmatprep.subr.bf16.mxu0 0
      %448 = vmatpush1.bf16.msra.mxu0 0
      %449 = vmatprep.subr.bf16.mxu0 0
      %450 = vmatpush1.bf16.msra.mxu0 0
      %451 = vmatprep.subr.bf16.mxu0 0
      %452 = vmatpush1.bf16.msra.mxu0 0
      %453 = vmatprep.subr.bf16.mxu0 0
      %454 = vmatpush1.bf16.msra.mxu0 0
      %455 = vmatprep.mubr.bf16.mxu0 0
      %456 = vmatmul.mubr.bf16.gmra.mrb[0].mxu0 %v369
      %v457 = vpop.f32.mrb[0].mxu0
      %v458 = vadd.f32 %v409, %v457
      %v459 = vpop.f32.mrb[0].mxu0
      %v460 = vpop.f32.mrb[0].mxu0
      %v461 = vadd.f32 %v412, %v460
      %v462 = vpop.f32.mrb[0].mxu0
      %463 = vmatprep.mubr.bf16.mxu0 0
      %464 = vmatmul.mubr.bf16.gmra.mrb[0].mxu0 %v372
      %v465 = vpop.f32.mrb[0].mxu0
      %v466 = vadd.f32 %v417, %v465
      %v467 = vpop.f32.mrb[0].mxu0
      %v468 = vpop.f32.mrb[0].mxu0
      %v469 = vadd.f32 %v420, %v468
      %v470 = vpop.f32.mrb[0].mxu0
      %471 = vdwg.mxu0
      %v472 = vmax.f32 %v458, 0.0
      %v473 = vmax.f32 %v461, 0.0
      %v474 = vmax.f32 %v466, 0.0
      %v475 = vmax.f32 %v469, 0.0
      %v476 = vpack.c.bf16 %v473, %v472
      %v477 = vpack.c.bf16 %v475, %v474
      %v480 = vunpack.c.l.b16 %v476
      %v481 = vunpack.c.h.b16 %v476
      %v482 = vunpack.c.l.b16 %v477
      %v483 = vunpack.c.h.b16 %v477
      %v484 = vpack.c.b16 %v480, %v480
      %v485 = vpack.c.b16 %v481, %v481
      %v486 = vpack.c.b16 %v482, %v482
      %v487 = vpack.c.b16 %v483, %v483
      %vm492 = vcmask 257024
      %493 = vst.msk [vmem:[%s175] sm:$0xf] %vm492, %v484
      %494 = vst.msk [vmem:[%s175 + $0x4] sm:$0xf] %vm492, %v485
      %495 = vst.msk [vmem:[%s175 + $0x8] sm:$0xf] %vm492, %v486
      %496 = vst.msk [vmem:[%s175 + $0xc] sm:$0xf] %vm492, %v487
      %s497 = smul.u32 4, %s14
      %p498 = scmp.lt.s32.totalorder %s497, 7
      %s499 = scalar_select %p498, %s497, 7
      %s500 = smul.addr %s499, 4
      %s501 = scalar_lea.vmem %s3, %s500
      // Predicated region
      $region33: #{net_forward.6} parent=31 // pred_check
        %p502 = pneg %p100
      $region34: #{net_forward.6} parent=31 // pred_check_branch
        %504 = sbr.rel (%p502) target = $region36
      $region35: #{net_forward.6} parent=31 // pred_region
        %s505 = smul.u32 4, %s14
      $region36: #{net_forward.6} parent=31 // pred_fallthru
        _
    $region32: #{net_forward.6} parent=5 // pred_fallthru
      _
    %p506 = scmp.le.s32.totalorder 2, %s9
    // Predicated region
    $region37: #{net_forward.6} parent=5 // pred_check
      %p507 = pneg %p506
    $region38: #{net_forward.6} parent=5 // pred_check_branch
      %509 = sbr.rel (%p507) target = $region40
    $region39: #{net_forward.6} parent=5 // pred_region
      %s510 = ssub.s32 %s9, 2
      // Predicated region
      $region41: #{net_forward.6} parent=39 // pred_check
        %p511 = pneg %p106
      $region42: #{net_forward.6} parent=39 // pred_check_branch
        %513 = sbr.rel (%p511) target = $region44
      $region43: #{net_forward.6} parent=39 // pred_region
        %s514 = smul.u32 4, %s15
        %p515 = scmp.lt.s32.totalorder %s514, 7
        %s516 = scalar_select %p515, %s514, 7
        %s517 = smul.addr %s516, 4
        %s518 = scalar_lea.vmem %s3, %s517
      $region44: #{net_forward.6} parent=39 // pred_fallthru
        _
    $region40: #{net_forward.6} parent=5 // pred_fallthru
      _
  $region6: #{net_forward.6} parent=0 // loop_footer
    %s13 = sadd.s32 1, %s9
  $region7: #{net_forward.6} parent=0 // loop_footer_branch
    %8 = sbr.rel target = $region3
  $region8: #{net_forward.6} parent=0 // loop_exit
    _

// kernel: net_forward.7
$region0: #{net_forward.7}
  #allocation0 [shape = 'u32[]', space=smem, size = 0x4, offset = 0x4, fixed_abs, tag = 'smem constant byte address 0x4 - core index']
  #allocation1 [shape = 'u32[144,128]{1,0:T(1,128)}', space=vmem, size = 0x12000, scoped, tag = 'internal scratch']
  %s0 = inlined_call_operand.vmem [shape: bf16[16,800], index: 0, kind: input, shape index: {}]
  %s1 = inlined_call_operand.vmem [shape: bf16[800,128], index: 1, kind: input, shape index: {}]
  %s2 = inlined_call_operand.vmem [shape: f32[1,128], index: 2, kind: input, shape index: {}]
  %s3 = inlined_call_operand.vmem [shape: bf16[128,128], index: 3, kind: input, shape index: {}]
  %s4 = inlined_call_operand.vmem [shape: f32[1,128], index: 4, kind: input, shape index: {}]
  %s5 = inlined_call_operand.vmem [shape: f32[16,128], index: 5, kind: output, shape index: {}]
  %s6 = sld [smem:[#allocation0]]
  $region30: #{net_forward.7} parent=0
    _
  %s8 = ssub.s32 1, %s6
  %s9 = scalar_select 0, %s8, %s6
  // Predicated region
  $region2: #{net_forward.7} parent=0 // pred_check
    _
  $region3: #{net_forward.7} parent=0 // pred_check_branch
    %11 = sbr.rel (0) target = $region5
  $region4: #{net_forward.7} parent=0 // pred_region
    _
  $region5: #{net_forward.7} parent=0 // pred_fallthru
    _
  // Predicated region
  $region6: #{net_forward.7} parent=0 // pred_check
    _
  $region7: #{net_forward.7} parent=0 // pred_check_branch
    %13 = sbr.rel (0) target = $region9
  $region8: #{net_forward.7} parent=0 // pred_region
    _
  $region9: #{net_forward.7} parent=0 // pred_fallthru
    _
  // Predicated region
  $region10: #{net_forward.7} parent=0 // pred_check
    _
  $region11: #{net_forward.7} parent=0 // pred_check_branch
    %15 = sbr.rel (0) target = $region13
  $region12: #{net_forward.7} parent=0 // pred_region
    _
  $region13: #{net_forward.7} parent=0 // pred_fallthru
    _
  // Predicated region
  $region14: #{net_forward.7} parent=0 // pred_check
    _
  $region15: #{net_forward.7} parent=0 // pred_check_branch
    %17 = sbr.rel (0) target = $region17
  $region16: #{net_forward.7} parent=0 // pred_region
    _
  $region17: #{net_forward.7} parent=0 // pred_fallthru
    _
  // Predicated region
  $region18: #{net_forward.7} parent=0 // pred_check
    _
  $region19: #{net_forward.7} parent=0 // pred_check_branch
    %19 = sbr.rel (0) target = $region21
  $region20: #{net_forward.7} parent=0 // pred_region
    _
  $region21: #{net_forward.7} parent=0 // pred_fallthru
    _
  %v21 = vld [vmem:[%s0] sm:$0xff]
  %v22 = vld [vmem:[%s0 + $0x8] sm:$0xff]
  %v23 = vld [vmem:[%s0 + $0x10] sm:$0xff]
  %v24 = vld [vmem:[%s0 + $0x18] sm:$0xf]
  %v25 = vld [vmem:[%s0 + $0x1c] sm:$0xff]
  %v26 = vld [vmem:[%s0 + $0x24] sm:$0xff]
  %v27 = vld [vmem:[%s0 + $0x2c] sm:$0xff]
  %v28 = vld [vmem:[%s0 + $0x34] sm:$0xf]
  %v29 = vld [vmem:[%s1] sm:$0xf]
  %v30 = vld [vmem:[%s1 + $0x4] sm:$0xf]
  %v31 = vld [vmem:[%s1 + $0x8] sm:$0xf]
  %v32 = vld [vmem:[%s1 + $0xc] sm:$0xf]
  %v33 = vld [vmem:[%s1 + $0x10] sm:$0xf]
  %v34 = vld [vmem:[%s1 + $0x14] sm:$0xf]
  %v35 = vld [vmem:[%s1 + $0x18] sm:$0xf]
  %v36 = vld [vmem:[%s1 + $0x1c] sm:$0xf]
  %v37 = vld [vmem:[%s1 + $0x20] sm:$0xf]
  %v38 = vld [vmem:[%s1 + $0x24] sm:$0xf]
  %v39 = vld [vmem:[%s1 + $0x28] sm:$0xf]
  %v40 = vld [vmem:[%s1 + $0x2c] sm:$0xf]
  %v41 = vld [vmem:[%s1 + $0x30] sm:$0xf]
  %v42 = vld [vmem:[%s1 + $0x34] sm:$0xf]
  %v43 = vld [vmem:[%s1 + $0x38] sm:$0xf]
  %v44 = vld [vmem:[%s1 + $0x3c] sm:$0xf]
  %v45 = vld [vmem:[%s1 + $0x40] sm:$0xf]
  %v46 = vld [vmem:[%s1 + $0x44] sm:$0xf]
  %v47 = vld [vmem:[%s1 + $0x48] sm:$0xf]
  %v48 = vld [vmem:[%s1 + $0x4c] sm:$0xf]
  %v49 = vld [vmem:[%s1 + $0x50] sm:$0xf]
  %v50 = vld [vmem:[%s1 + $0x54] sm:$0xf]
  %v51 = vld [vmem:[%s1 + $0x58] sm:$0xf]
  %v52 = vld [vmem:[%s1 + $0x5c] sm:$0xf]
  %v53 = vld [vmem:[%s1 + $0x60] sm:$0xf]
  %v54 = vld [vmem:[%s1 + $0x64] sm:$0xf]
  %v55 = vld [vmem:[%s1 + $0x68] sm:$0xf]
  %v56 = vld [vmem:[%s1 + $0x6c] sm:$0xf]
  %v57 = vld [vmem:[%s1 + $0x70] sm:$0xf]
  %v58 = vld [vmem:[%s1 + $0x74] sm:$0xf]
  %v59 = vld [vmem:[%s1 + $0x78] sm:$0xf]
  %v60 = vld [vmem:[%s1 + $0x7c] sm:$0xf]
  %v61 = vld [vmem:[%s1 + $0x80] sm:$0xf]
  %v62 = vld [vmem:[%s1 + $0x84] sm:$0xf]
  %v63 = vld [vmem:[%s1 + $0x88] sm:$0xf]
  %v64 = vld [vmem:[%s1 + $0x8c] sm:$0xf]
  %v65 = vld [vmem:[%s1 + $0x90] sm:$0xf]
  %v66 = vld [vmem:[%s1 + $0x94] sm:$0xf]
  %v67 = vld [vmem:[%s1 + $0x98] sm:$0xf]
  %v68 = vld [vmem:[%s1 + $0x9c] sm:$0xf]
  %v69 = vld [vmem:[%s1 + $0xa0] sm:$0xf]
  %v70 = vld [vmem:[%s1 + $0xa4] sm:$0xf]
  %v71 = vld [vmem:[%s1 + $0xa8] sm:$0xf]
  %v72 = vld [vmem:[%s1 + $0xac] sm:$0xf]
  %v73 = vld [vmem:[%s1 + $0xb0] sm:$0xf]
  %v74 = vld [vmem:[%s1 + $0xb4] sm:$0xf]
  %v75 = vld [vmem:[%s1 + $0xb8] sm:$0xf]
  %v76 = vld [vmem:[%s1 + $0xbc] sm:$0xf]
  %v77 = vld [vmem:[%s1 + $0xc0] sm:$0xf]
  %v78 = vld [vmem:[%s1 + $0xc4] sm:$0xf]
  %v79 = vld [vmem:[%s1 + $0xc8] sm:$0xf]
  %v80 = vld [vmem:[%s1 + $0xcc] sm:$0xf]
  %v81 = vld [vmem:[%s1 + $0xd0] sm:$0xf]
  %v82 = vld [vmem:[%s1 + $0xd4] sm:$0xf]
  %v83 = vld [vmem:[%s1 + $0xd8] sm:$0xf]
  %v84 = vld [vmem:[%s1 + $0xdc] sm:$0xf]
  %v85 = vld [vmem:[%s1 + $0xe0] sm:$0xf]
  %v86 = vld [vmem:[%s1 + $0xe4] sm:$0xf]
  %v87 = vld [vmem:[%s1 + $0xe8] sm:$0xf]
  %v88 = vld [vmem:[%s1 + $0xec] sm:$0xf]
  %v89 = vld [vmem:[%s1 + $0xf0] sm:$0xf]
  %v90 = vld [vmem:[%s1 + $0xf4] sm:$0xf]
  %v91 = vld [vmem:[%s1 + $0xf8] sm:$0xf]
  %v92 = vld [vmem:[%s1 + $0xfc] sm:$0xf]
  %v93 = vld [vmem:[%s1 + $0x100] sm:$0xf]
  %v94 = vld [vmem:[%s1 + $0x104] sm:$0xf]
  %v95 = vld [vmem:[%s1 + $0x108] sm:$0xf]
  %v96 = vld [vmem:[%s1 + $0x10c] sm:$0xf]
  %v97 = vld [vmem:[%s1 + $0x110] sm:$0xf]
  %v98 = vld [vmem:[%s1 + $0x114] sm:$0xf]
  %v99 = vld [vmem:[%s1 + $0x118] sm:$0xf]
  %v100 = vld [vmem:[%s1 + $0x11c] sm:$0xf]
  %v101 = vld [vmem:[%s1 + $0x120] sm:$0xf]
  %v102 = vld [vmem:[%s1 + $0x124] sm:$0xf]
  %v103 = vld [vmem:[%s1 + $0x128] sm:$0xf]
  %v104 = vld [vmem:[%s1 + $0x12c] sm:$0xf]
  %v105 = vld [vmem:[%s1 + $0x130] sm:$0xf]
  %v106 = vld [vmem:[%s1 + $0x134] sm:$0xf]
  %v107 = vld [vmem:[%s1 + $0x138] sm:$0xf]
  %v108 = vld [vmem:[%s1 + $0x13c] sm:$0xf]
  %v109 = vld [vmem:[%s1 + $0x140] sm:$0xf]
  %v110 = vld [vmem:[%s1 + $0x144] sm:$0xf]
  %v111 = vld [vmem:[%s1 + $0x148] sm:$0xf]
  %v112 = vld [vmem:[%s1 + $0x14c] sm:$0xf]
  %v113 = vld [vmem:[%s1 + $0x150] sm:$0xf]
  %v114 = vld [vmem:[%s1 + $0x154] sm:$0xf]
  %v115 = vld [vmem:[%s1 + $0x158] sm:$0xf]
  %v116 = vld [vmem:[%s1 + $0x15c] sm:$0xf]
  %v117 = vld [vmem:[%s1 + $0x160] sm:$0xf]
  %v118 = vld [vmem:[%s1 + $0x164] sm:$0xf]
  %v119 = vld [vmem:[%s1 + $0x168] sm:$0xf]
  %v120 = vld [vmem:[%s1 + $0x16c] sm:$0xf]
  %v121 = vld [vmem:[%s1 + $0x170] sm:$0xf]
  %v122 = vld [vmem:[%s1 + $0x174] sm:$0xf]
  %v123 = vld [vmem:[%s1 + $0x178] sm:$0xf]
  %v124 = vld [vmem:[%s1 + $0x17c] sm:$0xf]
  %v125 = vld [vmem:[%s1 + $0x180] sm:$0xf]
  %v126 = vld [vmem:[%s1 + $0x184] sm:$0xf]
  %v127 = vld [vmem:[%s1 + $0x188] sm:$0xf]
  %v128 = vld [vmem:[%s1 + $0x18c] sm:$0xf]
  %v129 = vld [vmem:[%s2] sm:$0x1]
  %v131 = vlaneseq
  %v132 = vshrl.u32 %v131, 7
  %v133 = vsub.s32 0, %v132
  %v134 = vrot.slane %v129, %v133
  %v144 = vunpack.c.l.b16 %v21
  %v145 = vunpack.c.h.b16 %v21
  %v146 = vunpack.c.l.b16 %v22
  %v147 = vunpack.c.h.b16 %v22
  %v148 = vunpack.c.l.b16 %v23
  %v149 = vunpack.c.h.b16 %v23
  %v150 = vunpack.c.l.b16 %v24
  %v151 = vunpack.c.l.b16 %v25
  %v152 = vunpack.c.h.b16 %v25
  %v153 = vunpack.c.l.b16 %v26
  %v154 = vunpack.c.h.b16 %v26
  %v155 = vunpack.c.l.b16 %v27
  %v156 = vunpack.c.h.b16 %v27
  %v157 = vunpack.c.l.b16 %v28
  %v158 = vpack.c.b16 %v151, %v144
  %v159 = vpack.c.b16 %v152, %v145
  %v160 = vpack.c.b16 %v153, %v146
  %v161 = vpack.c.b16 %v154, %v147
  %v162 = vpack.c.b16 %v155, %v148
  %v163 = vpack.c.b16 %v156, %v149
  %v164 = vpack.c.b16 %v157, %v150
  %v271 = vunpack.c.l.b16 %v29
  %v272 = vunpack.c.l.b16 %v30
  %v273 = vunpack.c.l.b16 %v31
  %v274 = vunpack.c.l.b16 %v32
  %v275 = vunpack.c.l.b16 %v33
  %v276 = vunpack.c.l.b16 %v34
  %v277 = vunpack.c.l.b16 %v35
  %v278 = vunpack.c.l.b16 %v36
  %v279 = vunpack.c.l.b16 %v37
  %v280 = vunpack.c.l.b16 %v38
  %v281 = vunpack.c.l.b16 %v39
  %v282 = vunpack.c.l.b16 %v40
  %v283 = vunpack.c.l.b16 %v41
  %v284 = vunpack.c.l.b16 %v42
  %v285 = vunpack.c.l.b16 %v43
  %v286 = vunpack.c.l.b16 %v44
  %v287 = vunpack.c.l.b16 %v45
  %v288 = vunpack.c.l.b16 %v46
  %v289 = vunpack.c.l.b16 %v47
  %v290 = vunpack.c.l.b16 %v48
  %v291 = vunpack.c.l.b16 %v49
  %v292 = vunpack.c.l.b16 %v50
  %v293 = vunpack.c.l.b16 %v51
  %v294 = vunpack.c.l.b16 %v52
  %v295 = vunpack.c.l.b16 %v53
  %v296 = vunpack.c.l.b16 %v54
  %v297 = vunpack.c.l.b16 %v55
  %v298 = vunpack.c.l.b16 %v56
  %v299 = vunpack.c.l.b16 %v57
  %v300 = vunpack.c.l.b16 %v58
  %v301 = vunpack.c.l.b16 %v59
  %v302 = vunpack.c.l.b16 %v60
  %v303 = vunpack.c.l.b16 %v61
  %v304 = vunpack.c.l.b16 %v62
  %v305 = vunpack.c.l.b16 %v63
  %v306 = vunpack.c.l.b16 %v64
  %v307 = vunpack.c.l.b16 %v65
  %v308 = vunpack.c.l.b16 %v66
  %v309 = vunpack.c.l.b16 %v67
  %v310 = vunpack.c.l.b16 %v68
  %v311 = vunpack.c.l.b16 %v69
  %v312 = vunpack.c.l.b16 %v70
  %v313 = vunpack.c.l.b16 %v71
  %v314 = vunpack.c.l.b16 %v72
  %v315 = vunpack.c.l.b16 %v73
  %v316 = vunpack.c.l.b16 %v74
  %v317 = vunpack.c.l.b16 %v75
  %v318 = vunpack.c.l.b16 %v76
  %v319 = vunpack.c.l.b16 %v77
  %v320 = vunpack.c.l.b16 %v78
  %v321 = vunpack.c.l.b16 %v79
  %v322 = vunpack.c.l.b16 %v80
  %v323 = vunpack.c.l.b16 %v81
  %v324 = vunpack.c.l.b16 %v82
  %v325 = vunpack.c.l.b16 %v83
  %v326 = vunpack.c.l.b16 %v84
  %v327 = vunpack.c.l.b16 %v85
  %v328 = vunpack.c.l.b16 %v86
  %v329 = vunpack.c.l.b16 %v87
  %v330 = vunpack.c.l.b16 %v88
  %v331 = vunpack.c.l.b16 %v89
  %v332 = vunpack.c.l.b16 %v90
  %v333 = vunpack.c.l.b16 %v91
  %v334 = vunpack.c.l.b16 %v92
  %v335 = vunpack.c.l.b16 %v93
  %v336 = vunpack.c.l.b16 %v94
  %v337 = vunpack.c.l.b16 %v95
  %v338 = vunpack.c.l.b16 %v96
  %v339 = vunpack.c.l.b16 %v97
  %v340 = vunpack.c.l.b16 %v98
  %v341 = vunpack.c.l.b16 %v99
  %v342 = vunpack.c.l.b16 %v100
  %v343 = vunpack.c.l.b16 %v101
  %v344 = vunpack.c.l.b16 %v102
  %v345 = vunpack.c.l.b16 %v103
  %v346 = vunpack.c.l.b16 %v104
  %v347 = vunpack.c.l.b16 %v105
  %v348 = vunpack.c.l.b16 %v106
  %v349 = vunpack.c.l.b16 %v107
  %v350 = vunpack.c.l.b16 %v108
  %v351 = vunpack.c.l.b16 %v109
  %v352 = vunpack.c.l.b16 %v110
  %v353 = vunpack.c.l.b16 %v111
  %v354 = vunpack.c.l.b16 %v112
  %v355 = vunpack.c.l.b16 %v113
  %v356 = vunpack.c.l.b16 %v114
  %v357 = vunpack.c.l.b16 %v115
  %v358 = vunpack.c.l.b16 %v116
  %v359 = vunpack.c.l.b16 %v117
  %v360 = vunpack.c.l.b16 %v118
  %v361 = vunpack.c.l.b16 %v119
  %v362 = vunpack.c.l.b16 %v120
  %v363 = vunpack.c.l.b16 %v121
  %v364 = vunpack.c.l.b16 %v122
  %v365 = vunpack.c.l.b16 %v123
  %v366 = vunpack.c.l.b16 %v124
  %v367 = vunpack.c.l.b16 %v125
  %v368 = vunpack.c.l.b16 %v126
  %v369 = vunpack.c.l.b16 %v127
  %v370 = vunpack.c.l.b16 %v128
  %v371 = vpack.c.b16 %v272, %v271
  %v372 = vpack.c.b16 %v274, %v273
  %v373 = vpack.c.b16 %v276, %v275
  %v374 = vpack.c.b16 %v278, %v277
  %v375 = vpack.c.b16 %v280, %v279
  %v376 = vpack.c.b16 %v282, %v281
  %v377 = vpack.c.b16 %v284, %v283
  %v378 = vpack.c.b16 %v286, %v285
  %v379 = vpack.c.b16 %v288, %v287
  %v380 = vpack.c.b16 %v290, %v289
  %v381 = vpack.c.b16 %v292, %v291
  %v382 = vpack.c.b16 %v294, %v293
  %v383 = vpack.c.b16 %v296, %v295
  %v384 = vpack.c.b16 %v298, %v297
  %v385 = vpack.c.b16 %v300, %v299
  %v386 = vpack.c.b16 %v302, %v301
  %v387 = vpack.c.b16 %v304, %v303
  %v388 = vpack.c.b16 %v306, %v305
  %v389 = vpack.c.b16 %v308, %v307
  %v390 = vpack.c.b16 %v310, %v309
  %v391 = vpack.c.b16 %v312, %v311
  %v392 = vpack.c.b16 %v314, %v313
  %v393 = vpack.c.b16 %v316, %v315
  %v394 = vpack.c.b16 %v318, %v317
  %v395 = vpack.c.b16 %v320, %v319
  %v396 = vpack.c.b16 %v322, %v321
  %v397 = vpack.c.b16 %v324, %v323
  %v398 = vpack.c.b16 %v326, %v325
  %v399 = vpack.c.b16 %v328, %v327
  %v400 = vpack.c.b16 %v330, %v329
  %v401 = vpack.c.b16 %v332, %v331
  %v402 = vpack.c.b16 %v334, %v333
  %v403 = vpack.c.b16 %v336, %v335
  %v404 = vpack.c.b16 %v338, %v337
  %v405 = vpack.c.b16 %v340, %v339
  %v406 = vpack.c.b16 %v342, %v341
  %v407 = vpack.c.b16 %v344, %v343
  %v408 = vpack.c.b16 %v346, %v345
  %v409 = vpack.c.b16 %v348, %v347
  %v410 = vpack.c.b16 %v350, %v349
  %v411 = vpack.c.b16 %v352, %v351
  %v412 = vpack.c.b16 %v354, %v353
  %v413 = vpack.c.b16 %v356, %v355
  %v414 = vpack.c.b16 %v358, %v357
  %v415 = vpack.c.b16 %v360, %v359
  %v416 = vpack.c.b16 %v362, %v361
  %v417 = vpack.c.b16 %v364, %v363
  %v418 = vpack.c.b16 %v366, %v365
  %v419 = vpack.c.b16 %v368, %v367
  %v420 = vpack.c.b16 %v370, %v369
  %vm471 = vcmask 261120
  %v473 = vsel %vm471, %v164, 0
  %475 = vmatprep.subr.bf16.mxu0 0
  %476 = vmatpush1.bf16.msra.mxu0 %v371
  %477 = vmatprep.subr.bf16.mxu0 0
  %478 = vmatpush1.bf16.msra.mxu0 %v372
  %479 = vmatprep.subr.bf16.mxu0 0
  %480 = vmatpush1.bf16.msra.mxu0 %v373
  %481 = vmatprep.subr.bf16.mxu0 0
  %482 = vmatpush1.bf16.msra.mxu0 %v374
  %483 = vmatprep.subr.bf16.mxu0 0
  %484 = vmatpush1.bf16.msra.mxu0 %v375
  %485 = vmatprep.subr.bf16.mxu0 0
  %486 = vmatpush1.bf16.msra.mxu0 %v376
  %487 = vmatprep.subr.bf16.mxu0 0
  %488 = vmatpush1.bf16.msra.mxu0 %v377
  %489 = vmatprep.subr.bf16.mxu0 0
  %490 = vmatpush1.bf16.msra.mxu0 %v378
  %491 = vmatprep.subr.bf16.mxu0 0
  %492 = vmatpush1.bf16.msra.mxu0 %v379
  %493 = vmatprep.subr.bf16.mxu0 0
  %494 = vmatpush1.bf16.msra.mxu0 %v380
  %495 = vmatprep.subr.bf16.mxu0 0
  %496 = vmatpush1.bf16.msra.mxu0 %v381
  %497 = vmatprep.subr.bf16.mxu0 0
  %498 = vmatpush1.bf16.msra.mxu0 %v382
  %499 = vmatprep.subr.bf16.mxu0 0
  %500 = vmatpush1.bf16.msra.mxu0 %v383
  %501 = vmatprep.subr.bf16.mxu0 0
  %502 = vmatpush1.bf16.msra.mxu0 %v384
  %503 = vmatprep.subr.bf16.mxu0 0
  %504 = vmatpush1.bf16.msra.mxu0 %v385
  %505 = vmatprep.subr.bf16.mxu0 0
  %506 = vmatpush1.bf16.msra.mxu0 %v386
  %507 = vmatprep.mubr.bf16.mxu0 %v159
  %508 = vmatmul.mubr.bf16.gmra.mrb[0].mxu0 %v158
  %v509 = vpop.f32.mrb[0].mxu0
  %v510 = vadd.f32 %v134, %v509
  %v511 = vpop.f32.mrb[0].mxu0
  %v512 = vpop.f32.mrb[0].mxu0
  %v513 = vadd.f32 %v134, %v512
  %v514 = vpop.f32.mrb[0].mxu0
  %515 = vdwg.mxu0
  %516 = vmatprep.subr.bf16.mxu0 0
  %517 = vmatpush1.bf16.msra.mxu0 %v387
  %518 = vmatprep.subr.bf16.mxu0 0
  %519 = vmatpush1.bf16.msra.mxu0 %v388
  %520 = vmatprep.subr.bf16.mxu0 0
  %521 = vmatpush1.bf16.msra.mxu0 %v389
  %522 = vmatprep.subr.bf16.mxu0 0
  %523 = vmatpush1.bf16.msra.mxu0 %v390
  %524 = vmatprep.subr.bf16.mxu0 0
  %525 = vmatpush1.bf16.msra.mxu0 %v391
  %526 = vmatprep.subr.bf16.mxu0 0
  %527 = vmatpush1.bf16.msra.mxu0 %v392
  %528 = vmatprep.subr.bf16.mxu0 0
  %529 = vmatpush1.bf16.msra.mxu0 %v393
  %530 = vmatprep.subr.bf16.mxu0 0
  %531 = vmatpush1.bf16.msra.mxu0 %v394
  %532 = vmatprep.subr.bf16.mxu0 0
  %533 = vmatpush1.bf16.msra.mxu0 %v395
  %534 = vmatprep.subr.bf16.mxu0 0
  %535 = vmatpush1.bf16.msra.mxu0 %v396
  %536 = vmatprep.subr.bf16.mxu0 0
  %537 = vmatpush1.bf16.msra.mxu0 %v397
  %538 = vmatprep.subr.bf16.mxu0 0
  %539 = vmatpush1.bf16.msra.mxu0 %v398
  %540 = vmatprep.subr.bf16.mxu0 0
  %541 = vmatpush1.bf16.msra.mxu0 %v399
  %542 = vmatprep.subr.bf16.mxu0 0
  %543 = vmatpush1.bf16.msra.mxu0 %v400
  %544 = vmatprep.subr.bf16.mxu0 0
  %545 = vmatpush1.bf16.msra.mxu0 %v401
  %546 = vmatprep.subr.bf16.mxu0 0
  %547 = vmatpush1.bf16.msra.mxu0 %v402
  %548 = vmatprep.mubr.bf16.mxu0 %v161
  %549 = vmatmul.mubr.bf16.gmra.mrb[0].mxu0 %v160
  %v550 = vpop.f32.mrb[0].mxu0
  %v551 = vadd.f32 %v510, %v550
  %v552 = vpop.f32.mrb[0].mxu0
  %v553 = vpop.f32.mrb[0].mxu0
  %v554 = vadd.f32 %v513, %v553
  %v555 = vpop.f32.mrb[0].mxu0
  %556 = vdwg.mxu0
  %557 = vmatprep.subr.bf16.mxu0 0
  %558 = vmatpush1.bf16.msra.mxu0 %v403
  %559 = vmatprep.subr.bf16.mxu0 0
  %560 = vmatpush1.bf16.msra.mxu0 %v404
  %561 = vmatprep.subr.bf16.mxu0 0
  %562 = vmatpush1.bf16.msra.mxu0 %v405
  %563 = vmatprep.subr.bf16.mxu0 0
  %564 = vmatpush1.bf16.msra.mxu0 %v406
  %565 = vmatprep.subr.bf16.mxu0 0
  %566 = vmatpush1.bf16.msra.mxu0 %v407
  %567 = vmatprep.subr.bf16.mxu0 0
  %568 = vmatpush1.bf16.msra.mxu0 %v408
  %569 = vmatprep.subr.bf16.mxu0 0
  %570 = vmatpush1.bf16.msra.mxu0 %v409
  %571 = vmatprep.subr.bf16.mxu0 0
  %572 = vmatpush1.bf16.msra.mxu0 %v410
  %573 = vmatprep.subr.bf16.mxu0 0
  %574 = vmatpush1.bf16.msra.mxu0 %v411
  %575 = vmatprep.subr.bf16.mxu0 0
  %576 = vmatpush1.bf16.msra.mxu0 %v412
  %577 = vmatprep.subr.bf16.mxu0 0
  %578 = vmatpush1.bf16.msra.mxu0 %v413
  %579 = vmatprep.subr.bf16.mxu0 0
  %580 = vmatpush1.bf16.msra.mxu0 %v414
  %581 = vmatprep.subr.bf16.mxu0 0
  %582 = vmatpush1.bf16.msra.mxu0 %v415
  %583 = vmatprep.subr.bf16.mxu0 0
  %584 = vmatpush1.bf16.msra.mxu0 %v416
  %585 = vmatprep.subr.bf16.mxu0 0
  %586 = vmatpush1.bf16.msra.mxu0 %v417
  %587 = vmatprep.subr.bf16.mxu0 0
  %588 = vmatpush1.bf16.msra.mxu0 %v418
  %589 = vmatprep.mubr.bf16.mxu0 %v163
  %590 = vmatmul.mubr.bf16.gmra.mrb[0].mxu0 %v162
  %v591 = vpop.f32.mrb[0].mxu0
  %v592 = vadd.f32 %v551, %v591
  %v593 = vpop.f32.mrb[0].mxu0
  %v594 = vpop.f32.mrb[0].mxu0
  %v595 = vadd.f32 %v554, %v594
  %v596 = vpop.f32.mrb[0].mxu0
  %597 = vdwg.mxu0
  %598 = vmatprep.subr.bf16.mxu0 0
  %599 = vmatpush1.bf16.msra.mxu0 %v419
  %600 = vmatprep.subr.bf16.mxu0 0
  %601 = vmatpush1.bf16.msra.mxu0 %v420
  %602 = vmatprep.subr.bf16.mxu0 0
  %603 = vmatpush1.bf16.msra.mxu0 0
  %604 = vmatprep.subr.bf16.mxu0 0
  %605 = vmatpush1.bf16.msra.mxu0 0
  %606 = vmatprep.subr.bf16.mxu0 0
  %607 = vmatpush1.bf16.msra.mxu0 0
  %608 = vmatprep.subr.bf16.mxu0 0
  %609 = vmatpush1.bf16.msra.mxu0 0
  %610 = vmatprep.subr.bf16.mxu0 0
  %611 = vmatpush1.bf16.msra.mxu0 0
  %612 = vmatprep.subr.bf16.mxu0 0
  %613 = vmatpush1.bf16.msra.mxu0 0
  %614 = vmatprep.subr.bf16.mxu0 0
  %615 = vmatpush1.bf16.msra.mxu0 0
  %616 = vmatprep.subr.bf16.mxu0 0
  %617 = vmatpush1.bf16.msra.mxu0 0
  %618 = vmatprep.subr.bf16.mxu0 0
  %619 = vmatpush1.bf16.msra.mxu0 0
  %620 = vmatprep.subr.bf16.mxu0 0
  %621 = vmatpush1.bf16.msra.mxu0 0
  %622 = vmatprep.subr.bf16.mxu0 0
  %623 = vmatpush1.bf16.msra.mxu0 0
  %624 = vmatprep.subr.bf16.mxu0 0
  %625 = vmatpush1.bf16.msra.mxu0 0
  %626 = vmatprep.subr.bf16.mxu0 0
  %627 = vmatpush1.bf16.msra.mxu0 0
  %628 = vmatprep.subr.bf16.mxu0 0
  %629 = vmatpush1.bf16.msra.mxu0 0
  %630 = vmatprep.mubr.bf16.mxu0 0
  %631 = vmatmul.mubr.bf16.gmra.mrb[0].mxu0 %v473
  %v632 = vpop.f32.mrb[0].mxu0
  %v633 = vadd.f32 %v592, %v632
  %v634 = vpop.f32.mrb[0].mxu0
  %v635 = vpop.f32.mrb[0].mxu0
  %v636 = vadd.f32 %v595, %v635
  %v637 = vpop.f32.mrb[0].mxu0
  %638 = vdwg.mxu0
  %v639 = vmax.f32 %v633, 0.0
  %v640 = vmax.f32 %v636, 0.0
  %v641 = vpack.c.bf16 %v640, %v639
  %v642 = vld [vmem:[%s3] sm:$0xf]
  %v643 = vld [vmem:[%s3 + $0x4] sm:$0xf]
  %v644 = vld [vmem:[%s3 + $0x8] sm:$0xf]
  %v645 = vld [vmem:[%s3 + $0xc] sm:$0xf]
  %v646 = vld [vmem:[%s3 + $0x10] sm:$0xf]
  %v647 = vld [vmem:[%s3 + $0x14] sm:$0xf]
  %v648 = vld [vmem:[%s3 + $0x18] sm:$0xf]
  %v649 = vld [vmem:[%s3 + $0x1c] sm:$0xf]
  %v650 = vld [vmem:[%s3 + $0x20] sm:$0xf]
  %v651 = vld [vmem:[%s3 + $0x24] sm:$0xf]
  %v652 = vld [vmem:[%s3 + $0x28] sm:$0xf]
  %v653 = vld [vmem:[%s3 + $0x2c] sm:$0xf]
  %v654 = vld [vmem:[%s3 + $0x30] sm:$0xf]
  %v655 = vld [vmem:[%s3 + $0x34] sm:$0xf]
  %v656 = vld [vmem:[%s3 + $0x38] sm:$0xf]
  %v657 = vld [vmem:[%s3 + $0x3c] sm:$0xf]
  %v658 = vld [vmem:[%s4] sm:$0x1]
  %v660 = vlaneseq
  %v661 = vshrl.u32 %v660, 7
  %v662 = vsub.s32 0, %v661
  %v663 = vrot.slane %v658, %v662
  %v681 = vunpack.c.l.b16 %v642
  %v682 = vunpack.c.l.b16 %v643
  %v683 = vunpack.c.l.b16 %v644
  %v684 = vunpack.c.l.b16 %v645
  %v685 = vunpack.c.l.b16 %v646
  %v686 = vunpack.c.l.b16 %v647
  %v687 = vunpack.c.l.b16 %v648
  %v688 = vunpack.c.l.b16 %v649
  %v689 = vunpack.c.l.b16 %v650
  %v690 = vunpack.c.l.b16 %v651
  %v691 = vunpack.c.l.b16 %v652
  %v692 = vunpack.c.l.b16 %v653
  %v693 = vunpack.c.l.b16 %v654
  %v694 = vunpack.c.l.b16 %v655
  %v695 = vunpack.c.l.b16 %v656
  %v696 = vunpack.c.l.b16 %v657
  %v697 = vpack.c.b16 %v682, %v681
  %v698 = vpack.c.b16 %v684, %v683
  %v699 = vpack.c.b16 %v686, %v685
  %v700 = vpack.c.b16 %v688, %v687
  %v701 = vpack.c.b16 %v690, %v689
  %v702 = vpack.c.b16 %v692, %v691
  %v703 = vpack.c.b16 %v694, %v693
  %v704 = vpack.c.b16 %v696, %v695
  %713 = vmatprep.subr.bf16.mxu0 0
  %714 = vmatpush1.bf16.msra.mxu0 %v697
  %715 = vmatprep.subr.bf16.mxu0 0
  %716 = vmatpush1.bf16.msra.mxu0 %v698
  %717 = vmatprep.subr.bf16.mxu0 0
  %718 = vmatpush1.bf16.msra.mxu0 %v699
  %719 = vmatprep.subr.bf16.mxu0 0
  %720 = vmatpush1.bf16.msra.mxu0 %v700
  %721 = vmatprep.subr.bf16.mxu0 0
  %722 = vmatpush1.bf16.msra.mxu0 %v701
  %723 = vmatprep.subr.bf16.mxu0 0
  %724 = vmatpush1.bf16.msra.mxu0 %v702
  %725 = vmatprep.subr.bf16.mxu0 0
  %726 = vmatpush1.bf16.msra.mxu0 %v703
  %727 = vmatprep.subr.bf16.mxu0 0
  %728 = vmatpush1.bf16.msra.mxu0 %v704
  %729 = vmatprep.subr.bf16.mxu0 0
  %730 = vmatpush1.bf16.msra.mxu0 0
  %731 = vmatprep.subr.bf16.mxu0 0
  %732 = vmatpush1.bf16.msra.mxu0 0
  %733 = vmatprep.subr.bf16.mxu0 0
  %734 = vmatpush1.bf16.msra.mxu0 0
  %735 = vmatprep.subr.bf16.mxu0 0
  %736 = vmatpush1.bf16.msra.mxu0 0
  %737 = vmatprep.subr.bf16.mxu0 0
  %738 = vmatpush1.bf16.msra.mxu0 0
  %739 = vmatprep.subr.bf16.mxu0 0
  %740 = vmatpush1.bf16.msra.mxu0 0
  %741 = vmatprep.subr.bf16.mxu0 0
  %742 = vmatpush1.bf16.msra.mxu0 0
  %743 = vmatprep.subr.bf16.mxu0 0
  %744 = vmatpush1.bf16.msra.mxu0 0
  %745 = vmatprep.mubr.bf16.mxu0 0
  %746 = vmatmul.mubr.bf16.gmra.mrb[0].mxu0 %v641
  %v747 = vpop.f32.mrb[0].mxu0
  %v748 = vadd.f32 %v663, %v747
  %v749 = vpop.f32.mrb[0].mxu0
  %v750 = vpop.f32.mrb[0].mxu0
  %v751 = vadd.f32 %v663, %v750
  %v752 = vpop.f32.mrb[0].mxu0
  %753 = vdwg.mxu0
  %754 = vst [vmem:[%s5] sm:$0xff] %v748
  %755 = vst [vmem:[%s5 + $0x8] sm:$0xff] %v751
  // Predicated region
  $region22: #{net_forward.7} parent=0 // pred_check
    _
  $region23: #{net_forward.7} parent=0 // pred_check_branch
    %757 = sbr.rel (0) target = $region25
  $region24: #{net_forward.7} parent=0 // pred_region
    _
  $region25: #{net_forward.7} parent=0 // pred_fallthru
    _
  // Predicated region
  $region26: #{net_forward.7} parent=0 // pred_check
    _
  $region27: #{net_forward.7} parent=0 // pred_check_branch
    %759 = sbr.rel (0) target = $region29
  $region28: #{net_forward.7} parent=0 // pred_region
    _
  $region29: #{net_forward.7} parent=0 // pred_fallthru
    _

</llo_original>
